<compile_context>
chip_gen: v5e
topology: v5e:2x2
jax: 0.10.0
libtpu: 0.0.40
codegen_flags: <defaults>
</compile_context>

<pallas_src>
import functools

import jax
import jax.numpy as jnp
from jax.experimental import pallas as pl
from jax.experimental.pallas import tpu as pltpu

LANE = 128


def _round_up(x, m):
    return ((x + m - 1) // m) * m


# ----------------------------------------------------------------------------
# Fused kernel: maxpool 2x2 -> conv3x3+bias+ReLU -> conv3x3+bias+ReLU (reparam
# attention) -> conv3x3+bias+ReLU.  One grid step = one batch element.
# ----------------------------------------------------------------------------
def _fused_kernel(x_ref, w1_ref, b1_ref, wr_ref, br_ref, w2_ref, b2_ref,
                  o_ref, pad_ref, col_ref):
    # x_ref  : (1, Ho, 2, Wo, 2*C1)   reshaped NHWC input (pool window exposed)
    # w*_ref : (9*CP, CoutP) bf16     im2col-packed conv weights (BN scale folded)
    # b*_ref : (1, CoutP)   f32       folded BN bias
    # o_ref  : (1, Ho, Wo, C3) f32
    # pad_ref: (Ho+2, Wo+2, CP) f32   halo buffer (stage activations)
    # col_ref: (Ho*Wo, 9*CP) bf16     im2col patch matrix
    _, Ho, _, Wo, two_c1 = x_ref.shape
    C1 = two_c1 // 2
    CP = pad_ref.shape[-1]
    C3 = o_ref.shape[-1]
    HW = Ho * Wo

    # Zero the halo buffer (halo stays zero => implicit padding=1 for every conv;
    # channels >= C1 stay zero for stage 1).
    pad_ref[...] = jnp.zeros_like(pad_ref)

    # ---- fused 2x2 max-pool, entirely in VMEM -------------------------------
    r0 = x_ref[0, :, 0, :, :]                       # (Ho, Wo, 2*C1)  pool row 0
    r1 = x_ref[0, :, 1, :, :]                       # (Ho, Wo, 2*C1)  pool row 1
    m = jnp.maximum(r0, r1)
    pooled = jnp.maximum(m[:, :, :C1], m[:, :, C1:])        # (Ho, Wo, C1)
    pad_ref[1:1 + Ho, 1:1 + Wo, :C1] = pooled.astype(pad_ref.dtype)

    def conv3x3_stage(w_ref_, b_ref_):
        # im2col: fold all 9 taps into K = 9*CP -> one deep MXU contraction.
        for kh in range(3):
            for kw in range(3):
                k = kh * 3 + kw
                slab = pad_ref[kh:kh + Ho, kw:kw + Wo, :]          # (Ho, Wo, CP)
                col_ref[:, k * CP:(k + 1) * CP] = (
                    slab.reshape(HW, CP).astype(col_ref.dtype))
        acc = jnp.dot(col_ref[...], w_ref_[...],
                      preferred_element_type=jnp.float32)          # (HW, CoutP)
        return jnp.maximum(acc + b_ref_[...], 0.0)                 # f32 epilogue

    # ---- conv1 (C1 -> Cmid) + BN + ReLU ------------------------------------
    y = conv3x3_stage(w1_ref, b1_ref)                              # (HW, CP)
    pad_ref[1:1 + Ho, 1:1 + Wo, :] = y.reshape(Ho, Wo, CP)
    # ---- attention block, reparameterized into one 3x3 conv ----------------
    y = conv3x3_stage(wr_ref, br_ref)                              # (HW, CP)
    pad_ref[1:1 + Ho, 1:1 + Wo, :] = y.reshape(Ho, Wo, CP)
    # ---- conv2 (Cmid -> C3) + BN + ReLU -------------------------------------
    y = conv3x3_stage(w2_ref, b2_ref)                              # (HW, C3)
    o_ref[...] = y.reshape(1, Ho, Wo, C3).astype(o_ref.dtype)


# ----------------------------------------------------------------------------
# Wrapper: NCHW in/out, single pallas_call over the batch.
# ----------------------------------------------------------------------------
@jax.jit
def down_attention_ppa(x_nchw, packed):
    N, C1, H, W = x_nchw.shape
    assert H % 2 == 0 and W % 2 == 0
    Ho, Wo = H // 2, W // 2
    CP = packed["w1"].shape[0] // 9
    C3 = packed["w2"].shape[-1]

    # Tiny boundary layout change (8 KB); the reshape exposes the 2x2 pool window
    # so the kernel needs no strided HBM views and no XLA-side pooling.
    x_r = jnp.transpose(x_nchw, (0, 2, 3, 1)).reshape(N, Ho, 2, Wo, 2 * C1)

    y = pl.pallas_call(
        _fused_kernel,
        out_shape=jax.ShapeDtypeStruct((N, Ho, Wo, C3), jnp.float32),
        grid=(N,),
        in_specs=[
            pl.BlockSpec((1, Ho, 2, Wo, 2 * C1), lambda n: (n, 0, 0, 0, 0)),
            pl.BlockSpec((9 * CP, CP), lambda n: (0, 0)),
            pl.BlockSpec((1, CP), lambda n: (0, 0)),
            pl.BlockSpec((9 * CP, CP), lambda n: (0, 0)),
            pl.BlockSpec((1, CP), lambda n: (0, 0)),
            pl.BlockSpec((9 * CP, C3), lambda n: (0, 0)),
            pl.BlockSpec((1, C3), lambda n: (0, 0)),
        ],
        out_specs=pl.BlockSpec((1, Ho, Wo, C3), lambda n: (n, 0, 0, 0)),
        scratch_shapes=[
            pltpu.VMEM((Ho + 2, Wo + 2, CP), jnp.float32),     # halo/activation buf
            pltpu.VMEM((Ho * Wo, 9 * CP), jnp.bfloat16),       # im2col patch matrix
        ],
        compiler_params=pltpu.CompilerParams(
            dimension_semantics=("parallel",),
            vmem_limit_bytes=32 * 1024 * 1024,
        ),
    )(x_r, packed["w1"], packed["b1"], packed["wr"], packed["br"],
      packed["w2"], packed["b2"])

    return jnp.transpose(y, (0, 3, 1, 2))                          # NHWC -> NCHW


# ----------------------------------------------------------------------------
# Parameter construction (deterministic, synthetic) and one-time packing.
# ----------------------------------------------------------------------------
def _fold_bn(gamma, beta, mean, var, eps=1e-5):
    scale = gamma / jnp.sqrt(var + eps)
    bias = beta - mean * scale
    return (scale.reshape(1, -1).astype(jnp.float32),
            bias.reshape(1, -1).astype(jnp.float32))


def _bn_params(key, c):
    k1, k2, k3, k4 = jax.random.split(key, 4)
    gamma = 1.0 + 0.1 * jax.random.normal(k1, (c,), jnp.float32)
    beta = 0.1 * jax.random.normal(k2, (c,), jnp.float32)
    mean = 0.1 * jax.random.normal(k3, (c,), jnp.float32)
    var = jax.random.uniform(k4, (c,), jnp.float32, 0.5, 1.5)
    return _fold_bn(gamma, beta, mean, var)


def init_params(key, in_channels, out_channels):
    mid = out_channels  # mid_channels defaults to out_channels
    ks = jax.random.split(key, 8)
    p = {}
    p["w1"] = 0.1 * jax.random.normal(ks[0], (3, 3, in_channels, mid), jnp.float32)
    p["s1"], p["b1"] = _bn_params(ks[1], mid)
    p["w3"] = 0.1 * jax.random.normal(ks[2], (3, 3, mid, mid), jnp.float32)
    p["s3"], p["b3"] = _bn_params(ks[3], mid)
    p["w1x1"] = 0.1 * jax.random.normal(ks[4], (mid, mid), jnp.float32)
    p["s1x1"], p["b1x1"] = _bn_params(ks[5], mid)
    p["sid"], p["bid"] = _bn_params(ks[6], mid)
    p["w2"] = 0.1 * jax.random.normal(ks[7], (3, 3, mid, out_channels), jnp.float32)
    kb = jax.random.fold_in(key, 123)
    p["s2"], p["b2"] = _bn_params(kb, out_channels)
    return p


def pack_params(p, in_channels, out_channels):
    """Fold BN scales into weights, reparameterize the attention block into one
    3x3 conv, zero-pad channels to a multiple of 128, pack to (9*Cp, Cout) bf16."""
    C1, C2, C3 = in_channels, out_channels, out_channels
    CP = _round_up(max(C1, C2), LANE)

    def fold_scale(w_hwio, scale):
        return w_hwio * scale.reshape(1, 1, 1, -1)

    def pack(w_hwio, bias, cin, cout, cin_p, cout_p):
        wp = jnp.zeros((3, 3, cin_p, cout_p), jnp.float32)
        wp = wp.at[:, :, :cin, :cout].set(w_hwio)
        bp = jnp.zeros((cout_p,), jnp.float32).at[:cout].set(bias.reshape(-1))
        return (wp.reshape(9 * cin_p, cout_p).astype(jnp.bfloat16),
                bp.reshape(1, cout_p))

    # conv1: BN scale folded into weights
    w1 = fold_scale(p["w1"], p["s1"])
    w1p, b1p = pack(w1, p["b1"], C1, C2, CP, CP)

    # attention block (RepVGG-style 3x3 + 1x1 + identity) -> single 3x3
    wr = fold_scale(p["w3"], p["s3"])
    center = (wr[1, 1]
              + p["w1x1"] * p["s1x1"].reshape(1, -1)
              + jnp.diag(p["sid"].reshape(-1)))
    wr = wr.at[1, 1].set(center)
    br = (p["b3"] + p["b1x1"] + p["bid"]).reshape(-1)
    wrp, brp = pack(wr, br, C2, C2, CP, CP)

    # conv2
    w2 = fold_scale(p["w2"], p["s2"])
    w2p, b2p = pack(w2, p["b2"], C2, C3, CP, C3)

    return {"w1": w1p, "b1": b1p, "wr": wrp, "br": brp, "w2": w2p, "b2": b2p}


# ----------------------------------------------------------------------------
# Pure-JAX f32 reference (sanity check only).
# ----------------------------------------------------------------------------
def _ref_forward(x_nchw, p):
    x = jnp.transpose(x_nchw, (0, 2, 3, 1))
    x = jax.lax.reduce_window(x, -jnp.inf, jax.lax.max,
                              (1, 2, 2, 1), (1, 2, 2, 1), "VALID")

    def conv_bn_relu(x, w, s, b):
        y = jax.lax.conv_general_dilated(
            x, w, (1, 1), ((1, 1), (1, 1)),
            dimension_numbers=("NHWC", "HWIO", "NHWC"))
        return jnp.maximum(y * s.reshape(1, 1, 1, -1) + b.reshape(1, 1, 1, -1), 0.0)

    x = conv_bn_relu(x, p["w1"], p["s1"], p["b1"])
    y3 = jax.lax.conv_general_dilated(
        x, p["w3"], (1, 1), ((1, 1), (1, 1)),
        dimension_numbers=("NHWC", "HWIO", "NHWC"))
    y3 = y3 * p["s3"].reshape(1, 1, 1, -1) + p["b3"].reshape(1, 1, 1, -1)
    y1 = jnp.einsum("nhwc,cd->nhwd", x, p["w1x1"])
    y1 = y1 * p["s1x1"].reshape(1, 1, 1, -1) + p["b1x1"].reshape(1, 1, 1, -1)
    yid = x * p["sid"].reshape(1, 1, 1, -1) + p["bid"].reshape(1, 1, 1, -1)
    x = jnp.maximum(y3 + y1 + yid, 0.0)
    x = conv_bn_relu(x, p["w2"], p["s2"], p["b2"])
    return jnp.transpose(x, (0, 3, 1, 2))


if __name__ == "__main__":
    key = jax.random.PRNGKey(0)
    kx, kp = jax.random.split(key)

    N, Cin, H, W = 2, 4, 16, 16
    Cout = 8
    x = jax.random.normal(kx, (N, Cin, H, W), jnp.float32)
    params = init_params(kp, Cin, Cout)
    packed = pack_params(params, Cin, Cout)

    out = jax.block_until_ready(down_attention_ppa(x, packed))
    assert out.shape == (N, Cout, H // 2, W // 2), out.shape

    ref = jax.block_until_ready(_ref_forward(x, params))
    max_err = float(jnp.max(jnp.abs(out - ref)))
    # bf16 matmul operands with f32 accumulation -> small expected deviation
    assert jnp.allclose(out, ref, atol=5e-2, rtol=5e-2), max_err

    print("KERNEL_OK")
</pallas_src>

<mosaic_0001>
module attributes {stable_mosaic.version = 11 : i64} {
  func.func @_fused_kernel(%arg0: i32, %arg1: memref<1x8x2x8x8xf32, #tpu.memory_space<vmem>>, %arg2: memref<1152x128xbf16, #tpu.memory_space<vmem>>, %arg3: memref<1x128xf32, #tpu.memory_space<vmem>>, %arg4: memref<1152x128xbf16, #tpu.memory_space<vmem>>, %arg5: memref<1x128xf32, #tpu.memory_space<vmem>>, %arg6: memref<1152x8xbf16, #tpu.memory_space<vmem>>, %arg7: memref<1x8xf32, #tpu.memory_space<vmem>>, %arg8: memref<1x8x8x8xf32, #tpu.memory_space<vmem>>, %arg9: memref<10x10x128xf32, #tpu.memory_space<vmem>>, %arg10: memref<64x1152xbf16, #tpu.memory_space<vmem>>) attributes {dimension_semantics = [#tpu.dimension_semantics<parallel>], iteration_bounds = array<i64: 2>, scalar_prefetch = 0 : i64, scratch_operands = 2 : i64, tpu.core_type = #tpu.core_type<tc>, window_params = [{transform_indices = @transform_0, window_bounds = array<i64: 1, 8, 2, 8, 8>}, {pipeline_mode = #tpu.pipeline_mode<synchronous>, transform_indices = @transform_1, window_bounds = array<i64: 1152, 128>}, {pipeline_mode = #tpu.pipeline_mode<synchronous>, transform_indices = @transform_2, window_bounds = array<i64: 1, 128>}, {pipeline_mode = #tpu.pipeline_mode<synchronous>, transform_indices = @transform_3, window_bounds = array<i64: 1152, 128>}, {pipeline_mode = #tpu.pipeline_mode<synchronous>, transform_indices = @transform_4, window_bounds = array<i64: 1, 128>}, {pipeline_mode = #tpu.pipeline_mode<synchronous>, transform_indices = @transform_5, window_bounds = array<i64: 1152, 8>}, {pipeline_mode = #tpu.pipeline_mode<synchronous>, transform_indices = @transform_6, window_bounds = array<i64: 1, 8>}, {transform_indices = @transform_7, window_bounds = array<i64: 1, 8, 8, 8>}]} {
    %cst = arith.constant 0.000000e+00 : f32
    %0 = vector.broadcast %cst : f32 to vector<10x10x128xf32>
    %c0 = arith.constant 0 : index
    %c0_0 = arith.constant 0 : index
    %c0_1 = arith.constant 0 : index
    %1 = vector.load %arg9[%c0, %c0_0, %c0_1] : memref<10x10x128xf32, #tpu.memory_space<vmem>>, vector<10x10x128xf32>
    tpu.vector_store %arg9[%c0, %c0_0, %c0_1], %0 {strides = array<i32>} : memref<10x10x128xf32, #tpu.memory_space<vmem>>, vector<10x10x128xf32>,
    %c0_2 = arith.constant 0 : index
    %c0_3 = arith.constant 0 : index
    %c0_4 = arith.constant 0 : index
    %c0_5 = arith.constant 0 : index
    %c0_6 = arith.constant 0 : index
    %2 = vector.load %arg1[%c0_2, %c0_3, %c0_4, %c0_5, %c0_6] : memref<1x8x2x8x8xf32, #tpu.memory_space<vmem>>, vector<1x8x1x8x8xf32>
    %3 = vector.shape_cast %2 : vector<1x8x1x8x8xf32> to vector<8x8x8xf32>
    %c0_7 = arith.constant 0 : index
    %c0_8 = arith.constant 0 : index
    %c1 = arith.constant 1 : index
    %c0_9 = arith.constant 0 : index
    %c0_10 = arith.constant 0 : index
    %4 = vector.load %arg1[%c0_7, %c0_8, %c1, %c0_9, %c0_10] : memref<1x8x2x8x8xf32, #tpu.memory_space<vmem>>, vector<1x8x1x8x8xf32>
    %5 = vector.shape_cast %4 : vector<1x8x1x8x8xf32> to vector<8x8x8xf32>
    %6 = arith.maximumf %3, %5 : vector<8x8x8xf32>
    %7 = vector.extract_strided_slice %6 {offsets = [0, 0, 0], sizes = [8, 8, 4], strides = [1, 1, 1]} : vector<8x8x8xf32> to vector<8x8x4xf32>
    %8 = vector.extract_strided_slice %6 {offsets = [0, 0, 4], sizes = [8, 8, 4], strides = [1, 1, 1]} : vector<8x8x8xf32> to vector<8x8x4xf32>
    %9 = arith.maximumf %7, %8 : vector<8x8x4xf32>
    %c1_11 = arith.constant 1 : index
    %c1_12 = arith.constant 1 : index
    %c0_13 = arith.constant 0 : index
    %10 = vector.load %arg9[%c1_11, %c1_12, %c0_13] : memref<10x10x128xf32, #tpu.memory_space<vmem>>, vector<8x8x4xf32>
    tpu.vector_store %arg9[%c1_11, %c1_12, %c0_13], %9 {strides = array<i32>} : memref<10x10x128xf32, #tpu.memory_space<vmem>>, vector<8x8x4xf32>,
    %c0_14 = arith.constant 0 : index
    %c0_15 = arith.constant 0 : index
    %c0_16 = arith.constant 0 : index
    %11 = vector.load %arg9[%c0_14, %c0_15, %c0_16] : memref<10x10x128xf32, #tpu.memory_space<vmem>>, vector<8x8x128xf32>
    %12 = vector.shape_cast %11 : vector<8x8x128xf32> to vector<64x128xf32>
    %13 = arith.truncf %12 : vector<64x128xf32> to vector<64x128xbf16>
    %c0_17 = arith.constant 0 : index
    %c0_18 = arith.constant 0 : index
    %14 = vector.load %arg10[%c0_17, %c0_18] : memref<64x1152xbf16, #tpu.memory_space<vmem>>, vector<64x128xbf16>
    tpu.vector_store %arg10[%c0_17, %c0_18], %13 {strides = array<i32>} : memref<64x1152xbf16, #tpu.memory_space<vmem>>, vector<64x128xbf16>,
    %c0_19 = arith.constant 0 : index
    %c1_20 = arith.constant 1 : index
    %c0_21 = arith.constant 0 : index
    %15 = vector.load %arg9[%c0_19, %c1_20, %c0_21] : memref<10x10x128xf32, #tpu.memory_space<vmem>>, vector<8x8x128xf32>
    %16 = vector.shape_cast %15 : vector<8x8x128xf32> to vector<64x128xf32>
    %17 = arith.truncf %16 : vector<64x128xf32> to vector<64x128xbf16>
    %c0_22 = arith.constant 0 : index
    %c128 = arith.constant 128 : index
    %18 = vector.load %arg10[%c0_22, %c128] : memref<64x1152xbf16, #tpu.memory_space<vmem>>, vector<64x128xbf16>
    tpu.vector_store %arg10[%c0_22, %c128], %17 {strides = array<i32>} : memref<64x1152xbf16, #tpu.memory_space<vmem>>, vector<64x128xbf16>,
    %c0_23 = arith.constant 0 : index
    %c2 = arith.constant 2 : index
    %c0_24 = arith.constant 0 : index
    %19 = vector.load %arg9[%c0_23, %c2, %c0_24] : memref<10x10x128xf32, #tpu.memory_space<vmem>>, vector<8x8x128xf32>
    %20 = vector.shape_cast %19 : vector<8x8x128xf32> to vector<64x128xf32>
    %21 = arith.truncf %20 : vector<64x128xf32> to vector<64x128xbf16>
    %c0_25 = arith.constant 0 : index
    %c256 = arith.constant 256 : index
    %22 = vector.load %arg10[%c0_25, %c256] : memref<64x1152xbf16, #tpu.memory_space<vmem>>, vector<64x128xbf16>
    tpu.vector_store %arg10[%c0_25, %c256], %21 {strides = array<i32>} : memref<64x1152xbf16, #tpu.memory_space<vmem>>, vector<64x128xbf16>,
    %c1_26 = arith.constant 1 : index
    %c0_27 = arith.constant 0 : index
    %c0_28 = arith.constant 0 : index
    %23 = vector.load %arg9[%c1_26, %c0_27, %c0_28] : memref<10x10x128xf32, #tpu.memory_space<vmem>>, vector<8x8x128xf32>
    %24 = vector.shape_cast %23 : vector<8x8x128xf32> to vector<64x128xf32>
    %25 = arith.truncf %24 : vector<64x128xf32> to vector<64x128xbf16>
    %c0_29 = arith.constant 0 : index
    %c384 = arith.constant 384 : index
    %26 = vector.load %arg10[%c0_29, %c384] : memref<64x1152xbf16, #tpu.memory_space<vmem>>, vector<64x128xbf16>
    tpu.vector_store %arg10[%c0_29, %c384], %25 {strides = array<i32>} : memref<64x1152xbf16, #tpu.memory_space<vmem>>, vector<64x128xbf16>,
    %c1_30 = arith.constant 1 : index
    %c1_31 = arith.constant 1 : index
    %c0_32 = arith.constant 0 : index
    %27 = vector.load %arg9[%c1_30, %c1_31, %c0_32] : memref<10x10x128xf32, #tpu.memory_space<vmem>>, vector<8x8x128xf32>
    %28 = vector.shape_cast %27 : vector<8x8x128xf32> to vector<64x128xf32>
    %29 = arith.truncf %28 : vector<64x128xf32> to vector<64x128xbf16>
    %c0_33 = arith.constant 0 : index
    %c512 = arith.constant 512 : index
    %30 = vector.load %arg10[%c0_33, %c512] : memref<64x1152xbf16, #tpu.memory_space<vmem>>, vector<64x128xbf16>
    tpu.vector_store %arg10[%c0_33, %c512], %29 {strides = array<i32>} : memref<64x1152xbf16, #tpu.memory_space<vmem>>, vector<64x128xbf16>,
    %c1_34 = arith.constant 1 : index
    %c2_35 = arith.constant 2 : index
    %c0_36 = arith.constant 0 : index
    %31 = vector.load %arg9[%c1_34, %c2_35, %c0_36] : memref<10x10x128xf32, #tpu.memory_space<vmem>>, vector<8x8x128xf32>
    %32 = vector.shape_cast %31 : vector<8x8x128xf32> to vector<64x128xf32>
    %33 = arith.truncf %32 : vector<64x128xf32> to vector<64x128xbf16>
    %c0_37 = arith.constant 0 : index
    %c640 = arith.constant 640 : index
    %34 = vector.load %arg10[%c0_37, %c640] : memref<64x1152xbf16, #tpu.memory_space<vmem>>, vector<64x128xbf16>
    tpu.vector_store %arg10[%c0_37, %c640], %33 {strides = array<i32>} : memref<64x1152xbf16, #tpu.memory_space<vmem>>, vector<64x128xbf16>,
    %c2_38 = arith.constant 2 : index
    %c0_39 = arith.constant 0 : index
    %c0_40 = arith.constant 0 : index
    %35 = vector.load %arg9[%c2_38, %c0_39, %c0_40] : memref<10x10x128xf32, #tpu.memory_space<vmem>>, vector<8x8x128xf32>
    %36 = vector.shape_cast %35 : vector<8x8x128xf32> to vector<64x128xf32>
    %37 = arith.truncf %36 : vector<64x128xf32> to vector<64x128xbf16>
    %c0_41 = arith.constant 0 : index
    %c768 = arith.constant 768 : index
    %38 = vector.load %arg10[%c0_41, %c768] : memref<64x1152xbf16, #tpu.memory_space<vmem>>, vector<64x128xbf16>
    tpu.vector_store %arg10[%c0_41, %c768], %37 {strides = array<i32>} : memref<64x1152xbf16, #tpu.memory_space<vmem>>, vector<64x128xbf16>,
    %c2_42 = arith.constant 2 : index
    %c1_43 = arith.constant 1 : index
    %c0_44 = arith.constant 0 : index
    %39 = vector.load %arg9[%c2_42, %c1_43, %c0_44] : memref<10x10x128xf32, #tpu.memory_space<vmem>>, vector<8x8x128xf32>
    %40 = vector.shape_cast %39 : vector<8x8x128xf32> to vector<64x128xf32>
    %41 = arith.truncf %40 : vector<64x128xf32> to vector<64x128xbf16>
    %c0_45 = arith.constant 0 : index
    %c896 = arith.constant 896 : index
    %42 = vector.load %arg10[%c0_45, %c896] : memref<64x1152xbf16, #tpu.memory_space<vmem>>, vector<64x128xbf16>
    tpu.vector_store %arg10[%c0_45, %c896], %41 {strides = array<i32>} : memref<64x1152xbf16, #tpu.memory_space<vmem>>, vector<64x128xbf16>,
    %c2_46 = arith.constant 2 : index
    %c2_47 = arith.constant 2 : index
    %c0_48 = arith.constant 0 : index
    %43 = vector.load %arg9[%c2_46, %c2_47, %c0_48] : memref<10x10x128xf32, #tpu.memory_space<vmem>>, vector<8x8x128xf32>
    %44 = vector.shape_cast %43 : vector<8x8x128xf32> to vector<64x128xf32>
    %45 = arith.truncf %44 : vector<64x128xf32> to vector<64x128xbf16>
    %c0_49 = arith.constant 0 : index
    %c1024 = arith.constant 1024 : index
    %46 = vector.load %arg10[%c0_49, %c1024] : memref<64x1152xbf16, #tpu.memory_space<vmem>>, vector<64x128xbf16>
    tpu.vector_store %arg10[%c0_49, %c1024], %45 {strides = array<i32>} : memref<64x1152xbf16, #tpu.memory_space<vmem>>, vector<64x128xbf16>,
    %c0_50 = arith.constant 0 : index
    %c0_51 = arith.constant 0 : index
    %47 = vector.load %arg10[%c0_50, %c0_51] : memref<64x1152xbf16, #tpu.memory_space<vmem>>, vector<64x1152xbf16>
    %c0_52 = arith.constant 0 : index
    %c0_53 = arith.constant 0 : index
    %48 = vector.load %arg2[%c0_52, %c0_53] : memref<1152x128xbf16, #tpu.memory_space<vmem>>, vector<1152x128xbf16>
    %cst_54 = arith.constant dense<0.000000e+00> : vector<64x128xf32>
    %49 = tpu.matmul %47, %48, %cst_54 {dimension_numbers = #tpu.dot_dimension_numbers<[1], [0], [0], [1], [0, 0, 1, 1], [], []>} : vector<64x1152xbf16>, vector<1152x128xbf16>, vector<64x128xf32> -> vector<64x128xf32>
    %c0_55 = arith.constant 0 : index
    %c0_56 = arith.constant 0 : index
    %50 = vector.load %arg3[%c0_55, %c0_56] : memref<1x128xf32, #tpu.memory_space<vmem>>, vector<1x128xf32>
    %51 = vector.broadcast %50 : vector<1x128xf32> to vector<64x128xf32>
    %52 = arith.addf %49, %51 : vector<64x128xf32>
    %cst_57 = arith.constant 0.000000e+00 : f32
    %53 = vector.broadcast %cst_57 : f32 to vector<64x128xf32>
    %54 = arith.maximumf %52, %53 : vector<64x128xf32>
    %55 = vector.shape_cast %54 : vector<64x128xf32> to vector<8x8x128xf32>
    %c1_58 = arith.constant 1 : index
    %c1_59 = arith.constant 1 : index
    %c0_60 = arith.constant 0 : index
    %56 = vector.load %arg9[%c1_58, %c1_59, %c0_60] : memref<10x10x128xf32, #tpu.memory_space<vmem>>, vector<8x8x128xf32>
    tpu.vector_store %arg9[%c1_58, %c1_59, %c0_60], %55 {strides = array<i32>} : memref<10x10x128xf32, #tpu.memory_space<vmem>>, vector<8x8x128xf32>,
    %c0_61 = arith.constant 0 : index
    %c0_62 = arith.constant 0 : index
    %c0_63 = arith.constant 0 : index
    %57 = vector.load %arg9[%c0_61, %c0_62, %c0_63] : memref<10x10x128xf32, #tpu.memory_space<vmem>>, vector<8x8x128xf32>
    %58 = vector.shape_cast %57 : vector<8x8x128xf32> to vector<64x128xf32>
    %59 = arith.truncf %58 : vector<64x128xf32> to vector<64x128xbf16>
    %c0_64 = arith.constant 0 : index
    %c0_65 = arith.constant 0 : index
    %60 = vector.load %arg10[%c0_64, %c0_65] : memref<64x1152xbf16, #tpu.memory_space<vmem>>, vector<64x128xbf16>
    tpu.vector_store %arg10[%c0_64, %c0_65], %59 {strides = array<i32>} : memref<64x1152xbf16, #tpu.memory_space<vmem>>, vector<64x128xbf16>,
    %c0_66 = arith.constant 0 : index
    %c1_67 = arith.constant 1 : index
    %c0_68 = arith.constant 0 : index
    %61 = vector.load %arg9[%c0_66, %c1_67, %c0_68] : memref<10x10x128xf32, #tpu.memory_space<vmem>>, vector<8x8x128xf32>
    %62 = vector.shape_cast %61 : vector<8x8x128xf32> to vector<64x128xf32>
    %63 = arith.truncf %62 : vector<64x128xf32> to vector<64x128xbf16>
    %c0_69 = arith.constant 0 : index
    %c128_70 = arith.constant 128 : index
    %64 = vector.load %arg10[%c0_69, %c128_70] : memref<64x1152xbf16, #tpu.memory_space<vmem>>, vector<64x128xbf16>
    tpu.vector_store %arg10[%c0_69, %c128_70], %63 {strides = array<i32>} : memref<64x1152xbf16, #tpu.memory_space<vmem>>, vector<64x128xbf16>,
    %c0_71 = arith.constant 0 : index
    %c2_72 = arith.constant 2 : index
    %c0_73 = arith.constant 0 : index
    %65 = vector.load %arg9[%c0_71, %c2_72, %c0_73] : memref<10x10x128xf32, #tpu.memory_space<vmem>>, vector<8x8x128xf32>
    %66 = vector.shape_cast %65 : vector<8x8x128xf32> to vector<64x128xf32>
    %67 = arith.truncf %66 : vector<64x128xf32> to vector<64x128xbf16>
    %c0_74 = arith.constant 0 : index
    %c256_75 = arith.constant 256 : index
    %68 = vector.load %arg10[%c0_74, %c256_75] : memref<64x1152xbf16, #tpu.memory_space<vmem>>, vector<64x128xbf16>
    tpu.vector_store %arg10[%c0_74, %c256_75], %67 {strides = array<i32>} : memref<64x1152xbf16, #tpu.memory_space<vmem>>, vector<64x128xbf16>,
    %c1_76 = arith.constant 1 : index
    %c0_77 = arith.constant 0 : index
    %c0_78 = arith.constant 0 : index
    %69 = vector.load %arg9[%c1_76, %c0_77, %c0_78] : memref<10x10x128xf32, #tpu.memory_space<vmem>>, vector<8x8x128xf32>
    %70 = vector.shape_cast %69 : vector<8x8x128xf32> to vector<64x128xf32>
    %71 = arith.truncf %70 : vector<64x128xf32> to vector<64x128xbf16>
    %c0_79 = arith.constant 0 : index
    %c384_80 = arith.constant 384 : index
    %72 = vector.load %arg10[%c0_79, %c384_80] : memref<64x1152xbf16, #tpu.memory_space<vmem>>, vector<64x128xbf16>
    tpu.vector_store %arg10[%c0_79, %c384_80], %71 {strides = array<i32>} : memref<64x1152xbf16, #tpu.memory_space<vmem>>, vector<64x128xbf16>,
    %c1_81 = arith.constant 1 : index
    %c1_82 = arith.constant 1 : index
    %c0_83 = arith.constant 0 : index
    %73 = vector.load %arg9[%c1_81, %c1_82, %c0_83] : memref<10x10x128xf32, #tpu.memory_space<vmem>>, vector<8x8x128xf32>
    %74 = vector.shape_cast %73 : vector<8x8x128xf32> to vector<64x128xf32>
    %75 = arith.truncf %74 : vector<64x128xf32> to vector<64x128xbf16>
    %c0_84 = arith.constant 0 : index
    %c512_85 = arith.constant 512 : index
    %76 = vector.load %arg10[%c0_84, %c512_85] : memref<64x1152xbf16, #tpu.memory_space<vmem>>, vector<64x128xbf16>
    tpu.vector_store %arg10[%c0_84, %c512_85], %75 {strides = array<i32>} : memref<64x1152xbf16, #tpu.memory_space<vmem>>, vector<64x128xbf16>,
    %c1_86 = arith.constant 1 : index
    %c2_87 = arith.constant 2 : index
    %c0_88 = arith.constant 0 : index
    %77 = vector.load %arg9[%c1_86, %c2_87, %c0_88] : memref<10x10x128xf32, #tpu.memory_space<vmem>>, vector<8x8x128xf32>
    %78 = vector.shape_cast %77 : vector<8x8x128xf32> to vector<64x128xf32>
    %79 = arith.truncf %78 : vector<64x128xf32> to vector<64x128xbf16>
    %c0_89 = arith.constant 0 : index
    %c640_90 = arith.constant 640 : index
    %80 = vector.load %arg10[%c0_89, %c640_90] : memref<64x1152xbf16, #tpu.memory_space<vmem>>, vector<64x128xbf16>
    tpu.vector_store %arg10[%c0_89, %c640_90], %79 {strides = array<i32>} : memref<64x1152xbf16, #tpu.memory_space<vmem>>, vector<64x128xbf16>,
    %c2_91 = arith.constant 2 : index
    %c0_92 = arith.constant 0 : index
    %c0_93 = arith.constant 0 : index
    %81 = vector.load %arg9[%c2_91, %c0_92, %c0_93] : memref<10x10x128xf32, #tpu.memory_space<vmem>>, vector<8x8x128xf32>
    %82 = vector.shape_cast %81 : vector<8x8x128xf32> to vector<64x128xf32>
    %83 = arith.truncf %82 : vector<64x128xf32> to vector<64x128xbf16>
    %c0_94 = arith.constant 0 : index
    %c768_95 = arith.constant 768 : index
    %84 = vector.load %arg10[%c0_94, %c768_95] : memref<64x1152xbf16, #tpu.memory_space<vmem>>, vector<64x128xbf16>
    tpu.vector_store %arg10[%c0_94, %c768_95], %83 {strides = array<i32>} : memref<64x1152xbf16, #tpu.memory_space<vmem>>, vector<64x128xbf16>,
    %c2_96 = arith.constant 2 : index
    %c1_97 = arith.constant 1 : index
    %c0_98 = arith.constant 0 : index
    %85 = vector.load %arg9[%c2_96, %c1_97, %c0_98] : memref<10x10x128xf32, #tpu.memory_space<vmem>>, vector<8x8x128xf32>
    %86 = vector.shape_cast %85 : vector<8x8x128xf32> to vector<64x128xf32>
    %87 = arith.truncf %86 : vector<64x128xf32> to vector<64x128xbf16>
    %c0_99 = arith.constant 0 : index
    %c896_100 = arith.constant 896 : index
    %88 = vector.load %arg10[%c0_99, %c896_100] : memref<64x1152xbf16, #tpu.memory_space<vmem>>, vector<64x128xbf16>
    tpu.vector_store %arg10[%c0_99, %c896_100], %87 {strides = array<i32>} : memref<64x1152xbf16, #tpu.memory_space<vmem>>, vector<64x128xbf16>,
    %c2_101 = arith.constant 2 : index
    %c2_102 = arith.constant 2 : index
    %c0_103 = arith.constant 0 : index
    %89 = vector.load %arg9[%c2_101, %c2_102, %c0_103] : memref<10x10x128xf32, #tpu.memory_space<vmem>>, vector<8x8x128xf32>
    %90 = vector.shape_cast %89 : vector<8x8x128xf32> to vector<64x128xf32>
    %91 = arith.truncf %90 : vector<64x128xf32> to vector<64x128xbf16>
    %c0_104 = arith.constant 0 : index
    %c1024_105 = arith.constant 1024 : index
    %92 = vector.load %arg10[%c0_104, %c1024_105] : memref<64x1152xbf16, #tpu.memory_space<vmem>>, vector<64x128xbf16>
    tpu.vector_store %arg10[%c0_104, %c1024_105], %91 {strides = array<i32>} : memref<64x1152xbf16, #tpu.memory_space<vmem>>, vector<64x128xbf16>,
    %c0_106 = arith.constant 0 : index
    %c0_107 = arith.constant 0 : index
    %93 = vector.load %arg10[%c0_106, %c0_107] : memref<64x1152xbf16, #tpu.memory_space<vmem>>, vector<64x1152xbf16>
    %c0_108 = arith.constant 0 : index
    %c0_109 = arith.constant 0 : index
    %94 = vector.load %arg4[%c0_108, %c0_109] : memref<1152x128xbf16, #tpu.memory_space<vmem>>, vector<1152x128xbf16>
    %cst_110 = arith.constant dense<0.000000e+00> : vector<64x128xf32>
    %95 = tpu.matmul %93, %94, %cst_110 {dimension_numbers = #tpu.dot_dimension_numbers<[1], [0], [0], [1], [0, 0, 1, 1], [], []>} : vector<64x1152xbf16>, vector<1152x128xbf16>, vector<64x128xf32> -> vector<64x128xf32>
    %c0_111 = arith.constant 0 : index
    %c0_112 = arith.constant 0 : index
    %96 = vector.load %arg5[%c0_111, %c0_112] : memref<1x128xf32, #tpu.memory_space<vmem>>, vector<1x128xf32>
    %97 = vector.broadcast %96 : vector<1x128xf32> to vector<64x128xf32>
    %98 = arith.addf %95, %97 : vector<64x128xf32>
    %cst_113 = arith.constant 0.000000e+00 : f32
    %99 = vector.broadcast %cst_113 : f32 to vector<64x128xf32>
    %100 = arith.maximumf %98, %99 : vector<64x128xf32>
    %101 = vector.shape_cast %100 : vector<64x128xf32> to vector<8x8x128xf32>
    %c1_114 = arith.constant 1 : index
    %c1_115 = arith.constant 1 : index
    %c0_116 = arith.constant 0 : index
    %102 = vector.load %arg9[%c1_114, %c1_115, %c0_116] : memref<10x10x128xf32, #tpu.memory_space<vmem>>, vector<8x8x128xf32>
    tpu.vector_store %arg9[%c1_114, %c1_115, %c0_116], %101 {strides = array<i32>} : memref<10x10x128xf32, #tpu.memory_space<vmem>>, vector<8x8x128xf32>,
    %c0_117 = arith.constant 0 : index
    %c0_118 = arith.constant 0 : index
    %c0_119 = arith.constant 0 : index
    %103 = vector.load %arg9[%c0_117, %c0_118, %c0_119] : memref<10x10x128xf32, #tpu.memory_space<vmem>>, vector<8x8x128xf32>
    %104 = vector.shape_cast %103 : vector<8x8x128xf32> to vector<64x128xf32>
    %105 = arith.truncf %104 : vector<64x128xf32> to vector<64x128xbf16>
    %c0_120 = arith.constant 0 : index
    %c0_121 = arith.constant 0 : index
    %106 = vector.load %arg10[%c0_120, %c0_121] : memref<64x1152xbf16, #tpu.memory_space<vmem>>, vector<64x128xbf16>
    tpu.vector_store %arg10[%c0_120, %c0_121], %105 {strides = array<i32>} : memref<64x1152xbf16, #tpu.memory_space<vmem>>, vector<64x128xbf16>,
    %c0_122 = arith.constant 0 : index
    %c1_123 = arith.constant 1 : index
    %c0_124 = arith.constant 0 : index
    %107 = vector.load %arg9[%c0_122, %c1_123, %c0_124] : memref<10x10x128xf32, #tpu.memory_space<vmem>>, vector<8x8x128xf32>
    %108 = vector.shape_cast %107 : vector<8x8x128xf32> to vector<64x128xf32>
    %109 = arith.truncf %108 : vector<64x128xf32> to vector<64x128xbf16>
    %c0_125 = arith.constant 0 : index
    %c128_126 = arith.constant 128 : index
    %110 = vector.load %arg10[%c0_125, %c128_126] : memref<64x1152xbf16, #tpu.memory_space<vmem>>, vector<64x128xbf16>
    tpu.vector_store %arg10[%c0_125, %c128_126], %109 {strides = array<i32>} : memref<64x1152xbf16, #tpu.memory_space<vmem>>, vector<64x128xbf16>,
    %c0_127 = arith.constant 0 : index
    %c2_128 = arith.constant 2 : index
    %c0_129 = arith.constant 0 : index
    %111 = vector.load %arg9[%c0_127, %c2_128, %c0_129] : memref<10x10x128xf32, #tpu.memory_space<vmem>>, vector<8x8x128xf32>
    %112 = vector.shape_cast %111 : vector<8x8x128xf32> to vector<64x128xf32>
    %113 = arith.truncf %112 : vector<64x128xf32> to vector<64x128xbf16>
    %c0_130 = arith.constant 0 : index
    %c256_131 = arith.constant 256 : index
    %114 = vector.load %arg10[%c0_130, %c256_131] : memref<64x1152xbf16, #tpu.memory_space<vmem>>, vector<64x128xbf16>
    tpu.vector_store %arg10[%c0_130, %c256_131], %113 {strides = array<i32>} : memref<64x1152xbf16, #tpu.memory_space<vmem>>, vector<64x128xbf16>,
    %c1_132 = arith.constant 1 : index
    %c0_133 = arith.constant 0 : index
    %c0_134 = arith.constant 0 : index
    %115 = vector.load %arg9[%c1_132, %c0_133, %c0_134] : memref<10x10x128xf32, #tpu.memory_space<vmem>>, vector<8x8x128xf32>
    %116 = vector.shape_cast %115 : vector<8x8x128xf32> to vector<64x128xf32>
    %117 = arith.truncf %116 : vector<64x128xf32> to vector<64x128xbf16>
    %c0_135 = arith.constant 0 : index
    %c384_136 = arith.constant 384 : index
    %118 = vector.load %arg10[%c0_135, %c384_136] : memref<64x1152xbf16, #tpu.memory_space<vmem>>, vector<64x128xbf16>
    tpu.vector_store %arg10[%c0_135, %c384_136], %117 {strides = array<i32>} : memref<64x1152xbf16, #tpu.memory_space<vmem>>, vector<64x128xbf16>,
    %c1_137 = arith.constant 1 : index
    %c1_138 = arith.constant 1 : index
    %c0_139 = arith.constant 0 : index
    %119 = vector.load %arg9[%c1_137, %c1_138, %c0_139] : memref<10x10x128xf32, #tpu.memory_space<vmem>>, vector<8x8x128xf32>
    %120 = vector.shape_cast %119 : vector<8x8x128xf32> to vector<64x128xf32>
    %121 = arith.truncf %120 : vector<64x128xf32> to vector<64x128xbf16>
    %c0_140 = arith.constant 0 : index
    %c512_141 = arith.constant 512 : index
    %122 = vector.load %arg10[%c0_140, %c512_141] : memref<64x1152xbf16, #tpu.memory_space<vmem>>, vector<64x128xbf16>
    tpu.vector_store %arg10[%c0_140, %c512_141], %121 {strides = array<i32>} : memref<64x1152xbf16, #tpu.memory_space<vmem>>, vector<64x128xbf16>,
    %c1_142 = arith.constant 1 : index
    %c2_143 = arith.constant 2 : index
    %c0_144 = arith.constant 0 : index
    %123 = vector.load %arg9[%c1_142, %c2_143, %c0_144] : memref<10x10x128xf32, #tpu.memory_space<vmem>>, vector<8x8x128xf32>
    %124 = vector.shape_cast %123 : vector<8x8x128xf32> to vector<64x128xf32>
    %125 = arith.truncf %124 : vector<64x128xf32> to vector<64x128xbf16>
    %c0_145 = arith.constant 0 : index
    %c640_146 = arith.constant 640 : index
    %126 = vector.load %arg10[%c0_145, %c640_146] : memref<64x1152xbf16, #tpu.memory_space<vmem>>, vector<64x128xbf16>
    tpu.vector_store %arg10[%c0_145, %c640_146], %125 {strides = array<i32>} : memref<64x1152xbf16, #tpu.memory_space<vmem>>, vector<64x128xbf16>,
    %c2_147 = arith.constant 2 : index
    %c0_148 = arith.constant 0 : index
    %c0_149 = arith.constant 0 : index
    %127 = vector.load %arg9[%c2_147, %c0_148, %c0_149] : memref<10x10x128xf32, #tpu.memory_space<vmem>>, vector<8x8x128xf32>
    %128 = vector.shape_cast %127 : vector<8x8x128xf32> to vector<64x128xf32>
    %129 = arith.truncf %128 : vector<64x128xf32> to vector<64x128xbf16>
    %c0_150 = arith.constant 0 : index
    %c768_151 = arith.constant 768 : index
    %130 = vector.load %arg10[%c0_150, %c768_151] : memref<64x1152xbf16, #tpu.memory_space<vmem>>, vector<64x128xbf16>
    tpu.vector_store %arg10[%c0_150, %c768_151], %129 {strides = array<i32>} : memref<64x1152xbf16, #tpu.memory_space<vmem>>, vector<64x128xbf16>,
    %c2_152 = arith.constant 2 : index
    %c1_153 = arith.constant 1 : index
    %c0_154 = arith.constant 0 : index
    %131 = vector.load %arg9[%c2_152, %c1_153, %c0_154] : memref<10x10x128xf32, #tpu.memory_space<vmem>>, vector<8x8x128xf32>
    %132 = vector.shape_cast %131 : vector<8x8x128xf32> to vector<64x128xf32>
    %133 = arith.truncf %132 : vector<64x128xf32> to vector<64x128xbf16>
    %c0_155 = arith.constant 0 : index
    %c896_156 = arith.constant 896 : index
    %134 = vector.load %arg10[%c0_155, %c896_156] : memref<64x1152xbf16, #tpu.memory_space<vmem>>, vector<64x128xbf16>
    tpu.vector_store %arg10[%c0_155, %c896_156], %133 {strides = array<i32>} : memref<64x1152xbf16, #tpu.memory_space<vmem>>, vector<64x128xbf16>,
    %c2_157 = arith.constant 2 : index
    %c2_158 = arith.constant 2 : index
    %c0_159 = arith.constant 0 : index
    %135 = vector.load %arg9[%c2_157, %c2_158, %c0_159] : memref<10x10x128xf32, #tpu.memory_space<vmem>>, vector<8x8x128xf32>
    %136 = vector.shape_cast %135 : vector<8x8x128xf32> to vector<64x128xf32>
    %137 = arith.truncf %136 : vector<64x128xf32> to vector<64x128xbf16>
    %c0_160 = arith.constant 0 : index
    %c1024_161 = arith.constant 1024 : index
    %138 = vector.load %arg10[%c0_160, %c1024_161] : memref<64x1152xbf16, #tpu.memory_space<vmem>>, vector<64x128xbf16>
    tpu.vector_store %arg10[%c0_160, %c1024_161], %137 {strides = array<i32>} : memref<64x1152xbf16, #tpu.memory_space<vmem>>, vector<64x128xbf16>,
    %c0_162 = arith.constant 0 : index
    %c0_163 = arith.constant 0 : index
    %139 = vector.load %arg10[%c0_162, %c0_163] : memref<64x1152xbf16, #tpu.memory_space<vmem>>, vector<64x1152xbf16>
    %c0_164 = arith.constant 0 : index
    %c0_165 = arith.constant 0 : index
    %140 = vector.load %arg6[%c0_164, %c0_165] : memref<1152x8xbf16, #tpu.memory_space<vmem>>, vector<1152x8xbf16>
    %cst_166 = arith.constant dense<0.000000e+00> : vector<64x8xf32>
    %141 = tpu.matmul %139, %140, %cst_166 {dimension_numbers = #tpu.dot_dimension_numbers<[1], [0], [0], [1], [0, 0, 1, 1], [], []>} : vector<64x1152xbf16>, vector<1152x8xbf16>, vector<64x8xf32> -> vector<64x8xf32>
    %c0_167 = arith.constant 0 : index
    %c0_168 = arith.constant 0 : index
    %142 = vector.load %arg7[%c0_167, %c0_168] : memref<1x8xf32, #tpu.memory_space<vmem>>, vector<1x8xf32>
    %143 = vector.broadcast %142 : vector<1x8xf32> to vector<64x8xf32>
    %144 = arith.addf %141, %143 : vector<64x8xf32>
    %cst_169 = arith.constant 0.000000e+00 : f32
    %145 = vector.broadcast %cst_169 : f32 to vector<64x8xf32>
    %146 = arith.maximumf %144, %145 : vector<64x8xf32>
    %147 = vector.shape_cast %146 : vector<64x8xf32> to vector<1x8x8x8xf32>
    %c0_170 = arith.constant 0 : index
    %c0_171 = arith.constant 0 : index
    %c0_172 = arith.constant 0 : index
    %c0_173 = arith.constant 0 : index
    %148 = vector.load %arg8[%c0_170, %c0_171, %c0_172, %c0_173] : memref<1x8x8x8xf32, #tpu.memory_space<vmem>>, vector<1x8x8x8xf32>
    tpu.vector_store %arg8[%c0_170, %c0_171, %c0_172, %c0_173], %147 {strides = array<i32>} : memref<1x8x8x8xf32, #tpu.memory_space<vmem>>, vector<1x8x8x8xf32>,
    return
  }
  func.func @transform_0(%arg0: i32) -> (i32, i32, i32, i32, i32) {
    %c0_i32 = arith.constant 0 : i32
    %c0_i32_0 = arith.constant 0 : i32
    %c0_i32_1 = arith.constant 0 : i32
    %c0_i32_2 = arith.constant 0 : i32
    %c0_i32_3 = arith.constant 0 : i32
    return %arg0, %c0_i32, %c0_i32_0, %c0_i32_1, %c0_i32_2 : i32, i32, i32, i32, i32
  }
  func.func @transform_1(%arg0: i32) -> (i32, i32) {
    %c0_i32 = arith.constant 0 : i32
    %c0_i32_0 = arith.constant 0 : i32
    %c0_i32_1 = arith.constant 0 : i32
    return %c0_i32, %c0_i32_0 : i32, i32
  }
  func.func @transform_2(%arg0: i32) -> (i32, i32) {
    %c0_i32 = arith.constant 0 : i32
    %c0_i32_0 = arith.constant 0 : i32
    %c0_i32_1 = arith.constant 0 : i32
    return %c0_i32, %c0_i32_0 : i32, i32
  }
  func.func @transform_3(%arg0: i32) -> (i32, i32) {
    %c0_i32 = arith.constant 0 : i32
    %c0_i32_0 = arith.constant 0 : i32
    %c0_i32_1 = arith.constant 0 : i32
    return %c0_i32, %c0_i32_0 : i32, i32
  }
  func.func @transform_4(%arg0: i32) -> (i32, i32) {
    %c0_i32 = arith.constant 0 : i32
    %c0_i32_0 = arith.constant 0 : i32
    %c0_i32_1 = arith.constant 0 : i32
    return %c0_i32, %c0_i32_0 : i32, i32
  }
  func.func @transform_5(%arg0: i32) -> (i32, i32) {
    %c0_i32 = arith.constant 0 : i32
    %c0_i32_0 = arith.constant 0 : i32
    %c0_i32_1 = arith.constant 0 : i32
    return %c0_i32, %c0_i32_0 : i32, i32
  }
  func.func @transform_6(%arg0: i32) -> (i32, i32) {
    %c0_i32 = arith.constant 0 : i32
    %c0_i32_0 = arith.constant 0 : i32
    %c0_i32_1 = arith.constant 0 : i32
    return %c0_i32, %c0_i32_0 : i32, i32
  }
  func.func @transform_7(%arg0: i32) -> (i32, i32, i32, i32) {
    %c0_i32 = arith.constant 0 : i32
    %c0_i32_0 = arith.constant 0 : i32
    %c0_i32_1 = arith.constant 0 : i32
    %c0_i32_2 = arith.constant 0 : i32
    return %arg0, %c0_i32, %c0_i32_0, %c0_i32_1 : i32, i32, i32, i32
  }
}

</mosaic_0001>

<llo_original>
// kernel: down_attention_ppa.1
$region0: #{down_attention_ppa.1}
  #allocation0 [shape = 'u32[]', space=smem, size = 0x4, offset = 0x4, fixed_abs, tag = 'smem constant byte address 0x4 - core index']
  #allocation1 [shape = 'u32[72,128]{1,0:T(1,128)}', space=vmem, size = 0x9000, scoped, tag = 'internal scratch']
  #allocation2 [shape = 'f32[10,10,128]{2,1,0:T(8,128)}', space=vmem, size = 0x14000, scoped, tag = 'scratch operand']
  #allocation3 [shape = 'bf16[64,1152]{1,0:T(8,128)(2,1)}', space=vmem, size = 0x24000, scoped, tag = 'scratch operand']
  %s0 = inlined_call_operand.vmem [shape: f32[2,8,2,8,8], index: 0, kind: input, shape index: {}]
  %s1 = inlined_call_operand.vmem [shape: bf16[1152,128], index: 1, kind: input, shape index: {}]
  %s2 = inlined_call_operand.vmem [shape: f32[1,128], index: 2, kind: input, shape index: {}]
  %s3 = inlined_call_operand.vmem [shape: bf16[1152,128], index: 3, kind: input, shape index: {}]
  %s4 = inlined_call_operand.vmem [shape: f32[1,128], index: 4, kind: input, shape index: {}]
  %s5 = inlined_call_operand.vmem [shape: bf16[1152,8], index: 5, kind: input, shape index: {}]
  %s6 = inlined_call_operand.vmem [shape: f32[1,8], index: 6, kind: input, shape index: {}]
  %s7 = inlined_call_operand.vmem [shape: f32[2,8,8,8], index: 7, kind: output, shape index: {}]
  %s8 = sld [smem:[#allocation0]]
  $region61: #{down_attention_ppa.1} parent=0
    _
  %s10 = ssub.s32 1, %s8
  %s11 = scalar_select 0, %s10, %s8
  loop: start=0, step=1, limit=4
  $region2: #{down_attention_ppa.1} parent=0 // loop_pre_header
    _
  $region3: #{down_attention_ppa.1} parent=0 // loop_header
    %s13 = sphi 0, %s17
    %p14 = scmp.ge.s32.totalorder %s13, 4
    %s23 = sphi 0, %s25
    %s26 = sphi 0, %s23
    %s27 = sphi 0, %s26
    %s43 = sphi 0, %s27
    %s47 = sphi 0, %s47
    %s49 = sphi 0, %s47
    %s50 = sphi 0, %s49
    %s64 = sphi 0, %s50
    %s68 = sphi 0, %s68
    %s70 = sphi 0, %s68
    %s71 = sphi 0, %s70
    %s85 = sphi 0, %s71
    %s89 = sphi 0, %s89
    %s91 = sphi 0, %s89
    %s92 = sphi 0, %s91
    %s106 = sphi 0, %s92
    %s110 = sphi 0, %s110
    %s112 = sphi 0, %s110
    %s113 = sphi 0, %s112
    %s127 = sphi 0, %s113
    %s131 = sphi 0, %s131
    %s133 = sphi 0, %s131
    %s134 = sphi 0, %s133
    %s148 = sphi 0, %s134
    %s152 = sphi 0, %s152
    %s154 = sphi 0, %s152
    %s155 = sphi 0, %s154
    %s169 = sphi 0, %s155
    %s175 = sphi 0, %s177
    %s178 = sphi 0, %s175
    %s179 = sphi 0, %s178
    %s195 = sphi 0, %s179
  $region4: #{down_attention_ppa.1} parent=0 // loop_header_branch
    %16 = sbr.rel (%p14) target = $region8
  $region5: #{down_attention_ppa.1} parent=0 // loop_body
    %s18 = ssub.s32 %s13, 1
    %s19 = ssub.s32 %s13, 2
    %s20 = sadd.s32 %s13, 1
    %s21 = ssub.s32 %s13, %s20
    %p22 = scmp.eq.s32.totalorder %s21, 0
    %s24 = sadd.s32 %s23, 1
    %s25 = scalar_select %p22, %s23, %s24
    %p28 = pneg %p22
    %p29 = scmp.eq.s32.totalorder %s13, 1
    %p30 = por %p28, %p29
    %p31 = scmp.ne.s32.totalorder %s23, %s26
    %p32 = scmp.eq.s32.totalorder %s13, 0
    %p33 = por %p31, %p32
    %p34 = scmp.ne.s32.totalorder %s23, %s26
    %p35 = scmp.eq.s32.totalorder %s18, 1
    %p36 = por %p34, %p35
    %p37 = scmp.ne.s32.totalorder %s26, %s27
    %p38 = scmp.eq.s32.totalorder %s18, 0
    %p39 = por %p37, %p38
    %p40 = scmp.ne.s32.totalorder %s26, %s27
    %p41 = scmp.eq.s32.totalorder %s19, 1
    %p42 = por %p40, %p41
    %p44 = scmp.ne.s32.totalorder %s27, %s43
    %p45 = scmp.eq.s32.totalorder %s19, 0
    %p46 = por %p44, %p45
    %s48 = sadd.s32 %s47, 1
    %p51 = scmp.eq.s32.totalorder %s13, 1
    %p52 = scmp.ne.s32.totalorder %s47, %s49
    %p53 = scmp.eq.s32.totalorder %s13, 0
    %p54 = por %p52, %p53
    %p55 = scmp.ne.s32.totalorder %s47, %s49
    %p56 = scmp.eq.s32.totalorder %s18, 1
    %p57 = por %p55, %p56
    %p58 = scmp.ne.s32.totalorder %s49, %s50
    %p59 = scmp.eq.s32.totalorder %s18, 0
    %p60 = por %p58, %p59
    %p61 = scmp.ne.s32.totalorder %s49, %s50
    %p62 = scmp.eq.s32.totalorder %s19, 1
    %p63 = por %p61, %p62
    %p65 = scmp.ne.s32.totalorder %s50, %s64
    %p66 = scmp.eq.s32.totalorder %s19, 0
    %p67 = por %p65, %p66
    %s69 = sadd.s32 %s68, 1
    %p72 = scmp.eq.s32.totalorder %s13, 1
    %p73 = scmp.ne.s32.totalorder %s68, %s70
    %p74 = scmp.eq.s32.totalorder %s13, 0
    %p75 = por %p73, %p74
    %p76 = scmp.ne.s32.totalorder %s68, %s70
    %p77 = scmp.eq.s32.totalorder %s18, 1
    %p78 = por %p76, %p77
    %p79 = scmp.ne.s32.totalorder %s70, %s71
    %p80 = scmp.eq.s32.totalorder %s18, 0
    %p81 = por %p79, %p80
    %p82 = scmp.ne.s32.totalorder %s70, %s71
    %p83 = scmp.eq.s32.totalorder %s19, 1
    %p84 = por %p82, %p83
    %p86 = scmp.ne.s32.totalorder %s71, %s85
    %p87 = scmp.eq.s32.totalorder %s19, 0
    %p88 = por %p86, %p87
    %s90 = sadd.s32 %s89, 1
    %p93 = scmp.eq.s32.totalorder %s13, 1
    %p94 = scmp.ne.s32.totalorder %s89, %s91
    %p95 = scmp.eq.s32.totalorder %s13, 0
    %p96 = por %p94, %p95
    %p97 = scmp.ne.s32.totalorder %s89, %s91
    %p98 = scmp.eq.s32.totalorder %s18, 1
    %p99 = por %p97, %p98
    %p100 = scmp.ne.s32.totalorder %s91, %s92
    %p101 = scmp.eq.s32.totalorder %s18, 0
    %p102 = por %p100, %p101
    %p103 = scmp.ne.s32.totalorder %s91, %s92
    %p104 = scmp.eq.s32.totalorder %s19, 1
    %p105 = por %p103, %p104
    %p107 = scmp.ne.s32.totalorder %s92, %s106
    %p108 = scmp.eq.s32.totalorder %s19, 0
    %p109 = por %p107, %p108
    %s111 = sadd.s32 %s110, 1
    %p114 = scmp.eq.s32.totalorder %s13, 1
    %p115 = scmp.ne.s32.totalorder %s110, %s112
    %p116 = scmp.eq.s32.totalorder %s13, 0
    %p117 = por %p115, %p116
    %p118 = scmp.ne.s32.totalorder %s110, %s112
    %p119 = scmp.eq.s32.totalorder %s18, 1
    %p120 = por %p118, %p119
    %p121 = scmp.ne.s32.totalorder %s112, %s113
    %p122 = scmp.eq.s32.totalorder %s18, 0
    %p123 = por %p121, %p122
    %p124 = scmp.ne.s32.totalorder %s112, %s113
    %p125 = scmp.eq.s32.totalorder %s19, 1
    %p126 = por %p124, %p125
    %p128 = scmp.ne.s32.totalorder %s113, %s127
    %p129 = scmp.eq.s32.totalorder %s19, 0
    %p130 = por %p128, %p129
    %s132 = sadd.s32 %s131, 1
    %p135 = scmp.eq.s32.totalorder %s13, 1
    %p136 = scmp.ne.s32.totalorder %s131, %s133
    %p137 = scmp.eq.s32.totalorder %s13, 0
    %p138 = por %p136, %p137
    %p139 = scmp.ne.s32.totalorder %s131, %s133
    %p140 = scmp.eq.s32.totalorder %s18, 1
    %p141 = por %p139, %p140
    %p142 = scmp.ne.s32.totalorder %s133, %s134
    %p143 = scmp.eq.s32.totalorder %s18, 0
    %p144 = por %p142, %p143
    %p145 = scmp.ne.s32.totalorder %s133, %s134
    %p146 = scmp.eq.s32.totalorder %s19, 1
    %p147 = por %p145, %p146
    %p149 = scmp.ne.s32.totalorder %s134, %s148
    %p150 = scmp.eq.s32.totalorder %s19, 0
    %p151 = por %p149, %p150
    %s153 = sadd.s32 %s152, 1
    %p156 = scmp.eq.s32.totalorder %s13, 1
    %p157 = scmp.ne.s32.totalorder %s152, %s154
    %p158 = scmp.eq.s32.totalorder %s13, 0
    %p159 = por %p157, %p158
    %p160 = scmp.ne.s32.totalorder %s152, %s154
    %p161 = scmp.eq.s32.totalorder %s18, 1
    %p162 = por %p160, %p161
    %p163 = scmp.ne.s32.totalorder %s154, %s155
    %p164 = scmp.eq.s32.totalorder %s18, 0
    %p165 = por %p163, %p164
    %p166 = scmp.ne.s32.totalorder %s154, %s155
    %p167 = scmp.eq.s32.totalorder %s19, 1
    %p168 = por %p166, %p167
    %p170 = scmp.ne.s32.totalorder %s155, %s169
    %p171 = scmp.eq.s32.totalorder %s19, 0
    %p172 = por %p170, %p171
    %s173 = ssub.s32 %s13, %s20
    %p174 = scmp.eq.s32.totalorder %s173, 0
    %s176 = sadd.s32 %s175, 1
    %s177 = scalar_select %p174, %s175, %s176
    %p180 = pneg %p174
    %p181 = scmp.eq.s32.totalorder %s13, 1
    %p182 = por %p180, %p181
    %p183 = scmp.ne.s32.totalorder %s175, %s178
    %p184 = scmp.eq.s32.totalorder %s13, 0
    %p185 = por %p183, %p184
    %p186 = scmp.ne.s32.totalorder %s175, %s178
    %p187 = scmp.eq.s32.totalorder %s18, 1
    %p188 = por %p186, %p187
    %p189 = scmp.ne.s32.totalorder %s178, %s179
    %p190 = scmp.eq.s32.totalorder %s18, 0
    %p191 = por %p189, %p190
    %p192 = scmp.ne.s32.totalorder %s178, %s179
    %p193 = scmp.eq.s32.totalorder %s19, 1
    %p194 = por %p192, %p193
    %p196 = scmp.ne.s32.totalorder %s179, %s195
    %p197 = scmp.eq.s32.totalorder %s19, 0
    %p198 = por %p196, %p197
    %p199 = scmp.le.s32.totalorder 1, %s13
    %p200 = scmp.lt.s32.totalorder %s13, 3
    %p201 = pnand %p199, %p200
    %p202 = pneg %p201
    // Predicated region
    $region9: #{down_attention_ppa.1} parent=5 // pred_check
      _
    $region10: #{down_attention_ppa.1} parent=5 // pred_check_branch
      %204 = sbr.rel (%p201) target = $region12
    $region11: #{down_attention_ppa.1} parent=5 // pred_region
      %s205 = ssub.s32 %s13, 1
      // Predicated region
      $region13: #{down_attention_ppa.1} parent=11 // pred_check
        %p206 = pneg %p60
      $region14: #{down_attention_ppa.1} parent=11 // pred_check_branch
        %208 = sbr.rel (%p206) target = $region16
      $region15: #{down_attention_ppa.1} parent=11 // pred_region
        _
      $region16: #{down_attention_ppa.1} parent=11 // pred_fallthru
        _
      // Predicated region
      $region17: #{down_attention_ppa.1} parent=11 // pred_check
        %p209 = pneg %p81
      $region18: #{down_attention_ppa.1} parent=11 // pred_check_branch
        %211 = sbr.rel (%p209) target = $region20
      $region19: #{down_attention_ppa.1} parent=11 // pred_region
        _
      $region20: #{down_attention_ppa.1} parent=11 // pred_fallthru
        _
      // Predicated region
      $region21: #{down_attention_ppa.1} parent=11 // pred_check
        %p212 = pneg %p102
      $region22: #{down_attention_ppa.1} parent=11 // pred_check_branch
        %214 = sbr.rel (%p212) target = $region24
      $region23: #{down_attention_ppa.1} parent=11 // pred_region
        _
      $region24: #{down_attention_ppa.1} parent=11 // pred_fallthru
        _
      // Predicated region
      $region25: #{down_attention_ppa.1} parent=11 // pred_check
        %p215 = pneg %p123
      $region26: #{down_attention_ppa.1} parent=11 // pred_check_branch
        %217 = sbr.rel (%p215) target = $region28
      $region27: #{down_attention_ppa.1} parent=11 // pred_region
        _
      $region28: #{down_attention_ppa.1} parent=11 // pred_fallthru
        _
      // Predicated region
      $region29: #{down_attention_ppa.1} parent=11 // pred_check
        %p218 = pneg %p144
      $region30: #{down_attention_ppa.1} parent=11 // pred_check_branch
        %220 = sbr.rel (%p218) target = $region32
      $region31: #{down_attention_ppa.1} parent=11 // pred_region
        _
      $region32: #{down_attention_ppa.1} parent=11 // pred_fallthru
        _
      // Predicated region
      $region33: #{down_attention_ppa.1} parent=11 // pred_check
        %p221 = pneg %p165
      $region34: #{down_attention_ppa.1} parent=11 // pred_check_branch
        %223 = sbr.rel (%p221) target = $region36
      $region35: #{down_attention_ppa.1} parent=11 // pred_region
        _
      $region36: #{down_attention_ppa.1} parent=11 // pred_fallthru
        _
    $region12: #{down_attention_ppa.1} parent=5 // pred_fallthru
      _
    %p224 = scmp.lt.s32.totalorder %s13, 2
    // Predicated region
    $region37: #{down_attention_ppa.1} parent=5 // pred_check
      %p225 = pneg %p224
    $region38: #{down_attention_ppa.1} parent=5 // pred_check_branch
      %227 = sbr.rel (%p225) target = $region40
    $region39: #{down_attention_ppa.1} parent=5 // pred_region
      // Predicated region
      $region41: #{down_attention_ppa.1} parent=39 // pred_check
        %p228 = pneg %p33
      $region42: #{down_attention_ppa.1} parent=39 // pred_check_branch
        %230 = sbr.rel (%p228) target = $region44
      $region43: #{down_attention_ppa.1} parent=39 // pred_region
        %p231 = scmp.lt.s32.totalorder %s13, 1
        %s232 = scalar_select %p231, %s13, 1
        %s233 = smul.addr %s232, 16
        %s234 = smul.addr %s233, 8
        %s235 = scalar_lea.vmem %s0, %s234
      $region44: #{down_attention_ppa.1} parent=39 // pred_fallthru
        _
    $region40: #{down_attention_ppa.1} parent=5 // pred_fallthru
      _
    %p236 = scmp.le.s32.totalorder 1, %s13
    %p237 = scmp.lt.s32.totalorder %s13, 3
    %p238 = pnand %p236, %p237
    %p239 = pneg %p238
    // Predicated region
    $region45: #{down_attention_ppa.1} parent=5 // pred_check
      _
    $region46: #{down_attention_ppa.1} parent=5 // pred_check_branch
      %241 = sbr.rel (%p238) target = $region48
    $region47: #{down_attention_ppa.1} parent=5 // pred_region
      %s242 = ssub.s32 %s13, 1
      %p243 = scmp.lt.s32.totalorder %s18, 1
      %s244 = scalar_select %p243, %s18, 1
      %s245 = smul.addr %s244, 16
      %s246 = smul.addr %s245, 8
      %s247 = scalar_lea.vmem %s0, %s246
      %p248 = pneg %p39
      %p249 = pneg %p36
      %p250 = pneg %p60
      %p251 = pneg %p57
      %p252 = pneg %p81
      %p253 = pneg %p78
      %p254 = pneg %p102
      %p255 = pneg %p99
      %p256 = pneg %p123
      %p257 = pneg %p120
      %p258 = pneg %p144
      %p259 = pneg %p141
      %p260 = pneg %p165
      %p261 = pneg %p162
      %p262 = pneg %p191
      %p263 = pneg %p188
      %p264 = scmp.lt.s32.totalorder %s18, 1
      %s265 = scalar_select %p264, %s18, 1
      %s266 = smul.addr %s265, 8
      %s267 = smul.addr %s266, 8
      %s268 = scalar_lea.vmem %s7, %s267
      %p269 = scmp.lt.s32.totalorder %s18, 1
      %s270 = scalar_select %p269, %s18, 1
      %s271 = smul.addr %s270, 16
      %s272 = smul.addr %s271, 8
      %s273 = scalar_lea.vmem %s0, %s272
      %p274 = scmp.lt.s32.totalorder %s18, 1
      %s275 = scalar_select %p274, %s18, 1
      %s276 = smul.addr %s275, 8
      %s277 = smul.addr %s276, 8
      %s278 = scalar_lea.vmem %s7, %s277
      %279 = vst [vmem:[#allocation2] sm:$0xff] 0.0
      %280 = vst [vmem:[#allocation2 + $0x8] sm:$0x3] 0.0
      %281 = vst [vmem:[#allocation2 + $0x10] sm:$0xff] 0.0
      %282 = vst [vmem:[#allocation2 + $0x18] sm:$0x3] 0.0
      %283 = vst [vmem:[#allocation2 + $0x20] sm:$0xff] 0.0
      %284 = vst [vmem:[#allocation2 + $0x28] sm:$0x3] 0.0
      %285 = vst [vmem:[#allocation2 + $0x30] sm:$0xff] 0.0
      %286 = vst [vmem:[#allocation2 + $0x38] sm:$0x3] 0.0
      %287 = vst [vmem:[#allocation2 + $0x40] sm:$0xff] 0.0
      %288 = vst [vmem:[#allocation2 + $0x48] sm:$0x3] 0.0
      %289 = vst [vmem:[#allocation2 + $0x50] sm:$0xff] 0.0
      %290 = vst [vmem:[#allocation2 + $0x58] sm:$0x3] 0.0
      %291 = vst [vmem:[#allocation2 + $0x60] sm:$0xff] 0.0
      %292 = vst [vmem:[#allocation2 + $0x68] sm:$0x3] 0.0
      %293 = vst [vmem:[#allocation2 + $0x70] sm:$0xff] 0.0
      %294 = vst [vmem:[#allocation2 + $0x78] sm:$0x3] 0.0
      %295 = vst [vmem:[#allocation2 + $0x80] sm:$0xff] 0.0
      %296 = vst [vmem:[#allocation2 + $0x88] sm:$0x3] 0.0
      %297 = vst [vmem:[#allocation2 + $0x90] sm:$0xff] 0.0
      %298 = vst [vmem:[#allocation2 + $0x98] sm:$0x3] 0.0
      %v299 = vld [vmem:[%s273] sm:$0xff]
      %v300 = vld [vmem:[%s273 + $0x10] sm:$0xff]
      %v301 = vld [vmem:[%s273 + $0x20] sm:$0xff]
      %v302 = vld [vmem:[%s273 + $0x30] sm:$0xff]
      %v303 = vld [vmem:[%s273 + $0x40] sm:$0xff]
      %v304 = vld [vmem:[%s273 + $0x50] sm:$0xff]
      %v305 = vld [vmem:[%s273 + $0x60] sm:$0xff]
      %v306 = vld [vmem:[%s273 + $0x70] sm:$0xff]
      %s307 = scalar_lea.vmem %s273, 8
      %v308 = vld [vmem:[%s307] sm:$0xff]
      %v309 = vld [vmem:[%s307 + $0x10] sm:$0xff]
      %v310 = vld [vmem:[%s307 + $0x20] sm:$0xff]
      %v311 = vld [vmem:[%s307 + $0x30] sm:$0xff]
      %v312 = vld [vmem:[%s307 + $0x40] sm:$0xff]
      %v313 = vld [vmem:[%s307 + $0x50] sm:$0xff]
      %v314 = vld [vmem:[%s307 + $0x60] sm:$0xff]
      %v315 = vld [vmem:[%s307 + $0x70] sm:$0xff]
      %v316 = vmax.f32 %v299, %v308
      %v317 = vmax.f32 %v300, %v309
      %v318 = vmax.f32 %v301, %v310
      %v319 = vmax.f32 %v302, %v311
      %v320 = vmax.f32 %v303, %v312
      %v321 = vmax.f32 %v304, %v313
      %v322 = vmax.f32 %v305, %v314
      %v323 = vmax.f32 %v306, %v315
      %332 = vrot.lane.b32.xlu0 %v316, 124
      %v333 = vpop.permute.xlu0 %332
      %334 = vrot.lane.b32.xlu0 %v317, 124
      %v335 = vpop.permute.xlu0 %334
      %336 = vrot.lane.b32.xlu0 %v318, 124
      %v337 = vpop.permute.xlu0 %336
      %338 = vrot.lane.b32.xlu0 %v319, 124
      %v339 = vpop.permute.xlu0 %338
      %340 = vrot.lane.b32.xlu0 %v320, 124
      %v341 = vpop.permute.xlu0 %340
      %342 = vrot.lane.b32.xlu0 %v321, 124
      %v343 = vpop.permute.xlu0 %342
      %344 = vrot.lane.b32.xlu0 %v322, 124
      %v345 = vpop.permute.xlu0 %344
      %346 = vrot.lane.b32.xlu0 %v323, 124
      %v347 = vpop.permute.xlu0 %346
      %v356 = vmax.f32 %v316, %v333
      %v357 = vmax.f32 %v317, %v335
      %v358 = vmax.f32 %v318, %v337
      %v359 = vmax.f32 %v319, %v339
      %v360 = vmax.f32 %v320, %v341
      %v361 = vmax.f32 %v321, %v343
      %v362 = vmax.f32 %v322, %v345
      %v363 = vmax.f32 %v323, %v347
      %s364 = scalar_lea.vmem [#allocation2], 16
      %vm365 = vcmask 31744
      %366 = vst.msk [vmem:[%s364 + $0x1] sm:$0xff] %vm365, %v356
      %367 = vst.msk [vmem:[%s364 + $0x11] sm:$0xff] %vm365, %v357
      %368 = vst.msk [vmem:[%s364 + $0x21] sm:$0xff] %vm365, %v358
      %369 = vst.msk [vmem:[%s364 + $0x31] sm:$0xff] %vm365, %v359
      %370 = vst.msk [vmem:[%s364 + $0x41] sm:$0xff] %vm365, %v360
      %371 = vst.msk [vmem:[%s364 + $0x51] sm:$0xff] %vm365, %v361
      %372 = vst.msk [vmem:[%s364 + $0x61] sm:$0xff] %vm365, %v362
      %373 = vst.msk [vmem:[%s364 + $0x71] sm:$0xff] %vm365, %v363
      %v374 = vld [vmem:[#allocation2] sm:$0xff]
      %v375 = vld [vmem:[#allocation2 + $0x10] sm:$0xff]
      %v376 = vld [vmem:[#allocation2 + $0x20] sm:$0xff]
      %v377 = vld [vmem:[#allocation2 + $0x30] sm:$0xff]
      %v378 = vld [vmem:[#allocation2 + $0x40] sm:$0xff]
      %v379 = vld [vmem:[#allocation2 + $0x50] sm:$0xff]
      %v380 = vld [vmem:[#allocation2 + $0x60] sm:$0xff]
      %v381 = vld [vmem:[#allocation2 + $0x70] sm:$0xff]
      %v382 = vpack.c.bf16 %v374, %v374
      %v383 = vpack.c.bf16 %v375, %v375
      %v384 = vpack.c.bf16 %v376, %v376
      %v385 = vpack.c.bf16 %v377, %v377
      %v386 = vpack.c.bf16 %v378, %v378
      %v387 = vpack.c.bf16 %v379, %v379
      %v388 = vpack.c.bf16 %v380, %v380
      %v389 = vpack.c.bf16 %v381, %v381
      %390 = vst [vmem:[#allocation3] sm:$0xf] %v382
      %391 = vst [vmem:[#allocation3 + $0x24] sm:$0xf] %v383
      %392 = vst [vmem:[#allocation3 + $0x48] sm:$0xf] %v384
      %393 = vst [vmem:[#allocation3 + $0x6c] sm:$0xf] %v385
      %394 = vst [vmem:[#allocation3 + $0x90] sm:$0xf] %v386
      %395 = vst [vmem:[#allocation3 + $0xb4] sm:$0xf] %v387
      %396 = vst [vmem:[#allocation3 + $0xd8] sm:$0xf] %v388
      %397 = vst [vmem:[#allocation3 + $0xfc] sm:$0xf] %v389
      %v398 = vld [vmem:[#allocation2 + $0x1] sm:$0xff]
      %v399 = vld [vmem:[#allocation2 + $0x11] sm:$0xff]
      %v400 = vld [vmem:[#allocation2 + $0x21] sm:$0xff]
      %v401 = vld [vmem:[#allocation2 + $0x31] sm:$0xff]
      %v402 = vld [vmem:[#allocation2 + $0x41] sm:$0xff]
      %v403 = vld [vmem:[#allocation2 + $0x51] sm:$0xff]
      %v404 = vld [vmem:[#allocation2 + $0x61] sm:$0xff]
      %v405 = vld [vmem:[#allocation2 + $0x71] sm:$0xff]
      %v406 = vpack.c.bf16 %v398, %v398
      %v407 = vpack.c.bf16 %v399, %v399
      %v408 = vpack.c.bf16 %v400, %v400
      %v409 = vpack.c.bf16 %v401, %v401
      %v410 = vpack.c.bf16 %v402, %v402
      %v411 = vpack.c.bf16 %v403, %v403
      %v412 = vpack.c.bf16 %v404, %v404
      %v413 = vpack.c.bf16 %v405, %v405
      %414 = vst [vmem:[#allocation3 + $0x4] sm:$0xf] %v406
      %415 = vst [vmem:[#allocation3 + $0x28] sm:$0xf] %v407
      %416 = vst [vmem:[#allocation3 + $0x4c] sm:$0xf] %v408
      %417 = vst [vmem:[#allocation3 + $0x70] sm:$0xf] %v409
      %418 = vst [vmem:[#allocation3 + $0x94] sm:$0xf] %v410
      %419 = vst [vmem:[#allocation3 + $0xb8] sm:$0xf] %v411
      %420 = vst [vmem:[#allocation3 + $0xdc] sm:$0xf] %v412
      %421 = vst [vmem:[#allocation3 + $0x100] sm:$0xf] %v413
      %v422 = vld [vmem:[#allocation2 + $0x2] sm:$0xff]
      %v423 = vld [vmem:[#allocation2 + $0x12] sm:$0xff]
      %v424 = vld [vmem:[#allocation2 + $0x22] sm:$0xff]
      %v425 = vld [vmem:[#allocation2 + $0x32] sm:$0xff]
      %v426 = vld [vmem:[#allocation2 + $0x42] sm:$0xff]
      %v427 = vld [vmem:[#allocation2 + $0x52] sm:$0xff]
      %v428 = vld [vmem:[#allocation2 + $0x62] sm:$0xff]
      %v429 = vld [vmem:[#allocation2 + $0x72] sm:$0xff]
      %v430 = vpack.c.bf16 %v422, %v422
      %v431 = vpack.c.bf16 %v423, %v423
      %v432 = vpack.c.bf16 %v424, %v424
      %v433 = vpack.c.bf16 %v425, %v425
      %v434 = vpack.c.bf16 %v426, %v426
      %v435 = vpack.c.bf16 %v427, %v427
      %v436 = vpack.c.bf16 %v428, %v428
      %v437 = vpack.c.bf16 %v429, %v429
      %438 = vst [vmem:[#allocation3 + $0x8] sm:$0xf] %v430
      %439 = vst [vmem:[#allocation3 + $0x2c] sm:$0xf] %v431
      %440 = vst [vmem:[#allocation3 + $0x50] sm:$0xf] %v432
      %441 = vst [vmem:[#allocation3 + $0x74] sm:$0xf] %v433
      %442 = vst [vmem:[#allocation3 + $0x98] sm:$0xf] %v434
      %443 = vst [vmem:[#allocation3 + $0xbc] sm:$0xf] %v435
      %444 = vst [vmem:[#allocation3 + $0xe0] sm:$0xf] %v436
      %445 = vst [vmem:[#allocation3 + $0x104] sm:$0xf] %v437
      %v446 = vld [vmem:[%s364] sm:$0xff]
      %v447 = vld [vmem:[%s364 + $0x10] sm:$0xff]
      %v448 = vld [vmem:[%s364 + $0x20] sm:$0xff]
      %v449 = vld [vmem:[%s364 + $0x30] sm:$0xff]
      %v450 = vld [vmem:[%s364 + $0x40] sm:$0xff]
      %v451 = vld [vmem:[%s364 + $0x50] sm:$0xff]
      %v452 = vld [vmem:[%s364 + $0x60] sm:$0xff]
      %v453 = vld [vmem:[%s364 + $0x70] sm:$0xff]
      %v454 = vpack.c.bf16 %v446, %v446
      %v455 = vpack.c.bf16 %v447, %v447
      %v456 = vpack.c.bf16 %v448, %v448
      %v457 = vpack.c.bf16 %v449, %v449
      %v458 = vpack.c.bf16 %v450, %v450
      %v459 = vpack.c.bf16 %v451, %v451
      %v460 = vpack.c.bf16 %v452, %v452
      %v461 = vpack.c.bf16 %v453, %v453
      %462 = vst [vmem:[#allocation3 + $0xc] sm:$0xf] %v454
      %463 = vst [vmem:[#allocation3 + $0x30] sm:$0xf] %v455
      %464 = vst [vmem:[#allocation3 + $0x54] sm:$0xf] %v456
      %465 = vst [vmem:[#allocation3 + $0x78] sm:$0xf] %v457
      %466 = vst [vmem:[#allocation3 + $0x9c] sm:$0xf] %v458
      %467 = vst [vmem:[#allocation3 + $0xc0] sm:$0xf] %v459
      %468 = vst [vmem:[#allocation3 + $0xe4] sm:$0xf] %v460
      %469 = vst [vmem:[#allocation3 + $0x108] sm:$0xf] %v461
      %v470 = vld [vmem:[%s364 + $0x1] sm:$0xff]
      %v471 = vld [vmem:[%s364 + $0x11] sm:$0xff]
      %v472 = vld [vmem:[%s364 + $0x21] sm:$0xff]
      %v473 = vld [vmem:[%s364 + $0x31] sm:$0xff]
      %v474 = vld [vmem:[%s364 + $0x41] sm:$0xff]
      %v475 = vld [vmem:[%s364 + $0x51] sm:$0xff]
      %v476 = vld [vmem:[%s364 + $0x61] sm:$0xff]
      %v477 = vld [vmem:[%s364 + $0x71] sm:$0xff]
      %v478 = vpack.c.bf16 %v470, %v470
      %v479 = vpack.c.bf16 %v471, %v471
      %v480 = vpack.c.bf16 %v472, %v472
      %v481 = vpack.c.bf16 %v473, %v473
      %v482 = vpack.c.bf16 %v474, %v474
      %v483 = vpack.c.bf16 %v475, %v475
      %v484 = vpack.c.bf16 %v476, %v476
      %v485 = vpack.c.bf16 %v477, %v477
      %486 = vst [vmem:[#allocation3 + $0x10] sm:$0xf] %v478
      %487 = vst [vmem:[#allocation3 + $0x34] sm:$0xf] %v479
      %488 = vst [vmem:[#allocation3 + $0x58] sm:$0xf] %v480
      %489 = vst [vmem:[#allocation3 + $0x7c] sm:$0xf] %v481
      %490 = vst [vmem:[#allocation3 + $0xa0] sm:$0xf] %v482
      %491 = vst [vmem:[#allocation3 + $0xc4] sm:$0xf] %v483
      %492 = vst [vmem:[#allocation3 + $0xe8] sm:$0xf] %v484
      %493 = vst [vmem:[#allocation3 + $0x10c] sm:$0xf] %v485
      %v494 = vld [vmem:[%s364 + $0x2] sm:$0xff]
      %v495 = vld [vmem:[%s364 + $0x12] sm:$0xff]
      %v496 = vld [vmem:[%s364 + $0x22] sm:$0xff]
      %v497 = vld [vmem:[%s364 + $0x32] sm:$0xff]
      %v498 = vld [vmem:[%s364 + $0x42] sm:$0xff]
      %v499 = vld [vmem:[%s364 + $0x52] sm:$0xff]
      %v500 = vld [vmem:[%s364 + $0x62] sm:$0xff]
      %v501 = vld [vmem:[%s364 + $0x72] sm:$0xff]
      %v502 = vpack.c.bf16 %v494, %v494
      %v503 = vpack.c.bf16 %v495, %v495
      %v504 = vpack.c.bf16 %v496, %v496
      %v505 = vpack.c.bf16 %v497, %v497
      %v506 = vpack.c.bf16 %v498, %v498
      %v507 = vpack.c.bf16 %v499, %v499
      %v508 = vpack.c.bf16 %v500, %v500
      %v509 = vpack.c.bf16 %v501, %v501
      %510 = vst [vmem:[#allocation3 + $0x14] sm:$0xf] %v502
      %511 = vst [vmem:[#allocation3 + $0x38] sm:$0xf] %v503
      %512 = vst [vmem:[#allocation3 + $0x5c] sm:$0xf] %v504
      %513 = vst [vmem:[#allocation3 + $0x80] sm:$0xf] %v505
      %514 = vst [vmem:[#allocation3 + $0xa4] sm:$0xf] %v506
      %515 = vst [vmem:[#allocation3 + $0xc8] sm:$0xf] %v507
      %516 = vst [vmem:[#allocation3 + $0xec] sm:$0xf] %v508
      %517 = vst [vmem:[#allocation3 + $0x110] sm:$0xf] %v509
      %s518 = scalar_lea.vmem [#allocation2], 32
      %v519 = vld [vmem:[%s518] sm:$0xff]
      %v520 = vld [vmem:[%s518 + $0x10] sm:$0xff]
      %v521 = vld [vmem:[%s518 + $0x20] sm:$0xff]
      %v522 = vld [vmem:[%s518 + $0x30] sm:$0xff]
      %v523 = vld [vmem:[%s518 + $0x40] sm:$0xff]
      %v524 = vld [vmem:[%s518 + $0x50] sm:$0xff]
      %v525 = vld [vmem:[%s518 + $0x60] sm:$0xff]
      %v526 = vld [vmem:[%s518 + $0x70] sm:$0xff]
      %v527 = vpack.c.bf16 %v519, %v519
      %v528 = vpack.c.bf16 %v520, %v520
      %v529 = vpack.c.bf16 %v521, %v521
      %v530 = vpack.c.bf16 %v522, %v522
      %v531 = vpack.c.bf16 %v523, %v523
      %v532 = vpack.c.bf16 %v524, %v524
      %v533 = vpack.c.bf16 %v525, %v525
      %v534 = vpack.c.bf16 %v526, %v526
      %535 = vst [vmem:[#allocation3 + $0x18] sm:$0xf] %v527
      %536 = vst [vmem:[#allocation3 + $0x3c] sm:$0xf] %v528
      %537 = vst [vmem:[#allocation3 + $0x60] sm:$0xf] %v529
      %538 = vst [vmem:[#allocation3 + $0x84] sm:$0xf] %v530
      %539 = vst [vmem:[#allocation3 + $0xa8] sm:$0xf] %v531
      %540 = vst [vmem:[#allocation3 + $0xcc] sm:$0xf] %v532
      %541 = vst [vmem:[#allocation3 + $0xf0] sm:$0xf] %v533
      %542 = vst [vmem:[#allocation3 + $0x114] sm:$0xf] %v534
      %v543 = vld [vmem:[%s518 + $0x1] sm:$0xff]
      %v544 = vld [vmem:[%s518 + $0x11] sm:$0xff]
      %v545 = vld [vmem:[%s518 + $0x21] sm:$0xff]
      %v546 = vld [vmem:[%s518 + $0x31] sm:$0xff]
      %v547 = vld [vmem:[%s518 + $0x41] sm:$0xff]
      %v548 = vld [vmem:[%s518 + $0x51] sm:$0xff]
      %v549 = vld [vmem:[%s518 + $0x61] sm:$0xff]
      %v550 = vld [vmem:[%s518 + $0x71] sm:$0xff]
      %v551 = vpack.c.bf16 %v543, %v543
      %v552 = vpack.c.bf16 %v544, %v544
      %v553 = vpack.c.bf16 %v545, %v545
      %v554 = vpack.c.bf16 %v546, %v546
      %v555 = vpack.c.bf16 %v547, %v547
      %v556 = vpack.c.bf16 %v548, %v548
      %v557 = vpack.c.bf16 %v549, %v549
      %v558 = vpack.c.bf16 %v550, %v550
      %559 = vst [vmem:[#allocation3 + $0x1c] sm:$0xf] %v551
      %560 = vst [vmem:[#allocation3 + $0x40] sm:$0xf] %v552
      %561 = vst [vmem:[#allocation3 + $0x64] sm:$0xf] %v553
      %562 = vst [vmem:[#allocation3 + $0x88] sm:$0xf] %v554
      %563 = vst [vmem:[#allocation3 + $0xac] sm:$0xf] %v555
      %564 = vst [vmem:[#allocation3 + $0xd0] sm:$0xf] %v556
      %565 = vst [vmem:[#allocation3 + $0xf4] sm:$0xf] %v557
      %566 = vst [vmem:[#allocation3 + $0x118] sm:$0xf] %v558
      %v567 = vld [vmem:[%s518 + $0x2] sm:$0xff]
      %v568 = vld [vmem:[%s518 + $0x12] sm:$0xff]
      %v569 = vld [vmem:[%s518 + $0x22] sm:$0xff]
      %v570 = vld [vmem:[%s518 + $0x32] sm:$0xff]
      %v571 = vld [vmem:[%s518 + $0x42] sm:$0xff]
      %v572 = vld [vmem:[%s518 + $0x52] sm:$0xff]
      %v573 = vld [vmem:[%s518 + $0x62] sm:$0xff]
      %v574 = vld [vmem:[%s518 + $0x72] sm:$0xff]
      %v575 = vpack.c.bf16 %v567, %v567
      %v576 = vpack.c.bf16 %v568, %v568
      %v577 = vpack.c.bf16 %v569, %v569
      %v578 = vpack.c.bf16 %v570, %v570
      %v579 = vpack.c.bf16 %v571, %v571
      %v580 = vpack.c.bf16 %v572, %v572
      %v581 = vpack.c.bf16 %v573, %v573
      %v582 = vpack.c.bf16 %v574, %v574
      %583 = vst [vmem:[#allocation3 + $0x20] sm:$0xf] %v575
      %584 = vst [vmem:[#allocation3 + $0x44] sm:$0xf] %v576
      %585 = vst [vmem:[#allocation3 + $0x68] sm:$0xf] %v577
      %586 = vst [vmem:[#allocation3 + $0x8c] sm:$0xf] %v578
      %587 = vst [vmem:[#allocation3 + $0xb0] sm:$0xf] %v579
      %588 = vst [vmem:[#allocation3 + $0xd4] sm:$0xf] %v580
      %589 = vst [vmem:[#allocation3 + $0xf8] sm:$0xf] %v581
      %590 = vst [vmem:[#allocation3 + $0x11c] sm:$0xf] %v582
      %v591 = vld [vmem:[#allocation3] sm:$0xff]
      %v592 = vld [vmem:[#allocation3 + $0x8] sm:$0xff]
      %v593 = vld [vmem:[#allocation3 + $0x10] sm:$0xff]
      %v594 = vld [vmem:[#allocation3 + $0x18] sm:$0xff]
      %v595 = vld [vmem:[#allocation3 + $0x20] sm:$0xf]
      %v596 = vld [vmem:[#allocation3 + $0x24] sm:$0xff]
      %v597 = vld [vmem:[#allocation3 + $0x2c] sm:$0xff]
      %v598 = vld [vmem:[#allocation3 + $0x34] sm:$0xff]
      %v599 = vld [vmem:[#allocation3 + $0x3c] sm:$0xff]
      %v600 = vld [vmem:[#allocation3 + $0x44] sm:$0xf]
      %v601 = vld [vmem:[#allocation3 + $0x48] sm:$0xff]
      %v602 = vld [vmem:[#allocation3 + $0x50] sm:$0xff]
      %v603 = vld [vmem:[#allocation3 + $0x58] sm:$0xff]
      %v604 = vld [vmem:[#allocation3 + $0x60] sm:$0xff]
      %v605 = vld [vmem:[#allocation3 + $0x68] sm:$0xf]
      %v606 = vld [vmem:[#allocation3 + $0x6c] sm:$0xff]
      %v607 = vld [vmem:[#allocation3 + $0x74] sm:$0xff]
      %v608 = vld [vmem:[#allocation3 + $0x7c] sm:$0xff]
      %v609 = vld [vmem:[#allocation3 + $0x84] sm:$0xff]
      %v610 = vld [vmem:[#allocation3 + $0x8c] sm:$0xf]
      %v611 = vld [vmem:[#allocation3 + $0x90] sm:$0xff]
      %v612 = vld [vmem:[#allocation3 + $0x98] sm:$0xff]
      %v613 = vld [vmem:[#allocation3 + $0xa0] sm:$0xff]
      %v614 = vld [vmem:[#allocation3 + $0xa8] sm:$0xff]
      %v615 = vld [vmem:[#allocation3 + $0xb0] sm:$0xf]
      %v616 = vld [vmem:[#allocation3 + $0xb4] sm:$0xff]
      %v617 = vld [vmem:[#allocation3 + $0xbc] sm:$0xff]
      %v618 = vld [vmem:[#allocation3 + $0xc4] sm:$0xff]
      %v619 = vld [vmem:[#allocation3 + $0xcc] sm:$0xff]
      %v620 = vld [vmem:[#allocation3 + $0xd4] sm:$0xf]
      %v621 = vld [vmem:[#allocation3 + $0xd8] sm:$0xff]
      %v622 = vld [vmem:[#allocation3 + $0xe0] sm:$0xff]
      %v623 = vld [vmem:[#allocation3 + $0xe8] sm:$0xff]
      %v624 = vld [vmem:[#allocation3 + $0xf0] sm:$0xff]
      %v625 = vld [vmem:[#allocation3 + $0xf8] sm:$0xf]
      %v626 = vld [vmem:[#allocation3 + $0xfc] sm:$0xff]
      %v627 = vld [vmem:[#allocation3 + $0x104] sm:$0xff]
      %v628 = vld [vmem:[#allocation3 + $0x10c] sm:$0xff]
      %v629 = vld [vmem:[#allocation3 + $0x114] sm:$0xff]
      %v630 = vld [vmem:[#allocation3 + $0x11c] sm:$0xf]
      %v631 = vld [vmem:[%s1] sm:$0xf]
      %v632 = vld [vmem:[%s1 + $0x4] sm:$0xf]
      %v633 = vld [vmem:[%s1 + $0x8] sm:$0xf]
      %v634 = vld [vmem:[%s1 + $0xc] sm:$0xf]
      %v635 = vld [vmem:[%s1 + $0x10] sm:$0xf]
      %v636 = vld [vmem:[%s1 + $0x14] sm:$0xf]
      %v637 = vld [vmem:[%s1 + $0x18] sm:$0xf]
      %v638 = vld [vmem:[%s1 + $0x1c] sm:$0xf]
      %v639 = vld [vmem:[%s1 + $0x20] sm:$0xf]
      %v640 = vld [vmem:[%s1 + $0x24] sm:$0xf]
      %v641 = vld [vmem:[%s1 + $0x28] sm:$0xf]
      %v642 = vld [vmem:[%s1 + $0x2c] sm:$0xf]
      %v643 = vld [vmem:[%s1 + $0x30] sm:$0xf]
      %v644 = vld [vmem:[%s1 + $0x34] sm:$0xf]
      %v645 = vld [vmem:[%s1 + $0x38] sm:$0xf]
      %v646 = vld [vmem:[%s1 + $0x3c] sm:$0xf]
      %v647 = vld [vmem:[%s1 + $0x40] sm:$0xf]
      %v648 = vld [vmem:[%s1 + $0x44] sm:$0xf]
      %v649 = vld [vmem:[%s1 + $0x48] sm:$0xf]
      %v650 = vld [vmem:[%s1 + $0x4c] sm:$0xf]
      %v651 = vld [vmem:[%s1 + $0x50] sm:$0xf]
      %v652 = vld [vmem:[%s1 + $0x54] sm:$0xf]
      %v653 = vld [vmem:[%s1 + $0x58] sm:$0xf]
      %v654 = vld [vmem:[%s1 + $0x5c] sm:$0xf]
      %v655 = vld [vmem:[%s1 + $0x60] sm:$0xf]
      %v656 = vld [vmem:[%s1 + $0x64] sm:$0xf]
      %v657 = vld [vmem:[%s1 + $0x68] sm:$0xf]
      %v658 = vld [vmem:[%s1 + $0x6c] sm:$0xf]
      %v659 = vld [vmem:[%s1 + $0x70] sm:$0xf]
      %v660 = vld [vmem:[%s1 + $0x74] sm:$0xf]
      %v661 = vld [vmem:[%s1 + $0x78] sm:$0xf]
      %v662 = vld [vmem:[%s1 + $0x7c] sm:$0xf]
      %v663 = vld [vmem:[%s1 + $0x80] sm:$0xf]
      %v664 = vld [vmem:[%s1 + $0x84] sm:$0xf]
      %v665 = vld [vmem:[%s1 + $0x88] sm:$0xf]
      %v666 = vld [vmem:[%s1 + $0x8c] sm:$0xf]
      %v667 = vld [vmem:[%s1 + $0x90] sm:$0xf]
      %v668 = vld [vmem:[%s1 + $0x94] sm:$0xf]
      %v669 = vld [vmem:[%s1 + $0x98] sm:$0xf]
      %v670 = vld [vmem:[%s1 + $0x9c] sm:$0xf]
      %v671 = vld [vmem:[%s1 + $0xa0] sm:$0xf]
      %v672 = vld [vmem:[%s1 + $0xa4] sm:$0xf]
      %v673 = vld [vmem:[%s1 + $0xa8] sm:$0xf]
      %v674 = vld [vmem:[%s1 + $0xac] sm:$0xf]
      %v675 = vld [vmem:[%s1 + $0xb0] sm:$0xf]
      %v676 = vld [vmem:[%s1 + $0xb4] sm:$0xf]
      %v677 = vld [vmem:[%s1 + $0xb8] sm:$0xf]
      %v678 = vld [vmem:[%s1 + $0xbc] sm:$0xf]
      %v679 = vld [vmem:[%s1 + $0xc0] sm:$0xf]
      %v680 = vld [vmem:[%s1 + $0xc4] sm:$0xf]
      %v681 = vld [vmem:[%s1 + $0xc8] sm:$0xf]
      %v682 = vld [vmem:[%s1 + $0xcc] sm:$0xf]
      %v683 = vld [vmem:[%s1 + $0xd0] sm:$0xf]
      %v684 = vld [vmem:[%s1 + $0xd4] sm:$0xf]
      %v685 = vld [vmem:[%s1 + $0xd8] sm:$0xf]
      %v686 = vld [vmem:[%s1 + $0xdc] sm:$0xf]
      %v687 = vld [vmem:[%s1 + $0xe0] sm:$0xf]
      %v688 = vld [vmem:[%s1 + $0xe4] sm:$0xf]
      %v689 = vld [vmem:[%s1 + $0xe8] sm:$0xf]
      %v690 = vld [vmem:[%s1 + $0xec] sm:$0xf]
      %v691 = vld [vmem:[%s1 + $0xf0] sm:$0xf]
      %v692 = vld [vmem:[%s1 + $0xf4] sm:$0xf]
      %v693 = vld [vmem:[%s1 + $0xf8] sm:$0xf]
      %v694 = vld [vmem:[%s1 + $0xfc] sm:$0xf]
      %v695 = vld [vmem:[%s1 + $0x100] sm:$0xf]
      %v696 = vld [vmem:[%s1 + $0x104] sm:$0xf]
      %v697 = vld [vmem:[%s1 + $0x108] sm:$0xf]
      %v698 = vld [vmem:[%s1 + $0x10c] sm:$0xf]
      %v699 = vld [vmem:[%s1 + $0x110] sm:$0xf]
      %v700 = vld [vmem:[%s1 + $0x114] sm:$0xf]
      %v701 = vld [vmem:[%s1 + $0x118] sm:$0xf]
      %v702 = vld [vmem:[%s1 + $0x11c] sm:$0xf]
      %v703 = vld [vmem:[%s1 + $0x120] sm:$0xf]
      %v704 = vld [vmem:[%s1 + $0x124] sm:$0xf]
      %v705 = vld [vmem:[%s1 + $0x128] sm:$0xf]
      %v706 = vld [vmem:[%s1 + $0x12c] sm:$0xf]
      %v707 = vld [vmem:[%s1 + $0x130] sm:$0xf]
      %v708 = vld [vmem:[%s1 + $0x134] sm:$0xf]
      %v709 = vld [vmem:[%s1 + $0x138] sm:$0xf]
      %v710 = vld [vmem:[%s1 + $0x13c] sm:$0xf]
      %v711 = vld [vmem:[%s1 + $0x140] sm:$0xf]
      %v712 = vld [vmem:[%s1 + $0x144] sm:$0xf]
      %v713 = vld [vmem:[%s1 + $0x148] sm:$0xf]
      %v714 = vld [vmem:[%s1 + $0x14c] sm:$0xf]
      %v715 = vld [vmem:[%s1 + $0x150] sm:$0xf]
      %v716 = vld [vmem:[%s1 + $0x154] sm:$0xf]
      %v717 = vld [vmem:[%s1 + $0x158] sm:$0xf]
      %v718 = vld [vmem:[%s1 + $0x15c] sm:$0xf]
      %v719 = vld [vmem:[%s1 + $0x160] sm:$0xf]
      %v720 = vld [vmem:[%s1 + $0x164] sm:$0xf]
      %v721 = vld [vmem:[%s1 + $0x168] sm:$0xf]
      %v722 = vld [vmem:[%s1 + $0x16c] sm:$0xf]
      %v723 = vld [vmem:[%s1 + $0x170] sm:$0xf]
      %v724 = vld [vmem:[%s1 + $0x174] sm:$0xf]
      %v725 = vld [vmem:[%s1 + $0x178] sm:$0xf]
      %v726 = vld [vmem:[%s1 + $0x17c] sm:$0xf]
      %v727 = vld [vmem:[%s1 + $0x180] sm:$0xf]
      %v728 = vld [vmem:[%s1 + $0x184] sm:$0xf]
      %v729 = vld [vmem:[%s1 + $0x188] sm:$0xf]
      %v730 = vld [vmem:[%s1 + $0x18c] sm:$0xf]
      %v731 = vld [vmem:[%s1 + $0x190] sm:$0xf]
      %v732 = vld [vmem:[%s1 + $0x194] sm:$0xf]
      %v733 = vld [vmem:[%s1 + $0x198] sm:$0xf]
      %v734 = vld [vmem:[%s1 + $0x19c] sm:$0xf]
      %v735 = vld [vmem:[%s1 + $0x1a0] sm:$0xf]
      %v736 = vld [vmem:[%s1 + $0x1a4] sm:$0xf]
      %v737 = vld [vmem:[%s1 + $0x1a8] sm:$0xf]
      %v738 = vld [vmem:[%s1 + $0x1ac] sm:$0xf]
      %v739 = vld [vmem:[%s1 + $0x1b0] sm:$0xf]
      %v740 = vld [vmem:[%s1 + $0x1b4] sm:$0xf]
      %v741 = vld [vmem:[%s1 + $0x1b8] sm:$0xf]
      %v742 = vld [vmem:[%s1 + $0x1bc] sm:$0xf]
      %v743 = vld [vmem:[%s1 + $0x1c0] sm:$0xf]
      %v744 = vld [vmem:[%s1 + $0x1c4] sm:$0xf]
      %v745 = vld [vmem:[%s1 + $0x1c8] sm:$0xf]
      %v746 = vld [vmem:[%s1 + $0x1cc] sm:$0xf]
      %v747 = vld [vmem:[%s1 + $0x1d0] sm:$0xf]
      %v748 = vld [vmem:[%s1 + $0x1d4] sm:$0xf]
      %v749 = vld [vmem:[%s1 + $0x1d8] sm:$0xf]
      %v750 = vld [vmem:[%s1 + $0x1dc] sm:$0xf]
      %v751 = vld [vmem:[%s1 + $0x1e0] sm:$0xf]
      %v752 = vld [vmem:[%s1 + $0x1e4] sm:$0xf]
      %v753 = vld [vmem:[%s1 + $0x1e8] sm:$0xf]
      %v754 = vld [vmem:[%s1 + $0x1ec] sm:$0xf]
      %v755 = vld [vmem:[%s1 + $0x1f0] sm:$0xf]
      %v756 = vld [vmem:[%s1 + $0x1f4] sm:$0xf]
      %v757 = vld [vmem:[%s1 + $0x1f8] sm:$0xf]
      %v758 = vld [vmem:[%s1 + $0x1fc] sm:$0xf]
      %v759 = vld [vmem:[%s1 + $0x200] sm:$0xf]
      %v760 = vld [vmem:[%s1 + $0x204] sm:$0xf]
      %v761 = vld [vmem:[%s1 + $0x208] sm:$0xf]
      %v762 = vld [vmem:[%s1 + $0x20c] sm:$0xf]
      %v763 = vld [vmem:[%s1 + $0x210] sm:$0xf]
      %v764 = vld [vmem:[%s1 + $0x214] sm:$0xf]
      %v765 = vld [vmem:[%s1 + $0x218] sm:$0xf]
      %v766 = vld [vmem:[%s1 + $0x21c] sm:$0xf]
      %v767 = vld [vmem:[%s1 + $0x220] sm:$0xf]
      %v768 = vld [vmem:[%s1 + $0x224] sm:$0xf]
      %v769 = vld [vmem:[%s1 + $0x228] sm:$0xf]
      %v770 = vld [vmem:[%s1 + $0x22c] sm:$0xf]
      %v771 = vld [vmem:[%s1 + $0x230] sm:$0xf]
      %v772 = vld [vmem:[%s1 + $0x234] sm:$0xf]
      %v773 = vld [vmem:[%s1 + $0x238] sm:$0xf]
      %v774 = vld [vmem:[%s1 + $0x23c] sm:$0xf]
      %v775 = vld [vmem:[%s2] sm:$0x1]
      %v777 = vperm.slane %v775, 0
      %v819 = vunpack.c.l.b16 %v591
      %v820 = vunpack.c.h.b16 %v591
      %v821 = vunpack.c.l.b16 %v592
      %v822 = vunpack.c.h.b16 %v592
      %v823 = vunpack.c.l.b16 %v593
      %v824 = vunpack.c.h.b16 %v593
      %v825 = vunpack.c.l.b16 %v594
      %v826 = vunpack.c.h.b16 %v594
      %v827 = vunpack.c.l.b16 %v595
      %v828 = vunpack.c.l.b16 %v596
      %v829 = vunpack.c.h.b16 %v596
      %v830 = vunpack.c.l.b16 %v597
      %v831 = vunpack.c.h.b16 %v597
      %v832 = vunpack.c.l.b16 %v598
      %v833 = vunpack.c.h.b16 %v598
      %v834 = vunpack.c.l.b16 %v599
      %v835 = vunpack.c.h.b16 %v599
      %v836 = vunpack.c.l.b16 %v600
      %v837 = vunpack.c.l.b16 %v601
      %v838 = vunpack.c.h.b16 %v601
      %v839 = vunpack.c.l.b16 %v602
      %v840 = vunpack.c.h.b16 %v602
      %v841 = vunpack.c.l.b16 %v603
      %v842 = vunpack.c.h.b16 %v603
      %v843 = vunpack.c.l.b16 %v604
      %v844 = vunpack.c.h.b16 %v604
      %v845 = vunpack.c.l.b16 %v605
      %v846 = vunpack.c.l.b16 %v606
      %v847 = vunpack.c.h.b16 %v606
      %v848 = vunpack.c.l.b16 %v607
      %v849 = vunpack.c.h.b16 %v607
      %v850 = vunpack.c.l.b16 %v608
      %v851 = vunpack.c.h.b16 %v608
      %v852 = vunpack.c.l.b16 %v609
      %v853 = vunpack.c.h.b16 %v609
      %v854 = vunpack.c.l.b16 %v610
      %v855 = vunpack.c.l.b16 %v611
      %v856 = vunpack.c.h.b16 %v611
      %v857 = vunpack.c.l.b16 %v612
      %v858 = vunpack.c.h.b16 %v612
      %v859 = vunpack.c.l.b16 %v613
      %v860 = vunpack.c.h.b16 %v613
      %v861 = vunpack.c.l.b16 %v614
      %v862 = vunpack.c.h.b16 %v614
      %v863 = vunpack.c.l.b16 %v615
      %v864 = vunpack.c.l.b16 %v616
      %v865 = vunpack.c.h.b16 %v616
      %v866 = vunpack.c.l.b16 %v617
      %v867 = vunpack.c.h.b16 %v617
      %v868 = vunpack.c.l.b16 %v618
      %v869 = vunpack.c.h.b16 %v618
      %v870 = vunpack.c.l.b16 %v619
      %v871 = vunpack.c.h.b16 %v619
      %v872 = vunpack.c.l.b16 %v620
      %v873 = vunpack.c.l.b16 %v621
      %v874 = vunpack.c.h.b16 %v621
      %v875 = vunpack.c.l.b16 %v622
      %v876 = vunpack.c.h.b16 %v622
      %v877 = vunpack.c.l.b16 %v623
      %v878 = vunpack.c.h.b16 %v623
      %v879 = vunpack.c.l.b16 %v624
      %v880 = vunpack.c.h.b16 %v624
      %v881 = vunpack.c.l.b16 %v625
      %v882 = vunpack.c.l.b16 %v626
      %v883 = vunpack.c.h.b16 %v626
      %v884 = vunpack.c.l.b16 %v627
      %v885 = vunpack.c.h.b16 %v627
      %v886 = vunpack.c.l.b16 %v628
      %v887 = vunpack.c.h.b16 %v628
      %v888 = vunpack.c.l.b16 %v629
      %v889 = vunpack.c.h.b16 %v629
      %v890 = vunpack.c.l.b16 %v630
      %v891 = vpack.c.b16 %v828, %v819
      %v892 = vpack.c.b16 %v829, %v820
      %v893 = vpack.c.b16 %v830, %v821
      %v894 = vpack.c.b16 %v831, %v822
      %v895 = vpack.c.b16 %v832, %v823
      %v896 = vpack.c.b16 %v833, %v824
      %v897 = vpack.c.b16 %v834, %v825
      %v898 = vpack.c.b16 %v835, %v826
      %v899 = vpack.c.b16 %v836, %v827
      %v900 = vpack.c.b16 %v846, %v837
      %v901 = vpack.c.b16 %v847, %v838
      %v902 = vpack.c.b16 %v848, %v839
      %v903 = vpack.c.b16 %v849, %v840
      %v904 = vpack.c.b16 %v850, %v841
      %v905 = vpack.c.b16 %v851, %v842
      %v906 = vpack.c.b16 %v852, %v843
      %v907 = vpack.c.b16 %v853, %v844
      %v908 = vpack.c.b16 %v854, %v845
      %v909 = vpack.c.b16 %v864, %v855
      %v910 = vpack.c.b16 %v865, %v856
      %v911 = vpack.c.b16 %v866, %v857
      %v912 = vpack.c.b16 %v867, %v858
      %v913 = vpack.c.b16 %v868, %v859
      %v914 = vpack.c.b16 %v869, %v860
      %v915 = vpack.c.b16 %v870, %v861
      %v916 = vpack.c.b16 %v871, %v862
      %v917 = vpack.c.b16 %v872, %v863
      %v918 = vpack.c.b16 %v882, %v873
      %v919 = vpack.c.b16 %v883, %v874
      %v920 = vpack.c.b16 %v884, %v875
      %v921 = vpack.c.b16 %v885, %v876
      %v922 = vpack.c.b16 %v886, %v877
      %v923 = vpack.c.b16 %v887, %v878
      %v924 = vpack.c.b16 %v888, %v879
      %v925 = vpack.c.b16 %v889, %v880
      %v926 = vpack.c.b16 %v890, %v881
      %v1107 = vunpack.c.l.b16 %v631
      %v1108 = vunpack.c.l.b16 %v632
      %v1109 = vunpack.c.l.b16 %v633
      %v1110 = vunpack.c.l.b16 %v634
      %v1111 = vunpack.c.l.b16 %v635
      %v1112 = vunpack.c.l.b16 %v636
      %v1113 = vunpack.c.l.b16 %v637
      %v1114 = vunpack.c.l.b16 %v638
      %v1115 = vunpack.c.l.b16 %v639
      %v1116 = vunpack.c.l.b16 %v640
      %v1117 = vunpack.c.l.b16 %v641
      %v1118 = vunpack.c.l.b16 %v642
      %v1119 = vunpack.c.l.b16 %v643
      %v1120 = vunpack.c.l.b16 %v644
      %v1121 = vunpack.c.l.b16 %v645
      %v1122 = vunpack.c.l.b16 %v646
      %v1123 = vunpack.c.l.b16 %v647
      %v1124 = vunpack.c.l.b16 %v648
      %v1125 = vunpack.c.l.b16 %v649
      %v1126 = vunpack.c.l.b16 %v650
      %v1127 = vunpack.c.l.b16 %v651
      %v1128 = vunpack.c.l.b16 %v652
      %v1129 = vunpack.c.l.b16 %v653
      %v1130 = vunpack.c.l.b16 %v654
      %v1131 = vunpack.c.l.b16 %v655
      %v1132 = vunpack.c.l.b16 %v656
      %v1133 = vunpack.c.l.b16 %v657
      %v1134 = vunpack.c.l.b16 %v658
      %v1135 = vunpack.c.l.b16 %v659
      %v1136 = vunpack.c.l.b16 %v660
      %v1137 = vunpack.c.l.b16 %v661
      %v1138 = vunpack.c.l.b16 %v662
      %v1139 = vunpack.c.l.b16 %v663
      %v1140 = vunpack.c.l.b16 %v664
      %v1141 = vunpack.c.l.b16 %v665
      %v1142 = vunpack.c.l.b16 %v666
      %v1143 = vunpack.c.l.b16 %v667
      %v1144 = vunpack.c.l.b16 %v668
      %v1145 = vunpack.c.l.b16 %v669
      %v1146 = vunpack.c.l.b16 %v670
      %v1147 = vunpack.c.l.b16 %v671
      %v1148 = vunpack.c.l.b16 %v672
      %v1149 = vunpack.c.l.b16 %v673
      %v1150 = vunpack.c.l.b16 %v674
      %v1151 = vunpack.c.l.b16 %v675
      %v1152 = vunpack.c.l.b16 %v676
      %v1153 = vunpack.c.l.b16 %v677
      %v1154 = vunpack.c.l.b16 %v678
      %v1155 = vunpack.c.l.b16 %v679
      %v1156 = vunpack.c.l.b16 %v680
      %v1157 = vunpack.c.l.b16 %v681
      %v1158 = vunpack.c.l.b16 %v682
      %v1159 = vunpack.c.l.b16 %v683
      %v1160 = vunpack.c.l.b16 %v684
      %v1161 = vunpack.c.l.b16 %v685
      %v1162 = vunpack.c.l.b16 %v686
      %v1163 = vunpack.c.l.b16 %v687
      %v1164 = vunpack.c.l.b16 %v688
      %v1165 = vunpack.c.l.b16 %v689
      %v1166 = vunpack.c.l.b16 %v690
      %v1167 = vunpack.c.l.b16 %v691
      %v1168 = vunpack.c.l.b16 %v692
      %v1169 = vunpack.c.l.b16 %v693
      %v1170 = vunpack.c.l.b16 %v694
      %v1171 = vunpack.c.l.b16 %v695
      %v1172 = vunpack.c.l.b16 %v696
      %v1173 = vunpack.c.l.b16 %v697
      %v1174 = vunpack.c.l.b16 %v698
      %v1175 = vunpack.c.l.b16 %v699
      %v1176 = vunpack.c.l.b16 %v700
      %v1177 = vunpack.c.l.b16 %v701
      %v1178 = vunpack.c.l.b16 %v702
      %v1179 = vunpack.c.l.b16 %v703
      %v1180 = vunpack.c.l.b16 %v704
      %v1181 = vunpack.c.l.b16 %v705
      %v1182 = vunpack.c.l.b16 %v706
      %v1183 = vunpack.c.l.b16 %v707
      %v1184 = vunpack.c.l.b16 %v708
      %v1185 = vunpack.c.l.b16 %v709
      %v1186 = vunpack.c.l.b16 %v710
      %v1187 = vunpack.c.l.b16 %v711
      %v1188 = vunpack.c.l.b16 %v712
      %v1189 = vunpack.c.l.b16 %v713
      %v1190 = vunpack.c.l.b16 %v714
      %v1191 = vunpack.c.l.b16 %v715
      %v1192 = vunpack.c.l.b16 %v716
      %v1193 = vunpack.c.l.b16 %v717
      %v1194 = vunpack.c.l.b16 %v718
      %v1195 = vunpack.c.l.b16 %v719
      %v1196 = vunpack.c.l.b16 %v720
      %v1197 = vunpack.c.l.b16 %v721
      %v1198 = vunpack.c.l.b16 %v722
      %v1199 = vunpack.c.l.b16 %v723
      %v1200 = vunpack.c.l.b16 %v724
      %v1201 = vunpack.c.l.b16 %v725
      %v1202 = vunpack.c.l.b16 %v726
      %v1203 = vunpack.c.l.b16 %v727
      %v1204 = vunpack.c.l.b16 %v728
      %v1205 = vunpack.c.l.b16 %v729
      %v1206 = vunpack.c.l.b16 %v730
      %v1207 = vunpack.c.l.b16 %v731
      %v1208 = vunpack.c.l.b16 %v732
      %v1209 = vunpack.c.l.b16 %v733
      %v1210 = vunpack.c.l.b16 %v734
      %v1211 = vunpack.c.l.b16 %v735
      %v1212 = vunpack.c.l.b16 %v736
      %v1213 = vunpack.c.l.b16 %v737
      %v1214 = vunpack.c.l.b16 %v738
      %v1215 = vunpack.c.l.b16 %v739
      %v1216 = vunpack.c.l.b16 %v740
      %v1217 = vunpack.c.l.b16 %v741
      %v1218 = vunpack.c.l.b16 %v742
      %v1219 = vunpack.c.l.b16 %v743
      %v1220 = vunpack.c.l.b16 %v744
      %v1221 = vunpack.c.l.b16 %v745
      %v1222 = vunpack.c.l.b16 %v746
      %v1223 = vunpack.c.l.b16 %v747
      %v1224 = vunpack.c.l.b16 %v748
      %v1225 = vunpack.c.l.b16 %v749
      %v1226 = vunpack.c.l.b16 %v750
      %v1227 = vunpack.c.l.b16 %v751
      %v1228 = vunpack.c.l.b16 %v752
      %v1229 = vunpack.c.l.b16 %v753
      %v1230 = vunpack.c.l.b16 %v754
      %v1231 = vunpack.c.l.b16 %v755
      %v1232 = vunpack.c.l.b16 %v756
      %v1233 = vunpack.c.l.b16 %v757
      %v1234 = vunpack.c.l.b16 %v758
      %v1235 = vunpack.c.l.b16 %v759
      %v1236 = vunpack.c.l.b16 %v760
      %v1237 = vunpack.c.l.b16 %v761
      %v1238 = vunpack.c.l.b16 %v762
      %v1239 = vunpack.c.l.b16 %v763
      %v1240 = vunpack.c.l.b16 %v764
      %v1241 = vunpack.c.l.b16 %v765
      %v1242 = vunpack.c.l.b16 %v766
      %v1243 = vunpack.c.l.b16 %v767
      %v1244 = vunpack.c.l.b16 %v768
      %v1245 = vunpack.c.l.b16 %v769
      %v1246 = vunpack.c.l.b16 %v770
      %v1247 = vunpack.c.l.b16 %v771
      %v1248 = vunpack.c.l.b16 %v772
      %v1249 = vunpack.c.l.b16 %v773
      %v1250 = vunpack.c.l.b16 %v774
      %v1251 = vpack.c.b16 %v1108, %v1107
      %v1252 = vpack.c.b16 %v1110, %v1109
      %v1253 = vpack.c.b16 %v1112, %v1111
      %v1254 = vpack.c.b16 %v1114, %v1113
      %v1255 = vpack.c.b16 %v1116, %v1115
      %v1256 = vpack.c.b16 %v1118, %v1117
      %v1257 = vpack.c.b16 %v1120, %v1119
      %v1258 = vpack.c.b16 %v1122, %v1121
      %v1259 = vpack.c.b16 %v1124, %v1123
      %v1260 = vpack.c.b16 %v1126, %v1125
      %v1261 = vpack.c.b16 %v1128, %v1127
      %v1262 = vpack.c.b16 %v1130, %v1129
      %v1263 = vpack.c.b16 %v1132, %v1131
      %v1264 = vpack.c.b16 %v1134, %v1133
      %v1265 = vpack.c.b16 %v1136, %v1135
      %v1266 = vpack.c.b16 %v1138, %v1137
      %v1267 = vpack.c.b16 %v1140, %v1139
      %v1268 = vpack.c.b16 %v1142, %v1141
      %v1269 = vpack.c.b16 %v1144, %v1143
      %v1270 = vpack.c.b16 %v1146, %v1145
      %v1271 = vpack.c.b16 %v1148, %v1147
      %v1272 = vpack.c.b16 %v1150, %v1149
      %v1273 = vpack.c.b16 %v1152, %v1151
      %v1274 = vpack.c.b16 %v1154, %v1153
      %v1275 = vpack.c.b16 %v1156, %v1155
      %v1276 = vpack.c.b16 %v1158, %v1157
      %v1277 = vpack.c.b16 %v1160, %v1159
      %v1278 = vpack.c.b16 %v1162, %v1161
      %v1279 = vpack.c.b16 %v1164, %v1163
      %v1280 = vpack.c.b16 %v1166, %v1165
      %v1281 = vpack.c.b16 %v1168, %v1167
      %v1282 = vpack.c.b16 %v1170, %v1169
      %v1283 = vpack.c.b16 %v1172, %v1171
      %v1284 = vpack.c.b16 %v1174, %v1173
      %v1285 = vpack.c.b16 %v1176, %v1175
      %v1286 = vpack.c.b16 %v1178, %v1177
      %v1287 = vpack.c.b16 %v1180, %v1179
      %v1288 = vpack.c.b16 %v1182, %v1181
      %v1289 = vpack.c.b16 %v1184, %v1183
      %v1290 = vpack.c.b16 %v1186, %v1185
      %v1291 = vpack.c.b16 %v1188, %v1187
      %v1292 = vpack.c.b16 %v1190, %v1189
      %v1293 = vpack.c.b16 %v1192, %v1191
      %v1294 = vpack.c.b16 %v1194, %v1193
      %v1295 = vpack.c.b16 %v1196, %v1195
      %v1296 = vpack.c.b16 %v1198, %v1197
      %v1297 = vpack.c.b16 %v1200, %v1199
      %v1298 = vpack.c.b16 %v1202, %v1201
      %v1299 = vpack.c.b16 %v1204, %v1203
      %v1300 = vpack.c.b16 %v1206, %v1205
      %v1301 = vpack.c.b16 %v1208, %v1207
      %v1302 = vpack.c.b16 %v1210, %v1209
      %v1303 = vpack.c.b16 %v1212, %v1211
      %v1304 = vpack.c.b16 %v1214, %v1213
      %v1305 = vpack.c.b16 %v1216, %v1215
      %v1306 = vpack.c.b16 %v1218, %v1217
      %v1307 = vpack.c.b16 %v1220, %v1219
      %v1308 = vpack.c.b16 %v1222, %v1221
      %v1309 = vpack.c.b16 %v1224, %v1223
      %v1310 = vpack.c.b16 %v1226, %v1225
      %v1311 = vpack.c.b16 %v1228, %v1227
      %v1312 = vpack.c.b16 %v1230, %v1229
      %v1313 = vpack.c.b16 %v1232, %v1231
      %v1314 = vpack.c.b16 %v1234, %v1233
      %v1315 = vpack.c.b16 %v1236, %v1235
      %v1316 = vpack.c.b16 %v1238, %v1237
      %v1317 = vpack.c.b16 %v1240, %v1239
      %v1318 = vpack.c.b16 %v1242, %v1241
      %v1319 = vpack.c.b16 %v1244, %v1243
      %v1320 = vpack.c.b16 %v1246, %v1245
      %v1321 = vpack.c.b16 %v1248, %v1247
      %v1322 = vpack.c.b16 %v1250, %v1249
      %1395 = vmatpush.bf16.msra.mxu0 %v1258
      %1396 = vmatpush.bf16.msra.mxu0 %v1257
      %1397 = vmatpush.bf16.msra.mxu0 %v1256
      %1398 = vmatpush.bf16.msra.mxu0 %v1255
      %1399 = vmatpush.bf16.msra.mxu0 %v1254
      %1400 = vmatpush.bf16.msra.mxu0 %v1253
      %1401 = vmatpush.bf16.msra.mxu0 %v1252
      %1402 = vmatpush.bf16.msra.mxu0 %v1251
      %1403 = vmatmul.bf16.gmra.mxu0 %v891
      %v1404 = vpop.f32.mrf.mxu0
      %v1405 = vadd.f32 %v777, %v1404
      %v1406 = vpop.f32.mrf.mxu0
      %v1407 = vadd.f32 %v777, %v1406
      %1408 = vmatmul.bf16.gmra.mxu0 %v900
      %v1409 = vpop.f32.mrf.mxu0
      %v1410 = vadd.f32 %v777, %v1409
      %v1411 = vpop.f32.mrf.mxu0
      %v1412 = vadd.f32 %v777, %v1411
      %1413 = vmatmul.bf16.gmra.mxu0 %v909
      %v1414 = vpop.f32.mrf.mxu0
      %v1415 = vadd.f32 %v777, %v1414
      %v1416 = vpop.f32.mrf.mxu0
      %v1417 = vadd.f32 %v777, %v1416
      %1418 = vmatmul.bf16.gmra.mxu0 %v918
      %v1419 = vpop.f32.mrf.mxu0
      %v1420 = vadd.f32 %v777, %v1419
      %v1421 = vpop.f32.mrf.mxu0
      %v1422 = vadd.f32 %v777, %v1421
      %1423 = vdwg.mxu0
      %1424 = vmatpush.bf16.msra.mxu0 %v1266
      %1425 = vmatpush.bf16.msra.mxu0 %v1265
      %1426 = vmatpush.bf16.msra.mxu0 %v1264
      %1427 = vmatpush.bf16.msra.mxu0 %v1263
      %1428 = vmatpush.bf16.msra.mxu0 %v1262
      %1429 = vmatpush.bf16.msra.mxu0 %v1261
      %1430 = vmatpush.bf16.msra.mxu0 %v1260
      %1431 = vmatpush.bf16.msra.mxu0 %v1259
      %1432 = vmatmul.bf16.gmra.mxu0 %v892
      %v1433 = vpop.f32.mrf.mxu0
      %v1434 = vadd.f32 %v1405, %v1433
      %v1435 = vpop.f32.mrf.mxu0
      %v1436 = vadd.f32 %v1407, %v1435
      %1437 = vmatmul.bf16.gmra.mxu0 %v901
      %v1438 = vpop.f32.mrf.mxu0
      %v1439 = vadd.f32 %v1410, %v1438
      %v1440 = vpop.f32.mrf.mxu0
      %v1441 = vadd.f32 %v1412, %v1440
      %1442 = vmatmul.bf16.gmra.mxu0 %v910
      %v1443 = vpop.f32.mrf.mxu0
      %v1444 = vadd.f32 %v1415, %v1443
      %v1445 = vpop.f32.mrf.mxu0
      %v1446 = vadd.f32 %v1417, %v1445
      %1447 = vmatmul.bf16.gmra.mxu0 %v919
      %v1448 = vpop.f32.mrf.mxu0
      %v1449 = vadd.f32 %v1420, %v1448
      %v1450 = vpop.f32.mrf.mxu0
      %v1451 = vadd.f32 %v1422, %v1450
      %1452 = vdwg.mxu0
      %1453 = vmatpush.bf16.msra.mxu0 %v1274
      %1454 = vmatpush.bf16.msra.mxu0 %v1273
      %1455 = vmatpush.bf16.msra.mxu0 %v1272
      %1456 = vmatpush.bf16.msra.mxu0 %v1271
      %1457 = vmatpush.bf16.msra.mxu0 %v1270
      %1458 = vmatpush.bf16.msra.mxu0 %v1269
      %1459 = vmatpush.bf16.msra.mxu0 %v1268
      %1460 = vmatpush.bf16.msra.mxu0 %v1267
      %1461 = vmatmul.bf16.gmra.mxu0 %v893
      %v1462 = vpop.f32.mrf.mxu0
      %v1463 = vadd.f32 %v1434, %v1462
      %v1464 = vpop.f32.mrf.mxu0
      %v1465 = vadd.f32 %v1436, %v1464
      %1466 = vmatmul.bf16.gmra.mxu0 %v902
      %v1467 = vpop.f32.mrf.mxu0
      %v1468 = vadd.f32 %v1439, %v1467
      %v1469 = vpop.f32.mrf.mxu0
      %v1470 = vadd.f32 %v1441, %v1469
      %1471 = vmatmul.bf16.gmra.mxu0 %v911
      %v1472 = vpop.f32.mrf.mxu0
      %v1473 = vadd.f32 %v1444, %v1472
      %v1474 = vpop.f32.mrf.mxu0
      %v1475 = vadd.f32 %v1446, %v1474
      %1476 = vmatmul.bf16.gmra.mxu0 %v920
      %v1477 = vpop.f32.mrf.mxu0
      %v1478 = vadd.f32 %v1449, %v1477
      %v1479 = vpop.f32.mrf.mxu0
      %v1480 = vadd.f32 %v1451, %v1479
      %1481 = vdwg.mxu0
      %1482 = vmatpush.bf16.msra.mxu0 %v1282
      %1483 = vmatpush.bf16.msra.mxu0 %v1281
      %1484 = vmatpush.bf16.msra.mxu0 %v1280
      %1485 = vmatpush.bf16.msra.mxu0 %v1279
      %1486 = vmatpush.bf16.msra.mxu0 %v1278
      %1487 = vmatpush.bf16.msra.mxu0 %v1277
      %1488 = vmatpush.bf16.msra.mxu0 %v1276
      %1489 = vmatpush.bf16.msra.mxu0 %v1275
      %1490 = vmatmul.bf16.gmra.mxu0 %v894
      %v1491 = vpop.f32.mrf.mxu0
      %v1492 = vadd.f32 %v1463, %v1491
      %v1493 = vpop.f32.mrf.mxu0
      %v1494 = vadd.f32 %v1465, %v1493
      %1495 = vmatmul.bf16.gmra.mxu0 %v903
      %v1496 = vpop.f32.mrf.mxu0
      %v1497 = vadd.f32 %v1468, %v1496
      %v1498 = vpop.f32.mrf.mxu0
      %v1499 = vadd.f32 %v1470, %v1498
      %1500 = vmatmul.bf16.gmra.mxu0 %v912
      %v1501 = vpop.f32.mrf.mxu0
      %v1502 = vadd.f32 %v1473, %v1501
      %v1503 = vpop.f32.mrf.mxu0
      %v1504 = vadd.f32 %v1475, %v1503
      %1505 = vmatmul.bf16.gmra.mxu0 %v921
      %v1506 = vpop.f32.mrf.mxu0
      %v1507 = vadd.f32 %v1478, %v1506
      %v1508 = vpop.f32.mrf.mxu0
      %v1509 = vadd.f32 %v1480, %v1508
      %1510 = vdwg.mxu0
      %1511 = vmatpush.bf16.msra.mxu0 %v1290
      %1512 = vmatpush.bf16.msra.mxu0 %v1289
      %1513 = vmatpush.bf16.msra.mxu0 %v1288
      %1514 = vmatpush.bf16.msra.mxu0 %v1287
      %1515 = vmatpush.bf16.msra.mxu0 %v1286
      %1516 = vmatpush.bf16.msra.mxu0 %v1285
      %1517 = vmatpush.bf16.msra.mxu0 %v1284
      %1518 = vmatpush.bf16.msra.mxu0 %v1283
      %1519 = vmatmul.bf16.gmra.mxu0 %v895
      %v1520 = vpop.f32.mrf.mxu0
      %v1521 = vadd.f32 %v1492, %v1520
      %v1522 = vpop.f32.mrf.mxu0
      %v1523 = vadd.f32 %v1494, %v1522
      %1524 = vmatmul.bf16.gmra.mxu0 %v904
      %v1525 = vpop.f32.mrf.mxu0
      %v1526 = vadd.f32 %v1497, %v1525
      %v1527 = vpop.f32.mrf.mxu0
      %v1528 = vadd.f32 %v1499, %v1527
      %1529 = vmatmul.bf16.gmra.mxu0 %v913
      %v1530 = vpop.f32.mrf.mxu0
      %v1531 = vadd.f32 %v1502, %v1530
      %v1532 = vpop.f32.mrf.mxu0
      %v1533 = vadd.f32 %v1504, %v1532
      %1534 = vmatmul.bf16.gmra.mxu0 %v922
      %v1535 = vpop.f32.mrf.mxu0
      %v1536 = vadd.f32 %v1507, %v1535
      %v1537 = vpop.f32.mrf.mxu0
      %v1538 = vadd.f32 %v1509, %v1537
      %1539 = vdwg.mxu0
      %1540 = vmatpush.bf16.msra.mxu0 %v1298
      %1541 = vmatpush.bf16.msra.mxu0 %v1297
      %1542 = vmatpush.bf16.msra.mxu0 %v1296
      %1543 = vmatpush.bf16.msra.mxu0 %v1295
      %1544 = vmatpush.bf16.msra.mxu0 %v1294
      %1545 = vmatpush.bf16.msra.mxu0 %v1293
      %1546 = vmatpush.bf16.msra.mxu0 %v1292
      %1547 = vmatpush.bf16.msra.mxu0 %v1291
      %1548 = vmatmul.bf16.gmra.mxu0 %v896
      %v1549 = vpop.f32.mrf.mxu0
      %v1550 = vadd.f32 %v1521, %v1549
      %v1551 = vpop.f32.mrf.mxu0
      %v1552 = vadd.f32 %v1523, %v1551
      %1553 = vmatmul.bf16.gmra.mxu0 %v905
      %v1554 = vpop.f32.mrf.mxu0
      %v1555 = vadd.f32 %v1526, %v1554
      %v1556 = vpop.f32.mrf.mxu0
      %v1557 = vadd.f32 %v1528, %v1556
      %1558 = vmatmul.bf16.gmra.mxu0 %v914
      %v1559 = vpop.f32.mrf.mxu0
      %v1560 = vadd.f32 %v1531, %v1559
      %v1561 = vpop.f32.mrf.mxu0
      %v1562 = vadd.f32 %v1533, %v1561
      %1563 = vmatmul.bf16.gmra.mxu0 %v923
      %v1564 = vpop.f32.mrf.mxu0
      %v1565 = vadd.f32 %v1536, %v1564
      %v1566 = vpop.f32.mrf.mxu0
      %v1567 = vadd.f32 %v1538, %v1566
      %1568 = vdwg.mxu0
      %1569 = vmatpush.bf16.msra.mxu0 %v1306
      %1570 = vmatpush.bf16.msra.mxu0 %v1305
      %1571 = vmatpush.bf16.msra.mxu0 %v1304
      %1572 = vmatpush.bf16.msra.mxu0 %v1303
      %1573 = vmatpush.bf16.msra.mxu0 %v1302
      %1574 = vmatpush.bf16.msra.mxu0 %v1301
      %1575 = vmatpush.bf16.msra.mxu0 %v1300
      %1576 = vmatpush.bf16.msra.mxu0 %v1299
      %1577 = vmatmul.bf16.gmra.mxu0 %v897
      %v1578 = vpop.f32.mrf.mxu0
      %v1579 = vadd.f32 %v1550, %v1578
      %v1580 = vpop.f32.mrf.mxu0
      %v1581 = vadd.f32 %v1552, %v1580
      %1582 = vmatmul.bf16.gmra.mxu0 %v906
      %v1583 = vpop.f32.mrf.mxu0
      %v1584 = vadd.f32 %v1555, %v1583
      %v1585 = vpop.f32.mrf.mxu0
      %v1586 = vadd.f32 %v1557, %v1585
      %1587 = vmatmul.bf16.gmra.mxu0 %v915
      %v1588 = vpop.f32.mrf.mxu0
      %v1589 = vadd.f32 %v1560, %v1588
      %v1590 = vpop.f32.mrf.mxu0
      %v1591 = vadd.f32 %v1562, %v1590
      %1592 = vmatmul.bf16.gmra.mxu0 %v924
      %v1593 = vpop.f32.mrf.mxu0
      %v1594 = vadd.f32 %v1565, %v1593
      %v1595 = vpop.f32.mrf.mxu0
      %v1596 = vadd.f32 %v1567, %v1595
      %1597 = vdwg.mxu0
      %1598 = vmatpush.bf16.msra.mxu0 %v1314
      %1599 = vmatpush.bf16.msra.mxu0 %v1313
      %1600 = vmatpush.bf16.msra.mxu0 %v1312
      %1601 = vmatpush.bf16.msra.mxu0 %v1311
      %1602 = vmatpush.bf16.msra.mxu0 %v1310
      %1603 = vmatpush.bf16.msra.mxu0 %v1309
      %1604 = vmatpush.bf16.msra.mxu0 %v1308
      %1605 = vmatpush.bf16.msra.mxu0 %v1307
      %1606 = vmatmul.bf16.gmra.mxu0 %v898
      %v1607 = vpop.f32.mrf.mxu0
      %v1608 = vadd.f32 %v1579, %v1607
      %v1609 = vpop.f32.mrf.mxu0
      %v1610 = vadd.f32 %v1581, %v1609
      %1611 = vmatmul.bf16.gmra.mxu0 %v907
      %v1612 = vpop.f32.mrf.mxu0
      %v1613 = vadd.f32 %v1584, %v1612
      %v1614 = vpop.f32.mrf.mxu0
      %v1615 = vadd.f32 %v1586, %v1614
      %1616 = vmatmul.bf16.gmra.mxu0 %v916
      %v1617 = vpop.f32.mrf.mxu0
      %v1618 = vadd.f32 %v1589, %v1617
      %v1619 = vpop.f32.mrf.mxu0
      %v1620 = vadd.f32 %v1591, %v1619
      %1621 = vmatmul.bf16.gmra.mxu0 %v925
      %v1622 = vpop.f32.mrf.mxu0
      %v1623 = vadd.f32 %v1594, %v1622
      %v1624 = vpop.f32.mrf.mxu0
      %v1625 = vadd.f32 %v1596, %v1624
      %1626 = vdwg.mxu0
      %1627 = vmatpush.bf16.msra.mxu0 %v1322
      %1628 = vmatpush.bf16.msra.mxu0 %v1321
      %1629 = vmatpush.bf16.msra.mxu0 %v1320
      %1630 = vmatpush.bf16.msra.mxu0 %v1319
      %1631 = vmatpush.bf16.msra.mxu0 %v1318
      %1632 = vmatpush.bf16.msra.mxu0 %v1317
      %1633 = vmatpush.bf16.msra.mxu0 %v1316
      %1634 = vmatpush.bf16.msra.mxu0 %v1315
      %1635 = vmatmul.bf16.gmra.mxu0 %v899
      %v1636 = vpop.f32.mrf.mxu0
      %v1637 = vadd.f32 %v1608, %v1636
      %v1638 = vpop.f32.mrf.mxu0
      %v1639 = vadd.f32 %v1610, %v1638
      %1640 = vmatmul.bf16.gmra.mxu0 %v908
      %v1641 = vpop.f32.mrf.mxu0
      %v1642 = vadd.f32 %v1613, %v1641
      %v1643 = vpop.f32.mrf.mxu0
      %v1644 = vadd.f32 %v1615, %v1643
      %1645 = vmatmul.bf16.gmra.mxu0 %v917
      %v1646 = vpop.f32.mrf.mxu0
      %v1647 = vadd.f32 %v1618, %v1646
      %v1648 = vpop.f32.mrf.mxu0
      %v1649 = vadd.f32 %v1620, %v1648
      %1650 = vmatmul.bf16.gmra.mxu0 %v926
      %v1651 = vpop.f32.mrf.mxu0
      %v1652 = vadd.f32 %v1623, %v1651
      %v1653 = vpop.f32.mrf.mxu0
      %v1654 = vadd.f32 %v1625, %v1653
      %1655 = vdwg.mxu0
      %v1656 = vmax.f32 %v1637, 0.0
      %v1657 = vmax.f32 %v1639, 0.0
      %v1658 = vmax.f32 %v1642, 0.0
      %v1659 = vmax.f32 %v1644, 0.0
      %v1660 = vmax.f32 %v1647, 0.0
      %v1661 = vmax.f32 %v1649, 0.0
      %v1662 = vmax.f32 %v1652, 0.0
      %v1663 = vmax.f32 %v1654, 0.0
      %1664 = vst [vmem:[%s364 + $0x1] sm:$0xff] %v1656
      %1665 = vst [vmem:[%s364 + $0x11] sm:$0xff] %v1657
      %1666 = vst [vmem:[%s364 + $0x21] sm:$0xff] %v1658
      %1667 = vst [vmem:[%s364 + $0x31] sm:$0xff] %v1659
      %1668 = vst [vmem:[%s364 + $0x41] sm:$0xff] %v1660
      %1669 = vst [vmem:[%s364 + $0x51] sm:$0xff] %v1661
      %1670 = vst [vmem:[%s364 + $0x61] sm:$0xff] %v1662
      %1671 = vst [vmem:[%s364 + $0x71] sm:$0xff] %v1663
      %v1672 = vld [vmem:[#allocation2] sm:$0xff]
      %v1673 = vld [vmem:[#allocation2 + $0x10] sm:$0xff]
      %v1674 = vld [vmem:[#allocation2 + $0x20] sm:$0xff]
      %v1675 = vld [vmem:[#allocation2 + $0x30] sm:$0xff]
      %v1676 = vld [vmem:[#allocation2 + $0x40] sm:$0xff]
      %v1677 = vld [vmem:[#allocation2 + $0x50] sm:$0xff]
      %v1678 = vld [vmem:[#allocation2 + $0x60] sm:$0xff]
      %v1679 = vld [vmem:[#allocation2 + $0x70] sm:$0xff]
      %v1680 = vpack.c.bf16 %v1672, %v1672
      %v1681 = vpack.c.bf16 %v1673, %v1673
      %v1682 = vpack.c.bf16 %v1674, %v1674
      %v1683 = vpack.c.bf16 %v1675, %v1675
      %v1684 = vpack.c.bf16 %v1676, %v1676
      %v1685 = vpack.c.bf16 %v1677, %v1677
      %v1686 = vpack.c.bf16 %v1678, %v1678
      %v1687 = vpack.c.bf16 %v1679, %v1679
      %1688 = vst [vmem:[#allocation3] sm:$0xf] %v1680
      %1689 = vst [vmem:[#allocation3 + $0x24] sm:$0xf] %v1681
      %1690 = vst [vmem:[#allocation3 + $0x48] sm:$0xf] %v1682
      %1691 = vst [vmem:[#allocation3 + $0x6c] sm:$0xf] %v1683
      %1692 = vst [vmem:[#allocation3 + $0x90] sm:$0xf] %v1684
      %1693 = vst [vmem:[#allocation3 + $0xb4] sm:$0xf] %v1685
      %1694 = vst [vmem:[#allocation3 + $0xd8] sm:$0xf] %v1686
      %1695 = vst [vmem:[#allocation3 + $0xfc] sm:$0xf] %v1687
      %v1696 = vld [vmem:[#allocation2 + $0x1] sm:$0xff]
      %v1697 = vld [vmem:[#allocation2 + $0x11] sm:$0xff]
      %v1698 = vld [vmem:[#allocation2 + $0x21] sm:$0xff]
      %v1699 = vld [vmem:[#allocation2 + $0x31] sm:$0xff]
      %v1700 = vld [vmem:[#allocation2 + $0x41] sm:$0xff]
      %v1701 = vld [vmem:[#allocation2 + $0x51] sm:$0xff]
      %v1702 = vld [vmem:[#allocation2 + $0x61] sm:$0xff]
      %v1703 = vld [vmem:[#allocation2 + $0x71] sm:$0xff]
      %v1704 = vpack.c.bf16 %v1696, %v1696
      %v1705 = vpack.c.bf16 %v1697, %v1697
      %v1706 = vpack.c.bf16 %v1698, %v1698
      %v1707 = vpack.c.bf16 %v1699, %v1699
      %v1708 = vpack.c.bf16 %v1700, %v1700
      %v1709 = vpack.c.bf16 %v1701, %v1701
      %v1710 = vpack.c.bf16 %v1702, %v1702
      %v1711 = vpack.c.bf16 %v1703, %v1703
      %1712 = vst [vmem:[#allocation3 + $0x4] sm:$0xf] %v1704
      %1713 = vst [vmem:[#allocation3 + $0x28] sm:$0xf] %v1705
      %1714 = vst [vmem:[#allocation3 + $0x4c] sm:$0xf] %v1706
      %1715 = vst [vmem:[#allocation3 + $0x70] sm:$0xf] %v1707
      %1716 = vst [vmem:[#allocation3 + $0x94] sm:$0xf] %v1708
      %1717 = vst [vmem:[#allocation3 + $0xb8] sm:$0xf] %v1709
      %1718 = vst [vmem:[#allocation3 + $0xdc] sm:$0xf] %v1710
      %1719 = vst [vmem:[#allocation3 + $0x100] sm:$0xf] %v1711
      %v1720 = vld [vmem:[#allocation2 + $0x2] sm:$0xff]
      %v1721 = vld [vmem:[#allocation2 + $0x12] sm:$0xff]
      %v1722 = vld [vmem:[#allocation2 + $0x22] sm:$0xff]
      %v1723 = vld [vmem:[#allocation2 + $0x32] sm:$0xff]
      %v1724 = vld [vmem:[#allocation2 + $0x42] sm:$0xff]
      %v1725 = vld [vmem:[#allocation2 + $0x52] sm:$0xff]
      %v1726 = vld [vmem:[#allocation2 + $0x62] sm:$0xff]
      %v1727 = vld [vmem:[#allocation2 + $0x72] sm:$0xff]
      %v1728 = vpack.c.bf16 %v1720, %v1720
      %v1729 = vpack.c.bf16 %v1721, %v1721
      %v1730 = vpack.c.bf16 %v1722, %v1722
      %v1731 = vpack.c.bf16 %v1723, %v1723
      %v1732 = vpack.c.bf16 %v1724, %v1724
      %v1733 = vpack.c.bf16 %v1725, %v1725
      %v1734 = vpack.c.bf16 %v1726, %v1726
      %v1735 = vpack.c.bf16 %v1727, %v1727
      %1736 = vst [vmem:[#allocation3 + $0x8] sm:$0xf] %v1728
      %1737 = vst [vmem:[#allocation3 + $0x2c] sm:$0xf] %v1729
      %1738 = vst [vmem:[#allocation3 + $0x50] sm:$0xf] %v1730
      %1739 = vst [vmem:[#allocation3 + $0x74] sm:$0xf] %v1731
      %1740 = vst [vmem:[#allocation3 + $0x98] sm:$0xf] %v1732
      %1741 = vst [vmem:[#allocation3 + $0xbc] sm:$0xf] %v1733
      %1742 = vst [vmem:[#allocation3 + $0xe0] sm:$0xf] %v1734
      %1743 = vst [vmem:[#allocation3 + $0x104] sm:$0xf] %v1735
      %v1744 = vld [vmem:[%s364] sm:$0xff]
      %v1745 = vld [vmem:[%s364 + $0x10] sm:$0xff]
      %v1746 = vld [vmem:[%s364 + $0x20] sm:$0xff]
      %v1747 = vld [vmem:[%s364 + $0x30] sm:$0xff]
      %v1748 = vld [vmem:[%s364 + $0x40] sm:$0xff]
      %v1749 = vld [vmem:[%s364 + $0x50] sm:$0xff]
      %v1750 = vld [vmem:[%s364 + $0x60] sm:$0xff]
      %v1751 = vld [vmem:[%s364 + $0x70] sm:$0xff]
      %v1752 = vpack.c.bf16 %v1744, %v1744
      %v1753 = vpack.c.bf16 %v1745, %v1745
      %v1754 = vpack.c.bf16 %v1746, %v1746
      %v1755 = vpack.c.bf16 %v1747, %v1747
      %v1756 = vpack.c.bf16 %v1748, %v1748
      %v1757 = vpack.c.bf16 %v1749, %v1749
      %v1758 = vpack.c.bf16 %v1750, %v1750
      %v1759 = vpack.c.bf16 %v1751, %v1751
      %1760 = vst [vmem:[#allocation3 + $0xc] sm:$0xf] %v1752
      %1761 = vst [vmem:[#allocation3 + $0x30] sm:$0xf] %v1753
      %1762 = vst [vmem:[#allocation3 + $0x54] sm:$0xf] %v1754
      %1763 = vst [vmem:[#allocation3 + $0x78] sm:$0xf] %v1755
      %1764 = vst [vmem:[#allocation3 + $0x9c] sm:$0xf] %v1756
      %1765 = vst [vmem:[#allocation3 + $0xc0] sm:$0xf] %v1757
      %1766 = vst [vmem:[#allocation3 + $0xe4] sm:$0xf] %v1758
      %1767 = vst [vmem:[#allocation3 + $0x108] sm:$0xf] %v1759
      %v1768 = vld [vmem:[%s364 + $0x1] sm:$0xff]
      %v1769 = vld [vmem:[%s364 + $0x11] sm:$0xff]
      %v1770 = vld [vmem:[%s364 + $0x21] sm:$0xff]
      %v1771 = vld [vmem:[%s364 + $0x31] sm:$0xff]
      %v1772 = vld [vmem:[%s364 + $0x41] sm:$0xff]
      %v1773 = vld [vmem:[%s364 + $0x51] sm:$0xff]
      %v1774 = vld [vmem:[%s364 + $0x61] sm:$0xff]
      %v1775 = vld [vmem:[%s364 + $0x71] sm:$0xff]
      %v1776 = vpack.c.bf16 %v1768, %v1768
      %v1777 = vpack.c.bf16 %v1769, %v1769
      %v1778 = vpack.c.bf16 %v1770, %v1770
      %v1779 = vpack.c.bf16 %v1771, %v1771
      %v1780 = vpack.c.bf16 %v1772, %v1772
      %v1781 = vpack.c.bf16 %v1773, %v1773
      %v1782 = vpack.c.bf16 %v1774, %v1774
      %v1783 = vpack.c.bf16 %v1775, %v1775
      %1784 = vst [vmem:[#allocation3 + $0x10] sm:$0xf] %v1776
      %1785 = vst [vmem:[#allocation3 + $0x34] sm:$0xf] %v1777
      %1786 = vst [vmem:[#allocation3 + $0x58] sm:$0xf] %v1778
      %1787 = vst [vmem:[#allocation3 + $0x7c] sm:$0xf] %v1779
      %1788 = vst [vmem:[#allocation3 + $0xa0] sm:$0xf] %v1780
      %1789 = vst [vmem:[#allocation3 + $0xc4] sm:$0xf] %v1781
      %1790 = vst [vmem:[#allocation3 + $0xe8] sm:$0xf] %v1782
      %1791 = vst [vmem:[#allocation3 + $0x10c] sm:$0xf] %v1783
      %v1792 = vld [vmem:[%s364 + $0x2] sm:$0xff]
      %v1793 = vld [vmem:[%s364 + $0x12] sm:$0xff]
      %v1794 = vld [vmem:[%s364 + $0x22] sm:$0xff]
      %v1795 = vld [vmem:[%s364 + $0x32] sm:$0xff]
      %v1796 = vld [vmem:[%s364 + $0x42] sm:$0xff]
      %v1797 = vld [vmem:[%s364 + $0x52] sm:$0xff]
      %v1798 = vld [vmem:[%s364 + $0x62] sm:$0xff]
      %v1799 = vld [vmem:[%s364 + $0x72] sm:$0xff]
      %v1800 = vpack.c.bf16 %v1792, %v1792
      %v1801 = vpack.c.bf16 %v1793, %v1793
      %v1802 = vpack.c.bf16 %v1794, %v1794
      %v1803 = vpack.c.bf16 %v1795, %v1795
      %v1804 = vpack.c.bf16 %v1796, %v1796
      %v1805 = vpack.c.bf16 %v1797, %v1797
      %v1806 = vpack.c.bf16 %v1798, %v1798
      %v1807 = vpack.c.bf16 %v1799, %v1799
      %1808 = vst [vmem:[#allocation3 + $0x14] sm:$0xf] %v1800
      %1809 = vst [vmem:[#allocation3 + $0x38] sm:$0xf] %v1801
      %1810 = vst [vmem:[#allocation3 + $0x5c] sm:$0xf] %v1802
      %1811 = vst [vmem:[#allocation3 + $0x80] sm:$0xf] %v1803
      %1812 = vst [vmem:[#allocation3 + $0xa4] sm:$0xf] %v1804
      %1813 = vst [vmem:[#allocation3 + $0xc8] sm:$0xf] %v1805
      %1814 = vst [vmem:[#allocation3 + $0xec] sm:$0xf] %v1806
      %1815 = vst [vmem:[#allocation3 + $0x110] sm:$0xf] %v1807
      %v1816 = vld [vmem:[%s518] sm:$0xff]
      %v1817 = vld [vmem:[%s518 + $0x10] sm:$0xff]
      %v1818 = vld [vmem:[%s518 + $0x20] sm:$0xff]
      %v1819 = vld [vmem:[%s518 + $0x30] sm:$0xff]
      %v1820 = vld [vmem:[%s518 + $0x40] sm:$0xff]
      %v1821 = vld [vmem:[%s518 + $0x50] sm:$0xff]
      %v1822 = vld [vmem:[%s518 + $0x60] sm:$0xff]
      %v1823 = vld [vmem:[%s518 + $0x70] sm:$0xff]
      %v1824 = vpack.c.bf16 %v1816, %v1816
      %v1825 = vpack.c.bf16 %v1817, %v1817
      %v1826 = vpack.c.bf16 %v1818, %v1818
      %v1827 = vpack.c.bf16 %v1819, %v1819
      %v1828 = vpack.c.bf16 %v1820, %v1820
      %v1829 = vpack.c.bf16 %v1821, %v1821
      %v1830 = vpack.c.bf16 %v1822, %v1822
      %v1831 = vpack.c.bf16 %v1823, %v1823
      %1832 = vst [vmem:[#allocation3 + $0x18] sm:$0xf] %v1824
      %1833 = vst [vmem:[#allocation3 + $0x3c] sm:$0xf] %v1825
      %1834 = vst [vmem:[#allocation3 + $0x60] sm:$0xf] %v1826
      %1835 = vst [vmem:[#allocation3 + $0x84] sm:$0xf] %v1827
      %1836 = vst [vmem:[#allocation3 + $0xa8] sm:$0xf] %v1828
      %1837 = vst [vmem:[#allocation3 + $0xcc] sm:$0xf] %v1829
      %1838 = vst [vmem:[#allocation3 + $0xf0] sm:$0xf] %v1830
      %1839 = vst [vmem:[#allocation3 + $0x114] sm:$0xf] %v1831
      %v1840 = vld [vmem:[%s518 + $0x1] sm:$0xff]
      %v1841 = vld [vmem:[%s518 + $0x11] sm:$0xff]
      %v1842 = vld [vmem:[%s518 + $0x21] sm:$0xff]
      %v1843 = vld [vmem:[%s518 + $0x31] sm:$0xff]
      %v1844 = vld [vmem:[%s518 + $0x41] sm:$0xff]
      %v1845 = vld [vmem:[%s518 + $0x51] sm:$0xff]
      %v1846 = vld [vmem:[%s518 + $0x61] sm:$0xff]
      %v1847 = vld [vmem:[%s518 + $0x71] sm:$0xff]
      %v1848 = vpack.c.bf16 %v1840, %v1840
      %v1849 = vpack.c.bf16 %v1841, %v1841
      %v1850 = vpack.c.bf16 %v1842, %v1842
      %v1851 = vpack.c.bf16 %v1843, %v1843
      %v1852 = vpack.c.bf16 %v1844, %v1844
      %v1853 = vpack.c.bf16 %v1845, %v1845
      %v1854 = vpack.c.bf16 %v1846, %v1846
      %v1855 = vpack.c.bf16 %v1847, %v1847
      %1856 = vst [vmem:[#allocation3 + $0x1c] sm:$0xf] %v1848
      %1857 = vst [vmem:[#allocation3 + $0x40] sm:$0xf] %v1849
      %1858 = vst [vmem:[#allocation3 + $0x64] sm:$0xf] %v1850
      %1859 = vst [vmem:[#allocation3 + $0x88] sm:$0xf] %v1851
      %1860 = vst [vmem:[#allocation3 + $0xac] sm:$0xf] %v1852
      %1861 = vst [vmem:[#allocation3 + $0xd0] sm:$0xf] %v1853
      %1862 = vst [vmem:[#allocation3 + $0xf4] sm:$0xf] %v1854
      %1863 = vst [vmem:[#allocation3 + $0x118] sm:$0xf] %v1855
      %v1864 = vld [vmem:[%s518 + $0x2] sm:$0xff]
      %v1865 = vld [vmem:[%s518 + $0x12] sm:$0xff]
      %v1866 = vld [vmem:[%s518 + $0x22] sm:$0xff]
      %v1867 = vld [vmem:[%s518 + $0x32] sm:$0xff]
      %v1868 = vld [vmem:[%s518 + $0x42] sm:$0xff]
      %v1869 = vld [vmem:[%s518 + $0x52] sm:$0xff]
      %v1870 = vld [vmem:[%s518 + $0x62] sm:$0xff]
      %v1871 = vld [vmem:[%s518 + $0x72] sm:$0xff]
      %v1872 = vpack.c.bf16 %v1864, %v1864
      %v1873 = vpack.c.bf16 %v1865, %v1865
      %v1874 = vpack.c.bf16 %v1866, %v1866
      %v1875 = vpack.c.bf16 %v1867, %v1867
      %v1876 = vpack.c.bf16 %v1868, %v1868
      %v1877 = vpack.c.bf16 %v1869, %v1869
      %v1878 = vpack.c.bf16 %v1870, %v1870
      %v1879 = vpack.c.bf16 %v1871, %v1871
      %1880 = vst [vmem:[#allocation3 + $0x20] sm:$0xf] %v1872
      %1881 = vst [vmem:[#allocation3 + $0x44] sm:$0xf] %v1873
      %1882 = vst [vmem:[#allocation3 + $0x68] sm:$0xf] %v1874
      %1883 = vst [vmem:[#allocation3 + $0x8c] sm:$0xf] %v1875
      %1884 = vst [vmem:[#allocation3 + $0xb0] sm:$0xf] %v1876
      %1885 = vst [vmem:[#allocation3 + $0xd4] sm:$0xf] %v1877
      %1886 = vst [vmem:[#allocation3 + $0xf8] sm:$0xf] %v1878
      %1887 = vst [vmem:[#allocation3 + $0x11c] sm:$0xf] %v1879
      %v1888 = vld [vmem:[#allocation3] sm:$0xff]
      %v1889 = vld [vmem:[#allocation3 + $0x8] sm:$0xff]
      %v1890 = vld [vmem:[#allocation3 + $0x10] sm:$0xff]
      %v1891 = vld [vmem:[#allocation3 + $0x18] sm:$0xff]
      %v1892 = vld [vmem:[#allocation3 + $0x20] sm:$0xf]
      %v1893 = vld [vmem:[#allocation3 + $0x24] sm:$0xff]
      %v1894 = vld [vmem:[#allocation3 + $0x2c] sm:$0xff]
      %v1895 = vld [vmem:[#allocation3 + $0x34] sm:$0xff]
      %v1896 = vld [vmem:[#allocation3 + $0x3c] sm:$0xff]
      %v1897 = vld [vmem:[#allocation3 + $0x44] sm:$0xf]
      %v1898 = vld [vmem:[#allocation3 + $0x48] sm:$0xff]
      %v1899 = vld [vmem:[#allocation3 + $0x50] sm:$0xff]
      %v1900 = vld [vmem:[#allocation3 + $0x58] sm:$0xff]
      %v1901 = vld [vmem:[#allocation3 + $0x60] sm:$0xff]
      %v1902 = vld [vmem:[#allocation3 + $0x68] sm:$0xf]
      %v1903 = vld [vmem:[#allocation3 + $0x6c] sm:$0xff]
      %v1904 = vld [vmem:[#allocation3 + $0x74] sm:$0xff]
      %v1905 = vld [vmem:[#allocation3 + $0x7c] sm:$0xff]
      %v1906 = vld [vmem:[#allocation3 + $0x84] sm:$0xff]
      %v1907 = vld [vmem:[#allocation3 + $0x8c] sm:$0xf]
      %v1908 = vld [vmem:[#allocation3 + $0x90] sm:$0xff]
      %v1909 = vld [vmem:[#allocation3 + $0x98] sm:$0xff]
      %v1910 = vld [vmem:[#allocation3 + $0xa0] sm:$0xff]
      %v1911 = vld [vmem:[#allocation3 + $0xa8] sm:$0xff]
      %v1912 = vld [vmem:[#allocation3 + $0xb0] sm:$0xf]
      %v1913 = vld [vmem:[#allocation3 + $0xb4] sm:$0xff]
      %v1914 = vld [vmem:[#allocation3 + $0xbc] sm:$0xff]
      %v1915 = vld [vmem:[#allocation3 + $0xc4] sm:$0xff]
      %v1916 = vld [vmem:[#allocation3 + $0xcc] sm:$0xff]
      %v1917 = vld [vmem:[#allocation3 + $0xd4] sm:$0xf]
      %v1918 = vld [vmem:[#allocation3 + $0xd8] sm:$0xff]
      %v1919 = vld [vmem:[#allocation3 + $0xe0] sm:$0xff]
      %v1920 = vld [vmem:[#allocation3 + $0xe8] sm:$0xff]
      %v1921 = vld [vmem:[#allocation3 + $0xf0] sm:$0xff]
      %v1922 = vld [vmem:[#allocation3 + $0xf8] sm:$0xf]
      %v1923 = vld [vmem:[#allocation3 + $0xfc] sm:$0xff]
      %v1924 = vld [vmem:[#allocation3 + $0x104] sm:$0xff]
      %v1925 = vld [vmem:[#allocation3 + $0x10c] sm:$0xff]
      %v1926 = vld [vmem:[#allocation3 + $0x114] sm:$0xff]
      %v1927 = vld [vmem:[#allocation3 + $0x11c] sm:$0xf]
      %v1928 = vld [vmem:[%s3] sm:$0xf]
      %v1929 = vld [vmem:[%s3 + $0x4] sm:$0xf]
      %v1930 = vld [vmem:[%s3 + $0x8] sm:$0xf]
      %v1931 = vld [vmem:[%s3 + $0xc] sm:$0xf]
      %v1932 = vld [vmem:[%s3 + $0x10] sm:$0xf]
      %v1933 = vld [vmem:[%s3 + $0x14] sm:$0xf]
      %v1934 = vld [vmem:[%s3 + $0x18] sm:$0xf]
      %v1935 = vld [vmem:[%s3 + $0x1c] sm:$0xf]
      %v1936 = vld [vmem:[%s3 + $0x20] sm:$0xf]
      %v1937 = vld [vmem:[%s3 + $0x24] sm:$0xf]
      %v1938 = vld [vmem:[%s3 + $0x28] sm:$0xf]
      %v1939 = vld [vmem:[%s3 + $0x2c] sm:$0xf]
      %v1940 = vld [vmem:[%s3 + $0x30] sm:$0xf]
      %v1941 = vld [vmem:[%s3 + $0x34] sm:$0xf]
      %v1942 = vld [vmem:[%s3 + $0x38] sm:$0xf]
      %v1943 = vld [vmem:[%s3 + $0x3c] sm:$0xf]
      %v1944 = vld [vmem:[%s3 + $0x40] sm:$0xf]
      %v1945 = vld [vmem:[%s3 + $0x44] sm:$0xf]
      %v1946 = vld [vmem:[%s3 + $0x48] sm:$0xf]
      %v1947 = vld [vmem:[%s3 + $0x4c] sm:$0xf]
      %v1948 = vld [vmem:[%s3 + $0x50] sm:$0xf]
      %v1949 = vld [vmem:[%s3 + $0x54] sm:$0xf]
      %v1950 = vld [vmem:[%s3 + $0x58] sm:$0xf]
      %v1951 = vld [vmem:[%s3 + $0x5c] sm:$0xf]
      %v1952 = vld [vmem:[%s3 + $0x60] sm:$0xf]
      %v1953 = vld [vmem:[%s3 + $0x64] sm:$0xf]
      %v1954 = vld [vmem:[%s3 + $0x68] sm:$0xf]
      %v1955 = vld [vmem:[%s3 + $0x6c] sm:$0xf]
      %v1956 = vld [vmem:[%s3 + $0x70] sm:$0xf]
      %v1957 = vld [vmem:[%s3 + $0x74] sm:$0xf]
      %v1958 = vld [vmem:[%s3 + $0x78] sm:$0xf]
      %v1959 = vld [vmem:[%s3 + $0x7c] sm:$0xf]
      %v1960 = vld [vmem:[%s3 + $0x80] sm:$0xf]
      %v1961 = vld [vmem:[%s3 + $0x84] sm:$0xf]
      %v1962 = vld [vmem:[%s3 + $0x88] sm:$0xf]
      %v1963 = vld [vmem:[%s3 + $0x8c] sm:$0xf]
      %v1964 = vld [vmem:[%s3 + $0x90] sm:$0xf]
      %v1965 = vld [vmem:[%s3 + $0x94] sm:$0xf]
      %v1966 = vld [vmem:[%s3 + $0x98] sm:$0xf]
      %v1967 = vld [vmem:[%s3 + $0x9c] sm:$0xf]
      %v1968 = vld [vmem:[%s3 + $0xa0] sm:$0xf]
      %v1969 = vld [vmem:[%s3 + $0xa4] sm:$0xf]
      %v1970 = vld [vmem:[%s3 + $0xa8] sm:$0xf]
      %v1971 = vld [vmem:[%s3 + $0xac] sm:$0xf]
      %v1972 = vld [vmem:[%s3 + $0xb0] sm:$0xf]
      %v1973 = vld [vmem:[%s3 + $0xb4] sm:$0xf]
      %v1974 = vld [vmem:[%s3 + $0xb8] sm:$0xf]
      %v1975 = vld [vmem:[%s3 + $0xbc] sm:$0xf]
      %v1976 = vld [vmem:[%s3 + $0xc0] sm:$0xf]
      %v1977 = vld [vmem:[%s3 + $0xc4] sm:$0xf]
      %v1978 = vld [vmem:[%s3 + $0xc8] sm:$0xf]
      %v1979 = vld [vmem:[%s3 + $0xcc] sm:$0xf]
      %v1980 = vld [vmem:[%s3 + $0xd0] sm:$0xf]
      %v1981 = vld [vmem:[%s3 + $0xd4] sm:$0xf]
      %v1982 = vld [vmem:[%s3 + $0xd8] sm:$0xf]
      %v1983 = vld [vmem:[%s3 + $0xdc] sm:$0xf]
      %v1984 = vld [vmem:[%s3 + $0xe0] sm:$0xf]
      %v1985 = vld [vmem:[%s3 + $0xe4] sm:$0xf]
      %v1986 = vld [vmem:[%s3 + $0xe8] sm:$0xf]
      %v1987 = vld [vmem:[%s3 + $0xec] sm:$0xf]
      %v1988 = vld [vmem:[%s3 + $0xf0] sm:$0xf]
      %v1989 = vld [vmem:[%s3 + $0xf4] sm:$0xf]
      %v1990 = vld [vmem:[%s3 + $0xf8] sm:$0xf]
      %v1991 = vld [vmem:[%s3 + $0xfc] sm:$0xf]
      %v1992 = vld [vmem:[%s3 + $0x100] sm:$0xf]
      %v1993 = vld [vmem:[%s3 + $0x104] sm:$0xf]
      %v1994 = vld [vmem:[%s3 + $0x108] sm:$0xf]
      %v1995 = vld [vmem:[%s3 + $0x10c] sm:$0xf]
      %v1996 = vld [vmem:[%s3 + $0x110] sm:$0xf]
      %v1997 = vld [vmem:[%s3 + $0x114] sm:$0xf]
      %v1998 = vld [vmem:[%s3 + $0x118] sm:$0xf]
      %v1999 = vld [vmem:[%s3 + $0x11c] sm:$0xf]
      %v2000 = vld [vmem:[%s3 + $0x120] sm:$0xf]
      %v2001 = vld [vmem:[%s3 + $0x124] sm:$0xf]
      %v2002 = vld [vmem:[%s3 + $0x128] sm:$0xf]
      %v2003 = vld [vmem:[%s3 + $0x12c] sm:$0xf]
      %v2004 = vld [vmem:[%s3 + $0x130] sm:$0xf]
      %v2005 = vld [vmem:[%s3 + $0x134] sm:$0xf]
      %v2006 = vld [vmem:[%s3 + $0x138] sm:$0xf]
      %v2007 = vld [vmem:[%s3 + $0x13c] sm:$0xf]
      %v2008 = vld [vmem:[%s3 + $0x140] sm:$0xf]
      %v2009 = vld [vmem:[%s3 + $0x144] sm:$0xf]
      %v2010 = vld [vmem:[%s3 + $0x148] sm:$0xf]
      %v2011 = vld [vmem:[%s3 + $0x14c] sm:$0xf]
      %v2012 = vld [vmem:[%s3 + $0x150] sm:$0xf]
      %v2013 = vld [vmem:[%s3 + $0x154] sm:$0xf]
      %v2014 = vld [vmem:[%s3 + $0x158] sm:$0xf]
      %v2015 = vld [vmem:[%s3 + $0x15c] sm:$0xf]
      %v2016 = vld [vmem:[%s3 + $0x160] sm:$0xf]
      %v2017 = vld [vmem:[%s3 + $0x164] sm:$0xf]
      %v2018 = vld [vmem:[%s3 + $0x168] sm:$0xf]
      %v2019 = vld [vmem:[%s3 + $0x16c] sm:$0xf]
      %v2020 = vld [vmem:[%s3 + $0x170] sm:$0xf]
      %v2021 = vld [vmem:[%s3 + $0x174] sm:$0xf]
      %v2022 = vld [vmem:[%s3 + $0x178] sm:$0xf]
      %v2023 = vld [vmem:[%s3 + $0x17c] sm:$0xf]
      %v2024 = vld [vmem:[%s3 + $0x180] sm:$0xf]
      %v2025 = vld [vmem:[%s3 + $0x184] sm:$0xf]
      %v2026 = vld [vmem:[%s3 + $0x188] sm:$0xf]
      %v2027 = vld [vmem:[%s3 + $0x18c] sm:$0xf]
      %v2028 = vld [vmem:[%s3 + $0x190] sm:$0xf]
      %v2029 = vld [vmem:[%s3 + $0x194] sm:$0xf]
      %v2030 = vld [vmem:[%s3 + $0x198] sm:$0xf]
      %v2031 = vld [vmem:[%s3 + $0x19c] sm:$0xf]
      %v2032 = vld [vmem:[%s3 + $0x1a0] sm:$0xf]
      %v2033 = vld [vmem:[%s3 + $0x1a4] sm:$0xf]
      %v2034 = vld [vmem:[%s3 + $0x1a8] sm:$0xf]
      %v2035 = vld [vmem:[%s3 + $0x1ac] sm:$0xf]
      %v2036 = vld [vmem:[%s3 + $0x1b0] sm:$0xf]
      %v2037 = vld [vmem:[%s3 + $0x1b4] sm:$0xf]
      %v2038 = vld [vmem:[%s3 + $0x1b8] sm:$0xf]
      %v2039 = vld [vmem:[%s3 + $0x1bc] sm:$0xf]
      %v2040 = vld [vmem:[%s3 + $0x1c0] sm:$0xf]
      %v2041 = vld [vmem:[%s3 + $0x1c4] sm:$0xf]
      %v2042 = vld [vmem:[%s3 + $0x1c8] sm:$0xf]
      %v2043 = vld [vmem:[%s3 + $0x1cc] sm:$0xf]
      %v2044 = vld [vmem:[%s3 + $0x1d0] sm:$0xf]
      %v2045 = vld [vmem:[%s3 + $0x1d4] sm:$0xf]
      %v2046 = vld [vmem:[%s3 + $0x1d8] sm:$0xf]
      %v2047 = vld [vmem:[%s3 + $0x1dc] sm:$0xf]
      %v2048 = vld [vmem:[%s3 + $0x1e0] sm:$0xf]
      %v2049 = vld [vmem:[%s3 + $0x1e4] sm:$0xf]
      %v2050 = vld [vmem:[%s3 + $0x1e8] sm:$0xf]
      %v2051 = vld [vmem:[%s3 + $0x1ec] sm:$0xf]
      %v2052 = vld [vmem:[%s3 + $0x1f0] sm:$0xf]
      %v2053 = vld [vmem:[%s3 + $0x1f4] sm:$0xf]
      %v2054 = vld [vmem:[%s3 + $0x1f8] sm:$0xf]
      %v2055 = vld [vmem:[%s3 + $0x1fc] sm:$0xf]
      %v2056 = vld [vmem:[%s3 + $0x200] sm:$0xf]
      %v2057 = vld [vmem:[%s3 + $0x204] sm:$0xf]
      %v2058 = vld [vmem:[%s3 + $0x208] sm:$0xf]
      %v2059 = vld [vmem:[%s3 + $0x20c] sm:$0xf]
      %v2060 = vld [vmem:[%s3 + $0x210] sm:$0xf]
      %v2061 = vld [vmem:[%s3 + $0x214] sm:$0xf]
      %v2062 = vld [vmem:[%s3 + $0x218] sm:$0xf]
      %v2063 = vld [vmem:[%s3 + $0x21c] sm:$0xf]
      %v2064 = vld [vmem:[%s3 + $0x220] sm:$0xf]
      %v2065 = vld [vmem:[%s3 + $0x224] sm:$0xf]
      %v2066 = vld [vmem:[%s3 + $0x228] sm:$0xf]
      %v2067 = vld [vmem:[%s3 + $0x22c] sm:$0xf]
      %v2068 = vld [vmem:[%s3 + $0x230] sm:$0xf]
      %v2069 = vld [vmem:[%s3 + $0x234] sm:$0xf]
      %v2070 = vld [vmem:[%s3 + $0x238] sm:$0xf]
      %v2071 = vld [vmem:[%s3 + $0x23c] sm:$0xf]
      %v2072 = vld [vmem:[%s4] sm:$0x1]
      %v2074 = vperm.slane %v2072, 0
      %v2116 = vunpack.c.l.b16 %v1888
      %v2117 = vunpack.c.h.b16 %v1888
      %v2118 = vunpack.c.l.b16 %v1889
      %v2119 = vunpack.c.h.b16 %v1889
      %v2120 = vunpack.c.l.b16 %v1890
      %v2121 = vunpack.c.h.b16 %v1890
      %v2122 = vunpack.c.l.b16 %v1891
      %v2123 = vunpack.c.h.b16 %v1891
      %v2124 = vunpack.c.l.b16 %v1892
      %v2125 = vunpack.c.l.b16 %v1893
      %v2126 = vunpack.c.h.b16 %v1893
      %v2127 = vunpack.c.l.b16 %v1894
      %v2128 = vunpack.c.h.b16 %v1894
      %v2129 = vunpack.c.l.b16 %v1895
      %v2130 = vunpack.c.h.b16 %v1895
      %v2131 = vunpack.c.l.b16 %v1896
      %v2132 = vunpack.c.h.b16 %v1896
      %v2133 = vunpack.c.l.b16 %v1897
      %v2134 = vunpack.c.l.b16 %v1898
      %v2135 = vunpack.c.h.b16 %v1898
      %v2136 = vunpack.c.l.b16 %v1899
      %v2137 = vunpack.c.h.b16 %v1899
      %v2138 = vunpack.c.l.b16 %v1900
      %v2139 = vunpack.c.h.b16 %v1900
      %v2140 = vunpack.c.l.b16 %v1901
      %v2141 = vunpack.c.h.b16 %v1901
      %v2142 = vunpack.c.l.b16 %v1902
      %v2143 = vunpack.c.l.b16 %v1903
      %v2144 = vunpack.c.h.b16 %v1903
      %v2145 = vunpack.c.l.b16 %v1904
      %v2146 = vunpack.c.h.b16 %v1904
      %v2147 = vunpack.c.l.b16 %v1905
      %v2148 = vunpack.c.h.b16 %v1905
      %v2149 = vunpack.c.l.b16 %v1906
      %v2150 = vunpack.c.h.b16 %v1906
      %v2151 = vunpack.c.l.b16 %v1907
      %v2152 = vunpack.c.l.b16 %v1908
      %v2153 = vunpack.c.h.b16 %v1908
      %v2154 = vunpack.c.l.b16 %v1909
      %v2155 = vunpack.c.h.b16 %v1909
      %v2156 = vunpack.c.l.b16 %v1910
      %v2157 = vunpack.c.h.b16 %v1910
      %v2158 = vunpack.c.l.b16 %v1911
      %v2159 = vunpack.c.h.b16 %v1911
      %v2160 = vunpack.c.l.b16 %v1912
      %v2161 = vunpack.c.l.b16 %v1913
      %v2162 = vunpack.c.h.b16 %v1913
      %v2163 = vunpack.c.l.b16 %v1914
      %v2164 = vunpack.c.h.b16 %v1914
      %v2165 = vunpack.c.l.b16 %v1915
      %v2166 = vunpack.c.h.b16 %v1915
      %v2167 = vunpack.c.l.b16 %v1916
      %v2168 = vunpack.c.h.b16 %v1916
      %v2169 = vunpack.c.l.b16 %v1917
      %v2170 = vunpack.c.l.b16 %v1918
      %v2171 = vunpack.c.h.b16 %v1918
      %v2172 = vunpack.c.l.b16 %v1919
      %v2173 = vunpack.c.h.b16 %v1919
      %v2174 = vunpack.c.l.b16 %v1920
      %v2175 = vunpack.c.h.b16 %v1920
      %v2176 = vunpack.c.l.b16 %v1921
      %v2177 = vunpack.c.h.b16 %v1921
      %v2178 = vunpack.c.l.b16 %v1922
      %v2179 = vunpack.c.l.b16 %v1923
      %v2180 = vunpack.c.h.b16 %v1923
      %v2181 = vunpack.c.l.b16 %v1924
      %v2182 = vunpack.c.h.b16 %v1924
      %v2183 = vunpack.c.l.b16 %v1925
      %v2184 = vunpack.c.h.b16 %v1925
      %v2185 = vunpack.c.l.b16 %v1926
      %v2186 = vunpack.c.h.b16 %v1926
      %v2187 = vunpack.c.l.b16 %v1927
      %v2188 = vpack.c.b16 %v2125, %v2116
      %v2189 = vpack.c.b16 %v2126, %v2117
      %v2190 = vpack.c.b16 %v2127, %v2118
      %v2191 = vpack.c.b16 %v2128, %v2119
      %v2192 = vpack.c.b16 %v2129, %v2120
      %v2193 = vpack.c.b16 %v2130, %v2121
      %v2194 = vpack.c.b16 %v2131, %v2122
      %v2195 = vpack.c.b16 %v2132, %v2123
      %v2196 = vpack.c.b16 %v2133, %v2124
      %v2197 = vpack.c.b16 %v2143, %v2134
      %v2198 = vpack.c.b16 %v2144, %v2135
      %v2199 = vpack.c.b16 %v2145, %v2136
      %v2200 = vpack.c.b16 %v2146, %v2137
      %v2201 = vpack.c.b16 %v2147, %v2138
      %v2202 = vpack.c.b16 %v2148, %v2139
      %v2203 = vpack.c.b16 %v2149, %v2140
      %v2204 = vpack.c.b16 %v2150, %v2141
      %v2205 = vpack.c.b16 %v2151, %v2142
      %v2206 = vpack.c.b16 %v2161, %v2152
      %v2207 = vpack.c.b16 %v2162, %v2153
      %v2208 = vpack.c.b16 %v2163, %v2154
      %v2209 = vpack.c.b16 %v2164, %v2155
      %v2210 = vpack.c.b16 %v2165, %v2156
      %v2211 = vpack.c.b16 %v2166, %v2157
      %v2212 = vpack.c.b16 %v2167, %v2158
      %v2213 = vpack.c.b16 %v2168, %v2159
      %v2214 = vpack.c.b16 %v2169, %v2160
      %v2215 = vpack.c.b16 %v2179, %v2170
      %v2216 = vpack.c.b16 %v2180, %v2171
      %v2217 = vpack.c.b16 %v2181, %v2172
      %v2218 = vpack.c.b16 %v2182, %v2173
      %v2219 = vpack.c.b16 %v2183, %v2174
      %v2220 = vpack.c.b16 %v2184, %v2175
      %v2221 = vpack.c.b16 %v2185, %v2176
      %v2222 = vpack.c.b16 %v2186, %v2177
      %v2223 = vpack.c.b16 %v2187, %v2178
      %v2404 = vunpack.c.l.b16 %v1928
      %v2405 = vunpack.c.l.b16 %v1929
      %v2406 = vunpack.c.l.b16 %v1930
      %v2407 = vunpack.c.l.b16 %v1931
      %v2408 = vunpack.c.l.b16 %v1932
      %v2409 = vunpack.c.l.b16 %v1933
      %v2410 = vunpack.c.l.b16 %v1934
      %v2411 = vunpack.c.l.b16 %v1935
      %v2412 = vunpack.c.l.b16 %v1936
      %v2413 = vunpack.c.l.b16 %v1937
      %v2414 = vunpack.c.l.b16 %v1938
      %v2415 = vunpack.c.l.b16 %v1939
      %v2416 = vunpack.c.l.b16 %v1940
      %v2417 = vunpack.c.l.b16 %v1941
      %v2418 = vunpack.c.l.b16 %v1942
      %v2419 = vunpack.c.l.b16 %v1943
      %v2420 = vunpack.c.l.b16 %v1944
      %v2421 = vunpack.c.l.b16 %v1945
      %v2422 = vunpack.c.l.b16 %v1946
      %v2423 = vunpack.c.l.b16 %v1947
      %v2424 = vunpack.c.l.b16 %v1948
      %v2425 = vunpack.c.l.b16 %v1949
      %v2426 = vunpack.c.l.b16 %v1950
      %v2427 = vunpack.c.l.b16 %v1951
      %v2428 = vunpack.c.l.b16 %v1952
      %v2429 = vunpack.c.l.b16 %v1953
      %v2430 = vunpack.c.l.b16 %v1954
      %v2431 = vunpack.c.l.b16 %v1955
      %v2432 = vunpack.c.l.b16 %v1956
      %v2433 = vunpack.c.l.b16 %v1957
      %v2434 = vunpack.c.l.b16 %v1958
      %v2435 = vunpack.c.l.b16 %v1959
      %v2436 = vunpack.c.l.b16 %v1960
      %v2437 = vunpack.c.l.b16 %v1961
      %v2438 = vunpack.c.l.b16 %v1962
      %v2439 = vunpack.c.l.b16 %v1963
      %v2440 = vunpack.c.l.b16 %v1964
      %v2441 = vunpack.c.l.b16 %v1965
      %v2442 = vunpack.c.l.b16 %v1966
      %v2443 = vunpack.c.l.b16 %v1967
      %v2444 = vunpack.c.l.b16 %v1968
      %v2445 = vunpack.c.l.b16 %v1969
      %v2446 = vunpack.c.l.b16 %v1970
      %v2447 = vunpack.c.l.b16 %v1971
      %v2448 = vunpack.c.l.b16 %v1972
      %v2449 = vunpack.c.l.b16 %v1973
      %v2450 = vunpack.c.l.b16 %v1974
      %v2451 = vunpack.c.l.b16 %v1975
      %v2452 = vunpack.c.l.b16 %v1976
      %v2453 = vunpack.c.l.b16 %v1977
      %v2454 = vunpack.c.l.b16 %v1978
      %v2455 = vunpack.c.l.b16 %v1979
      %v2456 = vunpack.c.l.b16 %v1980
      %v2457 = vunpack.c.l.b16 %v1981
      %v2458 = vunpack.c.l.b16 %v1982
      %v2459 = vunpack.c.l.b16 %v1983
      %v2460 = vunpack.c.l.b16 %v1984
      %v2461 = vunpack.c.l.b16 %v1985
      %v2462 = vunpack.c.l.b16 %v1986
      %v2463 = vunpack.c.l.b16 %v1987
      %v2464 = vunpack.c.l.b16 %v1988
      %v2465 = vunpack.c.l.b16 %v1989
      %v2466 = vunpack.c.l.b16 %v1990
      %v2467 = vunpack.c.l.b16 %v1991
      %v2468 = vunpack.c.l.b16 %v1992
      %v2469 = vunpack.c.l.b16 %v1993
      %v2470 = vunpack.c.l.b16 %v1994
      %v2471 = vunpack.c.l.b16 %v1995
      %v2472 = vunpack.c.l.b16 %v1996
      %v2473 = vunpack.c.l.b16 %v1997
      %v2474 = vunpack.c.l.b16 %v1998
      %v2475 = vunpack.c.l.b16 %v1999
      %v2476 = vunpack.c.l.b16 %v2000
      %v2477 = vunpack.c.l.b16 %v2001
      %v2478 = vunpack.c.l.b16 %v2002
      %v2479 = vunpack.c.l.b16 %v2003
      %v2480 = vunpack.c.l.b16 %v2004
      %v2481 = vunpack.c.l.b16 %v2005
      %v2482 = vunpack.c.l.b16 %v2006
      %v2483 = vunpack.c.l.b16 %v2007
      %v2484 = vunpack.c.l.b16 %v2008
      %v2485 = vunpack.c.l.b16 %v2009
      %v2486 = vunpack.c.l.b16 %v2010
      %v2487 = vunpack.c.l.b16 %v2011
      %v2488 = vunpack.c.l.b16 %v2012
      %v2489 = vunpack.c.l.b16 %v2013
      %v2490 = vunpack.c.l.b16 %v2014
      %v2491 = vunpack.c.l.b16 %v2015
      %v2492 = vunpack.c.l.b16 %v2016
      %v2493 = vunpack.c.l.b16 %v2017
      %v2494 = vunpack.c.l.b16 %v2018
      %v2495 = vunpack.c.l.b16 %v2019
      %v2496 = vunpack.c.l.b16 %v2020
      %v2497 = vunpack.c.l.b16 %v2021
      %v2498 = vunpack.c.l.b16 %v2022
      %v2499 = vunpack.c.l.b16 %v2023
      %v2500 = vunpack.c.l.b16 %v2024
      %v2501 = vunpack.c.l.b16 %v2025
      %v2502 = vunpack.c.l.b16 %v2026
      %v2503 = vunpack.c.l.b16 %v2027
      %v2504 = vunpack.c.l.b16 %v2028
      %v2505 = vunpack.c.l.b16 %v2029
      %v2506 = vunpack.c.l.b16 %v2030
      %v2507 = vunpack.c.l.b16 %v2031
      %v2508 = vunpack.c.l.b16 %v2032
      %v2509 = vunpack.c.l.b16 %v2033
      %v2510 = vunpack.c.l.b16 %v2034
      %v2511 = vunpack.c.l.b16 %v2035
      %v2512 = vunpack.c.l.b16 %v2036
      %v2513 = vunpack.c.l.b16 %v2037
      %v2514 = vunpack.c.l.b16 %v2038
      %v2515 = vunpack.c.l.b16 %v2039
      %v2516 = vunpack.c.l.b16 %v2040
      %v2517 = vunpack.c.l.b16 %v2041
      %v2518 = vunpack.c.l.b16 %v2042
      %v2519 = vunpack.c.l.b16 %v2043
      %v2520 = vunpack.c.l.b16 %v2044
      %v2521 = vunpack.c.l.b16 %v2045
      %v2522 = vunpack.c.l.b16 %v2046
      %v2523 = vunpack.c.l.b16 %v2047
      %v2524 = vunpack.c.l.b16 %v2048
      %v2525 = vunpack.c.l.b16 %v2049
      %v2526 = vunpack.c.l.b16 %v2050
      %v2527 = vunpack.c.l.b16 %v2051
      %v2528 = vunpack.c.l.b16 %v2052
      %v2529 = vunpack.c.l.b16 %v2053
      %v2530 = vunpack.c.l.b16 %v2054
      %v2531 = vunpack.c.l.b16 %v2055
      %v2532 = vunpack.c.l.b16 %v2056
      %v2533 = vunpack.c.l.b16 %v2057
      %v2534 = vunpack.c.l.b16 %v2058
      %v2535 = vunpack.c.l.b16 %v2059
      %v2536 = vunpack.c.l.b16 %v2060
      %v2537 = vunpack.c.l.b16 %v2061
      %v2538 = vunpack.c.l.b16 %v2062
      %v2539 = vunpack.c.l.b16 %v2063
      %v2540 = vunpack.c.l.b16 %v2064
      %v2541 = vunpack.c.l.b16 %v2065
      %v2542 = vunpack.c.l.b16 %v2066
      %v2543 = vunpack.c.l.b16 %v2067
      %v2544 = vunpack.c.l.b16 %v2068
      %v2545 = vunpack.c.l.b16 %v2069
      %v2546 = vunpack.c.l.b16 %v2070
      %v2547 = vunpack.c.l.b16 %v2071
      %v2548 = vpack.c.b16 %v2405, %v2404
      %v2549 = vpack.c.b16 %v2407, %v2406
      %v2550 = vpack.c.b16 %v2409, %v2408
      %v2551 = vpack.c.b16 %v2411, %v2410
      %v2552 = vpack.c.b16 %v2413, %v2412
      %v2553 = vpack.c.b16 %v2415, %v2414
      %v2554 = vpack.c.b16 %v2417, %v2416
      %v2555 = vpack.c.b16 %v2419, %v2418
      %v2556 = vpack.c.b16 %v2421, %v2420
      %v2557 = vpack.c.b16 %v2423, %v2422
      %v2558 = vpack.c.b16 %v2425, %v2424
      %v2559 = vpack.c.b16 %v2427, %v2426
      %v2560 = vpack.c.b16 %v2429, %v2428
      %v2561 = vpack.c.b16 %v2431, %v2430
      %v2562 = vpack.c.b16 %v2433, %v2432
      %v2563 = vpack.c.b16 %v2435, %v2434
      %v2564 = vpack.c.b16 %v2437, %v2436
      %v2565 = vpack.c.b16 %v2439, %v2438
      %v2566 = vpack.c.b16 %v2441, %v2440
      %v2567 = vpack.c.b16 %v2443, %v2442
      %v2568 = vpack.c.b16 %v2445, %v2444
      %v2569 = vpack.c.b16 %v2447, %v2446
      %v2570 = vpack.c.b16 %v2449, %v2448
      %v2571 = vpack.c.b16 %v2451, %v2450
      %v2572 = vpack.c.b16 %v2453, %v2452
      %v2573 = vpack.c.b16 %v2455, %v2454
      %v2574 = vpack.c.b16 %v2457, %v2456
      %v2575 = vpack.c.b16 %v2459, %v2458
      %v2576 = vpack.c.b16 %v2461, %v2460
      %v2577 = vpack.c.b16 %v2463, %v2462
      %v2578 = vpack.c.b16 %v2465, %v2464
      %v2579 = vpack.c.b16 %v2467, %v2466
      %v2580 = vpack.c.b16 %v2469, %v2468
      %v2581 = vpack.c.b16 %v2471, %v2470
      %v2582 = vpack.c.b16 %v2473, %v2472
      %v2583 = vpack.c.b16 %v2475, %v2474
      %v2584 = vpack.c.b16 %v2477, %v2476
      %v2585 = vpack.c.b16 %v2479, %v2478
      %v2586 = vpack.c.b16 %v2481, %v2480
      %v2587 = vpack.c.b16 %v2483, %v2482
      %v2588 = vpack.c.b16 %v2485, %v2484
      %v2589 = vpack.c.b16 %v2487, %v2486
      %v2590 = vpack.c.b16 %v2489, %v2488
      %v2591 = vpack.c.b16 %v2491, %v2490
      %v2592 = vpack.c.b16 %v2493, %v2492
      %v2593 = vpack.c.b16 %v2495, %v2494
      %v2594 = vpack.c.b16 %v2497, %v2496
      %v2595 = vpack.c.b16 %v2499, %v2498
      %v2596 = vpack.c.b16 %v2501, %v2500
      %v2597 = vpack.c.b16 %v2503, %v2502
      %v2598 = vpack.c.b16 %v2505, %v2504
      %v2599 = vpack.c.b16 %v2507, %v2506
      %v2600 = vpack.c.b16 %v2509, %v2508
      %v2601 = vpack.c.b16 %v2511, %v2510
      %v2602 = vpack.c.b16 %v2513, %v2512
      %v2603 = vpack.c.b16 %v2515, %v2514
      %v2604 = vpack.c.b16 %v2517, %v2516
      %v2605 = vpack.c.b16 %v2519, %v2518
      %v2606 = vpack.c.b16 %v2521, %v2520
      %v2607 = vpack.c.b16 %v2523, %v2522
      %v2608 = vpack.c.b16 %v2525, %v2524
      %v2609 = vpack.c.b16 %v2527, %v2526
      %v2610 = vpack.c.b16 %v2529, %v2528
      %v2611 = vpack.c.b16 %v2531, %v2530
      %v2612 = vpack.c.b16 %v2533, %v2532
      %v2613 = vpack.c.b16 %v2535, %v2534
      %v2614 = vpack.c.b16 %v2537, %v2536
      %v2615 = vpack.c.b16 %v2539, %v2538
      %v2616 = vpack.c.b16 %v2541, %v2540
      %v2617 = vpack.c.b16 %v2543, %v2542
      %v2618 = vpack.c.b16 %v2545, %v2544
      %v2619 = vpack.c.b16 %v2547, %v2546
      %2692 = vmatpush.bf16.msra.mxu0 %v2555
      %2693 = vmatpush.bf16.msra.mxu0 %v2554
      %2694 = vmatpush.bf16.msra.mxu0 %v2553
      %2695 = vmatpush.bf16.msra.mxu0 %v2552
      %2696 = vmatpush.bf16.msra.mxu0 %v2551
      %2697 = vmatpush.bf16.msra.mxu0 %v2550
      %2698 = vmatpush.bf16.msra.mxu0 %v2549
      %2699 = vmatpush.bf16.msra.mxu0 %v2548
      %2700 = vmatmul.bf16.gmra.mxu0 %v2188
      %v2701 = vpop.f32.mrf.mxu0
      %v2702 = vadd.f32 %v2074, %v2701
      %v2703 = vpop.f32.mrf.mxu0
      %v2704 = vadd.f32 %v2074, %v2703
      %2705 = vmatmul.bf16.gmra.mxu0 %v2197
      %v2706 = vpop.f32.mrf.mxu0
      %v2707 = vadd.f32 %v2074, %v2706
      %v2708 = vpop.f32.mrf.mxu0
      %v2709 = vadd.f32 %v2074, %v2708
      %2710 = vmatmul.bf16.gmra.mxu0 %v2206
      %v2711 = vpop.f32.mrf.mxu0
      %v2712 = vadd.f32 %v2074, %v2711
      %v2713 = vpop.f32.mrf.mxu0
      %v2714 = vadd.f32 %v2074, %v2713
      %2715 = vmatmul.bf16.gmra.mxu0 %v2215
      %v2716 = vpop.f32.mrf.mxu0
      %v2717 = vadd.f32 %v2074, %v2716
      %v2718 = vpop.f32.mrf.mxu0
      %v2719 = vadd.f32 %v2074, %v2718
      %2720 = vdwg.mxu0
      %2721 = vmatpush.bf16.msra.mxu0 %v2563
      %2722 = vmatpush.bf16.msra.mxu0 %v2562
      %2723 = vmatpush.bf16.msra.mxu0 %v2561
      %2724 = vmatpush.bf16.msra.mxu0 %v2560
      %2725 = vmatpush.bf16.msra.mxu0 %v2559
      %2726 = vmatpush.bf16.msra.mxu0 %v2558
      %2727 = vmatpush.bf16.msra.mxu0 %v2557
      %2728 = vmatpush.bf16.msra.mxu0 %v2556
      %2729 = vmatmul.bf16.gmra.mxu0 %v2189
      %v2730 = vpop.f32.mrf.mxu0
      %v2731 = vadd.f32 %v2702, %v2730
      %v2732 = vpop.f32.mrf.mxu0
      %v2733 = vadd.f32 %v2704, %v2732
      %2734 = vmatmul.bf16.gmra.mxu0 %v2198
      %v2735 = vpop.f32.mrf.mxu0
      %v2736 = vadd.f32 %v2707, %v2735
      %v2737 = vpop.f32.mrf.mxu0
      %v2738 = vadd.f32 %v2709, %v2737
      %2739 = vmatmul.bf16.gmra.mxu0 %v2207
      %v2740 = vpop.f32.mrf.mxu0
      %v2741 = vadd.f32 %v2712, %v2740
      %v2742 = vpop.f32.mrf.mxu0
      %v2743 = vadd.f32 %v2714, %v2742
      %2744 = vmatmul.bf16.gmra.mxu0 %v2216
      %v2745 = vpop.f32.mrf.mxu0
      %v2746 = vadd.f32 %v2717, %v2745
      %v2747 = vpop.f32.mrf.mxu0
      %v2748 = vadd.f32 %v2719, %v2747
      %2749 = vdwg.mxu0
      %2750 = vmatpush.bf16.msra.mxu0 %v2571
      %2751 = vmatpush.bf16.msra.mxu0 %v2570
      %2752 = vmatpush.bf16.msra.mxu0 %v2569
      %2753 = vmatpush.bf16.msra.mxu0 %v2568
      %2754 = vmatpush.bf16.msra.mxu0 %v2567
      %2755 = vmatpush.bf16.msra.mxu0 %v2566
      %2756 = vmatpush.bf16.msra.mxu0 %v2565
      %2757 = vmatpush.bf16.msra.mxu0 %v2564
      %2758 = vmatmul.bf16.gmra.mxu0 %v2190
      %v2759 = vpop.f32.mrf.mxu0
      %v2760 = vadd.f32 %v2731, %v2759
      %v2761 = vpop.f32.mrf.mxu0
      %v2762 = vadd.f32 %v2733, %v2761
      %2763 = vmatmul.bf16.gmra.mxu0 %v2199
      %v2764 = vpop.f32.mrf.mxu0
      %v2765 = vadd.f32 %v2736, %v2764
      %v2766 = vpop.f32.mrf.mxu0
      %v2767 = vadd.f32 %v2738, %v2766
      %2768 = vmatmul.bf16.gmra.mxu0 %v2208
      %v2769 = vpop.f32.mrf.mxu0
      %v2770 = vadd.f32 %v2741, %v2769
      %v2771 = vpop.f32.mrf.mxu0
      %v2772 = vadd.f32 %v2743, %v2771
      %2773 = vmatmul.bf16.gmra.mxu0 %v2217
      %v2774 = vpop.f32.mrf.mxu0
      %v2775 = vadd.f32 %v2746, %v2774
      %v2776 = vpop.f32.mrf.mxu0
      %v2777 = vadd.f32 %v2748, %v2776
      %2778 = vdwg.mxu0
      %2779 = vmatpush.bf16.msra.mxu0 %v2579
      %2780 = vmatpush.bf16.msra.mxu0 %v2578
      %2781 = vmatpush.bf16.msra.mxu0 %v2577
      %2782 = vmatpush.bf16.msra.mxu0 %v2576
      %2783 = vmatpush.bf16.msra.mxu0 %v2575
      %2784 = vmatpush.bf16.msra.mxu0 %v2574
      %2785 = vmatpush.bf16.msra.mxu0 %v2573
      %2786 = vmatpush.bf16.msra.mxu0 %v2572
      %2787 = vmatmul.bf16.gmra.mxu0 %v2191
      %v2788 = vpop.f32.mrf.mxu0
      %v2789 = vadd.f32 %v2760, %v2788
      %v2790 = vpop.f32.mrf.mxu0
      %v2791 = vadd.f32 %v2762, %v2790
      %2792 = vmatmul.bf16.gmra.mxu0 %v2200
      %v2793 = vpop.f32.mrf.mxu0
      %v2794 = vadd.f32 %v2765, %v2793
      %v2795 = vpop.f32.mrf.mxu0
      %v2796 = vadd.f32 %v2767, %v2795
      %2797 = vmatmul.bf16.gmra.mxu0 %v2209
      %v2798 = vpop.f32.mrf.mxu0
      %v2799 = vadd.f32 %v2770, %v2798
      %v2800 = vpop.f32.mrf.mxu0
      %v2801 = vadd.f32 %v2772, %v2800
      %2802 = vmatmul.bf16.gmra.mxu0 %v2218
      %v2803 = vpop.f32.mrf.mxu0
      %v2804 = vadd.f32 %v2775, %v2803
      %v2805 = vpop.f32.mrf.mxu0
      %v2806 = vadd.f32 %v2777, %v2805
      %2807 = vdwg.mxu0
      %2808 = vmatpush.bf16.msra.mxu0 %v2587
      %2809 = vmatpush.bf16.msra.mxu0 %v2586
      %2810 = vmatpush.bf16.msra.mxu0 %v2585
      %2811 = vmatpush.bf16.msra.mxu0 %v2584
      %2812 = vmatpush.bf16.msra.mxu0 %v2583
      %2813 = vmatpush.bf16.msra.mxu0 %v2582
      %2814 = vmatpush.bf16.msra.mxu0 %v2581
      %2815 = vmatpush.bf16.msra.mxu0 %v2580
      %2816 = vmatmul.bf16.gmra.mxu0 %v2192
      %v2817 = vpop.f32.mrf.mxu0
      %v2818 = vadd.f32 %v2789, %v2817
      %v2819 = vpop.f32.mrf.mxu0
      %v2820 = vadd.f32 %v2791, %v2819
      %2821 = vmatmul.bf16.gmra.mxu0 %v2201
      %v2822 = vpop.f32.mrf.mxu0
      %v2823 = vadd.f32 %v2794, %v2822
      %v2824 = vpop.f32.mrf.mxu0
      %v2825 = vadd.f32 %v2796, %v2824
      %2826 = vmatmul.bf16.gmra.mxu0 %v2210
      %v2827 = vpop.f32.mrf.mxu0
      %v2828 = vadd.f32 %v2799, %v2827
      %v2829 = vpop.f32.mrf.mxu0
      %v2830 = vadd.f32 %v2801, %v2829
      %2831 = vmatmul.bf16.gmra.mxu0 %v2219
      %v2832 = vpop.f32.mrf.mxu0
      %v2833 = vadd.f32 %v2804, %v2832
      %v2834 = vpop.f32.mrf.mxu0
      %v2835 = vadd.f32 %v2806, %v2834
      %2836 = vdwg.mxu0
      %2837 = vmatpush.bf16.msra.mxu0 %v2595
      %2838 = vmatpush.bf16.msra.mxu0 %v2594
      %2839 = vmatpush.bf16.msra.mxu0 %v2593
      %2840 = vmatpush.bf16.msra.mxu0 %v2592
      %2841 = vmatpush.bf16.msra.mxu0 %v2591
      %2842 = vmatpush.bf16.msra.mxu0 %v2590
      %2843 = vmatpush.bf16.msra.mxu0 %v2589
      %2844 = vmatpush.bf16.msra.mxu0 %v2588
      %2845 = vmatmul.bf16.gmra.mxu0 %v2193
      %v2846 = vpop.f32.mrf.mxu0
      %v2847 = vadd.f32 %v2818, %v2846
      %v2848 = vpop.f32.mrf.mxu0
      %v2849 = vadd.f32 %v2820, %v2848
      %2850 = vmatmul.bf16.gmra.mxu0 %v2202
      %v2851 = vpop.f32.mrf.mxu0
      %v2852 = vadd.f32 %v2823, %v2851
      %v2853 = vpop.f32.mrf.mxu0
      %v2854 = vadd.f32 %v2825, %v2853
      %2855 = vmatmul.bf16.gmra.mxu0 %v2211
      %v2856 = vpop.f32.mrf.mxu0
      %v2857 = vadd.f32 %v2828, %v2856
      %v2858 = vpop.f32.mrf.mxu0
      %v2859 = vadd.f32 %v2830, %v2858
      %2860 = vmatmul.bf16.gmra.mxu0 %v2220
      %v2861 = vpop.f32.mrf.mxu0
      %v2862 = vadd.f32 %v2833, %v2861
      %v2863 = vpop.f32.mrf.mxu0
      %v2864 = vadd.f32 %v2835, %v2863
      %2865 = vdwg.mxu0
      %2866 = vmatpush.bf16.msra.mxu0 %v2603
      %2867 = vmatpush.bf16.msra.mxu0 %v2602
      %2868 = vmatpush.bf16.msra.mxu0 %v2601
      %2869 = vmatpush.bf16.msra.mxu0 %v2600
      %2870 = vmatpush.bf16.msra.mxu0 %v2599
      %2871 = vmatpush.bf16.msra.mxu0 %v2598
      %2872 = vmatpush.bf16.msra.mxu0 %v2597
      %2873 = vmatpush.bf16.msra.mxu0 %v2596
      %2874 = vmatmul.bf16.gmra.mxu0 %v2194
      %v2875 = vpop.f32.mrf.mxu0
      %v2876 = vadd.f32 %v2847, %v2875
      %v2877 = vpop.f32.mrf.mxu0
      %v2878 = vadd.f32 %v2849, %v2877
      %2879 = vmatmul.bf16.gmra.mxu0 %v2203
      %v2880 = vpop.f32.mrf.mxu0
      %v2881 = vadd.f32 %v2852, %v2880
      %v2882 = vpop.f32.mrf.mxu0
      %v2883 = vadd.f32 %v2854, %v2882
      %2884 = vmatmul.bf16.gmra.mxu0 %v2212
      %v2885 = vpop.f32.mrf.mxu0
      %v2886 = vadd.f32 %v2857, %v2885
      %v2887 = vpop.f32.mrf.mxu0
      %v2888 = vadd.f32 %v2859, %v2887
      %2889 = vmatmul.bf16.gmra.mxu0 %v2221
      %v2890 = vpop.f32.mrf.mxu0
      %v2891 = vadd.f32 %v2862, %v2890
      %v2892 = vpop.f32.mrf.mxu0
      %v2893 = vadd.f32 %v2864, %v2892
      %2894 = vdwg.mxu0
      %2895 = vmatpush.bf16.msra.mxu0 %v2611
      %2896 = vmatpush.bf16.msra.mxu0 %v2610
      %2897 = vmatpush.bf16.msra.mxu0 %v2609
      %2898 = vmatpush.bf16.msra.mxu0 %v2608
      %2899 = vmatpush.bf16.msra.mxu0 %v2607
      %2900 = vmatpush.bf16.msra.mxu0 %v2606
      %2901 = vmatpush.bf16.msra.mxu0 %v2605
      %2902 = vmatpush.bf16.msra.mxu0 %v2604
      %2903 = vmatmul.bf16.gmra.mxu0 %v2195
      %v2904 = vpop.f32.mrf.mxu0
      %v2905 = vadd.f32 %v2876, %v2904
      %v2906 = vpop.f32.mrf.mxu0
      %v2907 = vadd.f32 %v2878, %v2906
      %2908 = vmatmul.bf16.gmra.mxu0 %v2204
      %v2909 = vpop.f32.mrf.mxu0
      %v2910 = vadd.f32 %v2881, %v2909
      %v2911 = vpop.f32.mrf.mxu0
      %v2912 = vadd.f32 %v2883, %v2911
      %2913 = vmatmul.bf16.gmra.mxu0 %v2213
      %v2914 = vpop.f32.mrf.mxu0
      %v2915 = vadd.f32 %v2886, %v2914
      %v2916 = vpop.f32.mrf.mxu0
      %v2917 = vadd.f32 %v2888, %v2916
      %2918 = vmatmul.bf16.gmra.mxu0 %v2222
      %v2919 = vpop.f32.mrf.mxu0
      %v2920 = vadd.f32 %v2891, %v2919
      %v2921 = vpop.f32.mrf.mxu0
      %v2922 = vadd.f32 %v2893, %v2921
      %2923 = vdwg.mxu0
      %2924 = vmatpush.bf16.msra.mxu0 %v2619
      %2925 = vmatpush.bf16.msra.mxu0 %v2618
      %2926 = vmatpush.bf16.msra.mxu0 %v2617
      %2927 = vmatpush.bf16.msra.mxu0 %v2616
      %2928 = vmatpush.bf16.msra.mxu0 %v2615
      %2929 = vmatpush.bf16.msra.mxu0 %v2614
      %2930 = vmatpush.bf16.msra.mxu0 %v2613
      %2931 = vmatpush.bf16.msra.mxu0 %v2612
      %2932 = vmatmul.bf16.gmra.mxu0 %v2196
      %v2933 = vpop.f32.mrf.mxu0
      %v2934 = vadd.f32 %v2905, %v2933
      %v2935 = vpop.f32.mrf.mxu0
      %v2936 = vadd.f32 %v2907, %v2935
      %2937 = vmatmul.bf16.gmra.mxu0 %v2205
      %v2938 = vpop.f32.mrf.mxu0
      %v2939 = vadd.f32 %v2910, %v2938
      %v2940 = vpop.f32.mrf.mxu0
      %v2941 = vadd.f32 %v2912, %v2940
      %2942 = vmatmul.bf16.gmra.mxu0 %v2214
      %v2943 = vpop.f32.mrf.mxu0
      %v2944 = vadd.f32 %v2915, %v2943
      %v2945 = vpop.f32.mrf.mxu0
      %v2946 = vadd.f32 %v2917, %v2945
      %2947 = vmatmul.bf16.gmra.mxu0 %v2223
      %v2948 = vpop.f32.mrf.mxu0
      %v2949 = vadd.f32 %v2920, %v2948
      %v2950 = vpop.f32.mrf.mxu0
      %v2951 = vadd.f32 %v2922, %v2950
      %2952 = vdwg.mxu0
      %v2953 = vmax.f32 %v2934, 0.0
      %v2954 = vmax.f32 %v2936, 0.0
      %v2955 = vmax.f32 %v2939, 0.0
      %v2956 = vmax.f32 %v2941, 0.0
      %v2957 = vmax.f32 %v2944, 0.0
      %v2958 = vmax.f32 %v2946, 0.0
      %v2959 = vmax.f32 %v2949, 0.0
      %v2960 = vmax.f32 %v2951, 0.0
      %2961 = vst [vmem:[%s364 + $0x1] sm:$0xff] %v2953
      %2962 = vst [vmem:[%s364 + $0x11] sm:$0xff] %v2954
      %2963 = vst [vmem:[%s364 + $0x21] sm:$0xff] %v2955
      %2964 = vst [vmem:[%s364 + $0x31] sm:$0xff] %v2956
      %2965 = vst [vmem:[%s364 + $0x41] sm:$0xff] %v2957
      %2966 = vst [vmem:[%s364 + $0x51] sm:$0xff] %v2958
      %2967 = vst [vmem:[%s364 + $0x61] sm:$0xff] %v2959
      %2968 = vst [vmem:[%s364 + $0x71] sm:$0xff] %v2960
      %v2969 = vld [vmem:[#allocation2] sm:$0xff]
      %v2970 = vld [vmem:[#allocation2 + $0x10] sm:$0xff]
      %v2971 = vld [vmem:[#allocation2 + $0x20] sm:$0xff]
      %v2972 = vld [vmem:[#allocation2 + $0x30] sm:$0xff]
      %v2973 = vld [vmem:[#allocation2 + $0x40] sm:$0xff]
      %v2974 = vld [vmem:[#allocation2 + $0x50] sm:$0xff]
      %v2975 = vld [vmem:[#allocation2 + $0x60] sm:$0xff]
      %v2976 = vld [vmem:[#allocation2 + $0x70] sm:$0xff]
      %v2977 = vpack.c.bf16 %v2969, %v2969
      %v2978 = vpack.c.bf16 %v2970, %v2970
      %v2979 = vpack.c.bf16 %v2971, %v2971
      %v2980 = vpack.c.bf16 %v2972, %v2972
      %v2981 = vpack.c.bf16 %v2973, %v2973
      %v2982 = vpack.c.bf16 %v2974, %v2974
      %v2983 = vpack.c.bf16 %v2975, %v2975
      %v2984 = vpack.c.bf16 %v2976, %v2976
      %2985 = vst [vmem:[#allocation3] sm:$0xf] %v2977
      %2986 = vst [vmem:[#allocation3 + $0x24] sm:$0xf] %v2978
      %2987 = vst [vmem:[#allocation3 + $0x48] sm:$0xf] %v2979
      %2988 = vst [vmem:[#allocation3 + $0x6c] sm:$0xf] %v2980
      %2989 = vst [vmem:[#allocation3 + $0x90] sm:$0xf] %v2981
      %2990 = vst [vmem:[#allocation3 + $0xb4] sm:$0xf] %v2982
      %2991 = vst [vmem:[#allocation3 + $0xd8] sm:$0xf] %v2983
      %2992 = vst [vmem:[#allocation3 + $0xfc] sm:$0xf] %v2984
      %v2993 = vld [vmem:[#allocation2 + $0x1] sm:$0xff]
      %v2994 = vld [vmem:[#allocation2 + $0x11] sm:$0xff]
      %v2995 = vld [vmem:[#allocation2 + $0x21] sm:$0xff]
      %v2996 = vld [vmem:[#allocation2 + $0x31] sm:$0xff]
      %v2997 = vld [vmem:[#allocation2 + $0x41] sm:$0xff]
      %v2998 = vld [vmem:[#allocation2 + $0x51] sm:$0xff]
      %v2999 = vld [vmem:[#allocation2 + $0x61] sm:$0xff]
      %v3000 = vld [vmem:[#allocation2 + $0x71] sm:$0xff]
      %v3001 = vpack.c.bf16 %v2993, %v2993
      %v3002 = vpack.c.bf16 %v2994, %v2994
      %v3003 = vpack.c.bf16 %v2995, %v2995
      %v3004 = vpack.c.bf16 %v2996, %v2996
      %v3005 = vpack.c.bf16 %v2997, %v2997
      %v3006 = vpack.c.bf16 %v2998, %v2998
      %v3007 = vpack.c.bf16 %v2999, %v2999
      %v3008 = vpack.c.bf16 %v3000, %v3000
      %3009 = vst [vmem:[#allocation3 + $0x4] sm:$0xf] %v3001
      %3010 = vst [vmem:[#allocation3 + $0x28] sm:$0xf] %v3002
      %3011 = vst [vmem:[#allocation3 + $0x4c] sm:$0xf] %v3003
      %3012 = vst [vmem:[#allocation3 + $0x70] sm:$0xf] %v3004
      %3013 = vst [vmem:[#allocation3 + $0x94] sm:$0xf] %v3005
      %3014 = vst [vmem:[#allocation3 + $0xb8] sm:$0xf] %v3006
      %3015 = vst [vmem:[#allocation3 + $0xdc] sm:$0xf] %v3007
      %3016 = vst [vmem:[#allocation3 + $0x100] sm:$0xf] %v3008
      %v3017 = vld [vmem:[#allocation2 + $0x2] sm:$0xff]
      %v3018 = vld [vmem:[#allocation2 + $0x12] sm:$0xff]
      %v3019 = vld [vmem:[#allocation2 + $0x22] sm:$0xff]
      %v3020 = vld [vmem:[#allocation2 + $0x32] sm:$0xff]
      %v3021 = vld [vmem:[#allocation2 + $0x42] sm:$0xff]
      %v3022 = vld [vmem:[#allocation2 + $0x52] sm:$0xff]
      %v3023 = vld [vmem:[#allocation2 + $0x62] sm:$0xff]
      %v3024 = vld [vmem:[#allocation2 + $0x72] sm:$0xff]
      %v3025 = vpack.c.bf16 %v3017, %v3017
      %v3026 = vpack.c.bf16 %v3018, %v3018
      %v3027 = vpack.c.bf16 %v3019, %v3019
      %v3028 = vpack.c.bf16 %v3020, %v3020
      %v3029 = vpack.c.bf16 %v3021, %v3021
      %v3030 = vpack.c.bf16 %v3022, %v3022
      %v3031 = vpack.c.bf16 %v3023, %v3023
      %v3032 = vpack.c.bf16 %v3024, %v3024
      %3033 = vst [vmem:[#allocation3 + $0x8] sm:$0xf] %v3025
      %3034 = vst [vmem:[#allocation3 + $0x2c] sm:$0xf] %v3026
      %3035 = vst [vmem:[#allocation3 + $0x50] sm:$0xf] %v3027
      %3036 = vst [vmem:[#allocation3 + $0x74] sm:$0xf] %v3028
      %3037 = vst [vmem:[#allocation3 + $0x98] sm:$0xf] %v3029
      %3038 = vst [vmem:[#allocation3 + $0xbc] sm:$0xf] %v3030
      %3039 = vst [vmem:[#allocation3 + $0xe0] sm:$0xf] %v3031
      %3040 = vst [vmem:[#allocation3 + $0x104] sm:$0xf] %v3032
      %v3041 = vld [vmem:[%s364] sm:$0xff]
      %v3042 = vld [vmem:[%s364 + $0x10] sm:$0xff]
      %v3043 = vld [vmem:[%s364 + $0x20] sm:$0xff]
      %v3044 = vld [vmem:[%s364 + $0x30] sm:$0xff]
      %v3045 = vld [vmem:[%s364 + $0x40] sm:$0xff]
      %v3046 = vld [vmem:[%s364 + $0x50] sm:$0xff]
      %v3047 = vld [vmem:[%s364 + $0x60] sm:$0xff]
      %v3048 = vld [vmem:[%s364 + $0x70] sm:$0xff]
      %v3049 = vpack.c.bf16 %v3041, %v3041
      %v3050 = vpack.c.bf16 %v3042, %v3042
      %v3051 = vpack.c.bf16 %v3043, %v3043
      %v3052 = vpack.c.bf16 %v3044, %v3044
      %v3053 = vpack.c.bf16 %v3045, %v3045
      %v3054 = vpack.c.bf16 %v3046, %v3046
      %v3055 = vpack.c.bf16 %v3047, %v3047
      %v3056 = vpack.c.bf16 %v3048, %v3048
      %3057 = vst [vmem:[#allocation3 + $0xc] sm:$0xf] %v3049
      %3058 = vst [vmem:[#allocation3 + $0x30] sm:$0xf] %v3050
      %3059 = vst [vmem:[#allocation3 + $0x54] sm:$0xf] %v3051
      %3060 = vst [vmem:[#allocation3 + $0x78] sm:$0xf] %v3052
      %3061 = vst [vmem:[#allocation3 + $0x9c] sm:$0xf] %v3053
      %3062 = vst [vmem:[#allocation3 + $0xc0] sm:$0xf] %v3054
      %3063 = vst [vmem:[#allocation3 + $0xe4] sm:$0xf] %v3055
      %3064 = vst [vmem:[#allocation3 + $0x108] sm:$0xf] %v3056
      %v3065 = vld [vmem:[%s364 + $0x1] sm:$0xff]
      %v3066 = vld [vmem:[%s364 + $0x11] sm:$0xff]
      %v3067 = vld [vmem:[%s364 + $0x21] sm:$0xff]
      %v3068 = vld [vmem:[%s364 + $0x31] sm:$0xff]
      %v3069 = vld [vmem:[%s364 + $0x41] sm:$0xff]
      %v3070 = vld [vmem:[%s364 + $0x51] sm:$0xff]
      %v3071 = vld [vmem:[%s364 + $0x61] sm:$0xff]
      %v3072 = vld [vmem:[%s364 + $0x71] sm:$0xff]
      %v3073 = vpack.c.bf16 %v3065, %v3065
      %v3074 = vpack.c.bf16 %v3066, %v3066
      %v3075 = vpack.c.bf16 %v3067, %v3067
      %v3076 = vpack.c.bf16 %v3068, %v3068
      %v3077 = vpack.c.bf16 %v3069, %v3069
      %v3078 = vpack.c.bf16 %v3070, %v3070
      %v3079 = vpack.c.bf16 %v3071, %v3071
      %v3080 = vpack.c.bf16 %v3072, %v3072
      %3081 = vst [vmem:[#allocation3 + $0x10] sm:$0xf] %v3073
      %3082 = vst [vmem:[#allocation3 + $0x34] sm:$0xf] %v3074
      %3083 = vst [vmem:[#allocation3 + $0x58] sm:$0xf] %v3075
      %3084 = vst [vmem:[#allocation3 + $0x7c] sm:$0xf] %v3076
      %3085 = vst [vmem:[#allocation3 + $0xa0] sm:$0xf] %v3077
      %3086 = vst [vmem:[#allocation3 + $0xc4] sm:$0xf] %v3078
      %3087 = vst [vmem:[#allocation3 + $0xe8] sm:$0xf] %v3079
      %3088 = vst [vmem:[#allocation3 + $0x10c] sm:$0xf] %v3080
      %v3089 = vld [vmem:[%s364 + $0x2] sm:$0xff]
      %v3090 = vld [vmem:[%s364 + $0x12] sm:$0xff]
      %v3091 = vld [vmem:[%s364 + $0x22] sm:$0xff]
      %v3092 = vld [vmem:[%s364 + $0x32] sm:$0xff]
      %v3093 = vld [vmem:[%s364 + $0x42] sm:$0xff]
      %v3094 = vld [vmem:[%s364 + $0x52] sm:$0xff]
      %v3095 = vld [vmem:[%s364 + $0x62] sm:$0xff]
      %v3096 = vld [vmem:[%s364 + $0x72] sm:$0xff]
      %v3097 = vpack.c.bf16 %v3089, %v3089
      %v3098 = vpack.c.bf16 %v3090, %v3090
      %v3099 = vpack.c.bf16 %v3091, %v3091
      %v3100 = vpack.c.bf16 %v3092, %v3092
      %v3101 = vpack.c.bf16 %v3093, %v3093
      %v3102 = vpack.c.bf16 %v3094, %v3094
      %v3103 = vpack.c.bf16 %v3095, %v3095
      %v3104 = vpack.c.bf16 %v3096, %v3096
      %3105 = vst [vmem:[#allocation3 + $0x14] sm:$0xf] %v3097
      %3106 = vst [vmem:[#allocation3 + $0x38] sm:$0xf] %v3098
      %3107 = vst [vmem:[#allocation3 + $0x5c] sm:$0xf] %v3099
      %3108 = vst [vmem:[#allocation3 + $0x80] sm:$0xf] %v3100
      %3109 = vst [vmem:[#allocation3 + $0xa4] sm:$0xf] %v3101
      %3110 = vst [vmem:[#allocation3 + $0xc8] sm:$0xf] %v3102
      %3111 = vst [vmem:[#allocation3 + $0xec] sm:$0xf] %v3103
      %3112 = vst [vmem:[#allocation3 + $0x110] sm:$0xf] %v3104
      %v3113 = vld [vmem:[%s518] sm:$0xff]
      %v3114 = vld [vmem:[%s518 + $0x10] sm:$0xff]
      %v3115 = vld [vmem:[%s518 + $0x20] sm:$0xff]
      %v3116 = vld [vmem:[%s518 + $0x30] sm:$0xff]
      %v3117 = vld [vmem:[%s518 + $0x40] sm:$0xff]
      %v3118 = vld [vmem:[%s518 + $0x50] sm:$0xff]
      %v3119 = vld [vmem:[%s518 + $0x60] sm:$0xff]
      %v3120 = vld [vmem:[%s518 + $0x70] sm:$0xff]
      %v3121 = vpack.c.bf16 %v3113, %v3113
      %v3122 = vpack.c.bf16 %v3114, %v3114
      %v3123 = vpack.c.bf16 %v3115, %v3115
      %v3124 = vpack.c.bf16 %v3116, %v3116
      %v3125 = vpack.c.bf16 %v3117, %v3117
      %v3126 = vpack.c.bf16 %v3118, %v3118
      %v3127 = vpack.c.bf16 %v3119, %v3119
      %v3128 = vpack.c.bf16 %v3120, %v3120
      %3129 = vst [vmem:[#allocation3 + $0x18] sm:$0xf] %v3121
      %3130 = vst [vmem:[#allocation3 + $0x3c] sm:$0xf] %v3122
      %3131 = vst [vmem:[#allocation3 + $0x60] sm:$0xf] %v3123
      %3132 = vst [vmem:[#allocation3 + $0x84] sm:$0xf] %v3124
      %3133 = vst [vmem:[#allocation3 + $0xa8] sm:$0xf] %v3125
      %3134 = vst [vmem:[#allocation3 + $0xcc] sm:$0xf] %v3126
      %3135 = vst [vmem:[#allocation3 + $0xf0] sm:$0xf] %v3127
      %3136 = vst [vmem:[#allocation3 + $0x114] sm:$0xf] %v3128
      %v3137 = vld [vmem:[%s518 + $0x1] sm:$0xff]
      %v3138 = vld [vmem:[%s518 + $0x11] sm:$0xff]
      %v3139 = vld [vmem:[%s518 + $0x21] sm:$0xff]
      %v3140 = vld [vmem:[%s518 + $0x31] sm:$0xff]
      %v3141 = vld [vmem:[%s518 + $0x41] sm:$0xff]
      %v3142 = vld [vmem:[%s518 + $0x51] sm:$0xff]
      %v3143 = vld [vmem:[%s518 + $0x61] sm:$0xff]
      %v3144 = vld [vmem:[%s518 + $0x71] sm:$0xff]
      %v3145 = vpack.c.bf16 %v3137, %v3137
      %v3146 = vpack.c.bf16 %v3138, %v3138
      %v3147 = vpack.c.bf16 %v3139, %v3139
      %v3148 = vpack.c.bf16 %v3140, %v3140
      %v3149 = vpack.c.bf16 %v3141, %v3141
      %v3150 = vpack.c.bf16 %v3142, %v3142
      %v3151 = vpack.c.bf16 %v3143, %v3143
      %v3152 = vpack.c.bf16 %v3144, %v3144
      %3153 = vst [vmem:[#allocation3 + $0x1c] sm:$0xf] %v3145
      %3154 = vst [vmem:[#allocation3 + $0x40] sm:$0xf] %v3146
      %3155 = vst [vmem:[#allocation3 + $0x64] sm:$0xf] %v3147
      %3156 = vst [vmem:[#allocation3 + $0x88] sm:$0xf] %v3148
      %3157 = vst [vmem:[#allocation3 + $0xac] sm:$0xf] %v3149
      %3158 = vst [vmem:[#allocation3 + $0xd0] sm:$0xf] %v3150
      %3159 = vst [vmem:[#allocation3 + $0xf4] sm:$0xf] %v3151
      %3160 = vst [vmem:[#allocation3 + $0x118] sm:$0xf] %v3152
      %v3161 = vld [vmem:[%s518 + $0x2] sm:$0xff]
      %v3162 = vld [vmem:[%s518 + $0x12] sm:$0xff]
      %v3163 = vld [vmem:[%s518 + $0x22] sm:$0xff]
      %v3164 = vld [vmem:[%s518 + $0x32] sm:$0xff]
      %v3165 = vld [vmem:[%s518 + $0x42] sm:$0xff]
      %v3166 = vld [vmem:[%s518 + $0x52] sm:$0xff]
      %v3167 = vld [vmem:[%s518 + $0x62] sm:$0xff]
      %v3168 = vld [vmem:[%s518 + $0x72] sm:$0xff]
      %v3169 = vpack.c.bf16 %v3161, %v3161
      %v3170 = vpack.c.bf16 %v3162, %v3162
      %v3171 = vpack.c.bf16 %v3163, %v3163
      %v3172 = vpack.c.bf16 %v3164, %v3164
      %v3173 = vpack.c.bf16 %v3165, %v3165
      %v3174 = vpack.c.bf16 %v3166, %v3166
      %v3175 = vpack.c.bf16 %v3167, %v3167
      %v3176 = vpack.c.bf16 %v3168, %v3168
      %3177 = vst [vmem:[#allocation3 + $0x20] sm:$0xf] %v3169
      %3178 = vst [vmem:[#allocation3 + $0x44] sm:$0xf] %v3170
      %3179 = vst [vmem:[#allocation3 + $0x68] sm:$0xf] %v3171
      %3180 = vst [vmem:[#allocation3 + $0x8c] sm:$0xf] %v3172
      %3181 = vst [vmem:[#allocation3 + $0xb0] sm:$0xf] %v3173
      %3182 = vst [vmem:[#allocation3 + $0xd4] sm:$0xf] %v3174
      %3183 = vst [vmem:[#allocation3 + $0xf8] sm:$0xf] %v3175
      %3184 = vst [vmem:[#allocation3 + $0x11c] sm:$0xf] %v3176
      %v3185 = vld [vmem:[#allocation3] sm:$0xff]
      %v3186 = vld [vmem:[#allocation3 + $0x8] sm:$0xff]
      %v3187 = vld [vmem:[#allocation3 + $0x10] sm:$0xff]
      %v3188 = vld [vmem:[#allocation3 + $0x18] sm:$0xff]
      %v3189 = vld [vmem:[#allocation3 + $0x20] sm:$0xf]
      %v3190 = vld [vmem:[#allocation3 + $0x24] sm:$0xff]
      %v3191 = vld [vmem:[#allocation3 + $0x2c] sm:$0xff]
      %v3192 = vld [vmem:[#allocation3 + $0x34] sm:$0xff]
      %v3193 = vld [vmem:[#allocation3 + $0x3c] sm:$0xff]
      %v3194 = vld [vmem:[#allocation3 + $0x44] sm:$0xf]
      %v3195 = vld [vmem:[#allocation3 + $0x48] sm:$0xff]
      %v3196 = vld [vmem:[#allocation3 + $0x50] sm:$0xff]
      %v3197 = vld [vmem:[#allocation3 + $0x58] sm:$0xff]
      %v3198 = vld [vmem:[#allocation3 + $0x60] sm:$0xff]
      %v3199 = vld [vmem:[#allocation3 + $0x68] sm:$0xf]
      %v3200 = vld [vmem:[#allocation3 + $0x6c] sm:$0xff]
      %v3201 = vld [vmem:[#allocation3 + $0x74] sm:$0xff]
      %v3202 = vld [vmem:[#allocation3 + $0x7c] sm:$0xff]
      %v3203 = vld [vmem:[#allocation3 + $0x84] sm:$0xff]
      %v3204 = vld [vmem:[#allocation3 + $0x8c] sm:$0xf]
      %v3205 = vld [vmem:[#allocation3 + $0x90] sm:$0xff]
      %v3206 = vld [vmem:[#allocation3 + $0x98] sm:$0xff]
      %v3207 = vld [vmem:[#allocation3 + $0xa0] sm:$0xff]
      %v3208 = vld [vmem:[#allocation3 + $0xa8] sm:$0xff]
      %v3209 = vld [vmem:[#allocation3 + $0xb0] sm:$0xf]
      %v3210 = vld [vmem:[#allocation3 + $0xb4] sm:$0xff]
      %v3211 = vld [vmem:[#allocation3 + $0xbc] sm:$0xff]
      %v3212 = vld [vmem:[#allocation3 + $0xc4] sm:$0xff]
      %v3213 = vld [vmem:[#allocation3 + $0xcc] sm:$0xff]
      %v3214 = vld [vmem:[#allocation3 + $0xd4] sm:$0xf]
      %v3215 = vld [vmem:[#allocation3 + $0xd8] sm:$0xff]
      %v3216 = vld [vmem:[#allocation3 + $0xe0] sm:$0xff]
      %v3217 = vld [vmem:[#allocation3 + $0xe8] sm:$0xff]
      %v3218 = vld [vmem:[#allocation3 + $0xf0] sm:$0xff]
      %v3219 = vld [vmem:[#allocation3 + $0xf8] sm:$0xf]
      %v3220 = vld [vmem:[#allocation3 + $0xfc] sm:$0xff]
      %v3221 = vld [vmem:[#allocation3 + $0x104] sm:$0xff]
      %v3222 = vld [vmem:[#allocation3 + $0x10c] sm:$0xff]
      %v3223 = vld [vmem:[#allocation3 + $0x114] sm:$0xff]
      %v3224 = vld [vmem:[#allocation3 + $0x11c] sm:$0xf]
      %v3225 = vld [vmem:[%s5] sm:$0xf]
      %v3226 = vld [vmem:[%s5 + $0x4] sm:$0xf]
      %v3227 = vld [vmem:[%s5 + $0x8] sm:$0xf]
      %v3228 = vld [vmem:[%s5 + $0xc] sm:$0xf]
      %v3229 = vld [vmem:[%s5 + $0x10] sm:$0xf]
      %v3230 = vld [vmem:[%s5 + $0x14] sm:$0xf]
      %v3231 = vld [vmem:[%s5 + $0x18] sm:$0xf]
      %v3232 = vld [vmem:[%s5 + $0x1c] sm:$0xf]
      %v3233 = vld [vmem:[%s5 + $0x20] sm:$0xf]
      %v3234 = vld [vmem:[%s5 + $0x24] sm:$0xf]
      %v3235 = vld [vmem:[%s5 + $0x28] sm:$0xf]
      %v3236 = vld [vmem:[%s5 + $0x2c] sm:$0xf]
      %v3237 = vld [vmem:[%s5 + $0x30] sm:$0xf]
      %v3238 = vld [vmem:[%s5 + $0x34] sm:$0xf]
      %v3239 = vld [vmem:[%s5 + $0x38] sm:$0xf]
      %v3240 = vld [vmem:[%s5 + $0x3c] sm:$0xf]
      %v3241 = vld [vmem:[%s5 + $0x40] sm:$0xf]
      %v3242 = vld [vmem:[%s5 + $0x44] sm:$0xf]
      %v3243 = vld [vmem:[%s5 + $0x48] sm:$0xf]
      %v3244 = vld [vmem:[%s5 + $0x4c] sm:$0xf]
      %v3245 = vld [vmem:[%s5 + $0x50] sm:$0xf]
      %v3246 = vld [vmem:[%s5 + $0x54] sm:$0xf]
      %v3247 = vld [vmem:[%s5 + $0x58] sm:$0xf]
      %v3248 = vld [vmem:[%s5 + $0x5c] sm:$0xf]
      %v3249 = vld [vmem:[%s5 + $0x60] sm:$0xf]
      %v3250 = vld [vmem:[%s5 + $0x64] sm:$0xf]
      %v3251 = vld [vmem:[%s5 + $0x68] sm:$0xf]
      %v3252 = vld [vmem:[%s5 + $0x6c] sm:$0xf]
      %v3253 = vld [vmem:[%s5 + $0x70] sm:$0xf]
      %v3254 = vld [vmem:[%s5 + $0x74] sm:$0xf]
      %v3255 = vld [vmem:[%s5 + $0x78] sm:$0xf]
      %v3256 = vld [vmem:[%s5 + $0x7c] sm:$0xf]
      %v3257 = vld [vmem:[%s5 + $0x80] sm:$0xf]
      %v3258 = vld [vmem:[%s5 + $0x84] sm:$0xf]
      %v3259 = vld [vmem:[%s5 + $0x88] sm:$0xf]
      %v3260 = vld [vmem:[%s5 + $0x8c] sm:$0xf]
      %v3261 = vld [vmem:[%s5 + $0x90] sm:$0xf]
      %v3262 = vld [vmem:[%s5 + $0x94] sm:$0xf]
      %v3263 = vld [vmem:[%s5 + $0x98] sm:$0xf]
      %v3264 = vld [vmem:[%s5 + $0x9c] sm:$0xf]
      %v3265 = vld [vmem:[%s5 + $0xa0] sm:$0xf]
      %v3266 = vld [vmem:[%s5 + $0xa4] sm:$0xf]
      %v3267 = vld [vmem:[%s5 + $0xa8] sm:$0xf]
      %v3268 = vld [vmem:[%s5 + $0xac] sm:$0xf]
      %v3269 = vld [vmem:[%s5 + $0xb0] sm:$0xf]
      %v3270 = vld [vmem:[%s5 + $0xb4] sm:$0xf]
      %v3271 = vld [vmem:[%s5 + $0xb8] sm:$0xf]
      %v3272 = vld [vmem:[%s5 + $0xbc] sm:$0xf]
      %v3273 = vld [vmem:[%s5 + $0xc0] sm:$0xf]
      %v3274 = vld [vmem:[%s5 + $0xc4] sm:$0xf]
      %v3275 = vld [vmem:[%s5 + $0xc8] sm:$0xf]
      %v3276 = vld [vmem:[%s5 + $0xcc] sm:$0xf]
      %v3277 = vld [vmem:[%s5 + $0xd0] sm:$0xf]
      %v3278 = vld [vmem:[%s5 + $0xd4] sm:$0xf]
      %v3279 = vld [vmem:[%s5 + $0xd8] sm:$0xf]
      %v3280 = vld [vmem:[%s5 + $0xdc] sm:$0xf]
      %v3281 = vld [vmem:[%s5 + $0xe0] sm:$0xf]
      %v3282 = vld [vmem:[%s5 + $0xe4] sm:$0xf]
      %v3283 = vld [vmem:[%s5 + $0xe8] sm:$0xf]
      %v3284 = vld [vmem:[%s5 + $0xec] sm:$0xf]
      %v3285 = vld [vmem:[%s5 + $0xf0] sm:$0xf]
      %v3286 = vld [vmem:[%s5 + $0xf4] sm:$0xf]
      %v3287 = vld [vmem:[%s5 + $0xf8] sm:$0xf]
      %v3288 = vld [vmem:[%s5 + $0xfc] sm:$0xf]
      %v3289 = vld [vmem:[%s5 + $0x100] sm:$0xf]
      %v3290 = vld [vmem:[%s5 + $0x104] sm:$0xf]
      %v3291 = vld [vmem:[%s5 + $0x108] sm:$0xf]
      %v3292 = vld [vmem:[%s5 + $0x10c] sm:$0xf]
      %v3293 = vld [vmem:[%s5 + $0x110] sm:$0xf]
      %v3294 = vld [vmem:[%s5 + $0x114] sm:$0xf]
      %v3295 = vld [vmem:[%s5 + $0x118] sm:$0xf]
      %v3296 = vld [vmem:[%s5 + $0x11c] sm:$0xf]
      %v3297 = vld [vmem:[%s5 + $0x120] sm:$0xf]
      %v3298 = vld [vmem:[%s5 + $0x124] sm:$0xf]
      %v3299 = vld [vmem:[%s5 + $0x128] sm:$0xf]
      %v3300 = vld [vmem:[%s5 + $0x12c] sm:$0xf]
      %v3301 = vld [vmem:[%s5 + $0x130] sm:$0xf]
      %v3302 = vld [vmem:[%s5 + $0x134] sm:$0xf]
      %v3303 = vld [vmem:[%s5 + $0x138] sm:$0xf]
      %v3304 = vld [vmem:[%s5 + $0x13c] sm:$0xf]
      %v3305 = vld [vmem:[%s5 + $0x140] sm:$0xf]
      %v3306 = vld [vmem:[%s5 + $0x144] sm:$0xf]
      %v3307 = vld [vmem:[%s5 + $0x148] sm:$0xf]
      %v3308 = vld [vmem:[%s5 + $0x14c] sm:$0xf]
      %v3309 = vld [vmem:[%s5 + $0x150] sm:$0xf]
      %v3310 = vld [vmem:[%s5 + $0x154] sm:$0xf]
      %v3311 = vld [vmem:[%s5 + $0x158] sm:$0xf]
      %v3312 = vld [vmem:[%s5 + $0x15c] sm:$0xf]
      %v3313 = vld [vmem:[%s5 + $0x160] sm:$0xf]
      %v3314 = vld [vmem:[%s5 + $0x164] sm:$0xf]
      %v3315 = vld [vmem:[%s5 + $0x168] sm:$0xf]
      %v3316 = vld [vmem:[%s5 + $0x16c] sm:$0xf]
      %v3317 = vld [vmem:[%s5 + $0x170] sm:$0xf]
      %v3318 = vld [vmem:[%s5 + $0x174] sm:$0xf]
      %v3319 = vld [vmem:[%s5 + $0x178] sm:$0xf]
      %v3320 = vld [vmem:[%s5 + $0x17c] sm:$0xf]
      %v3321 = vld [vmem:[%s5 + $0x180] sm:$0xf]
      %v3322 = vld [vmem:[%s5 + $0x184] sm:$0xf]
      %v3323 = vld [vmem:[%s5 + $0x188] sm:$0xf]
      %v3324 = vld [vmem:[%s5 + $0x18c] sm:$0xf]
      %v3325 = vld [vmem:[%s5 + $0x190] sm:$0xf]
      %v3326 = vld [vmem:[%s5 + $0x194] sm:$0xf]
      %v3327 = vld [vmem:[%s5 + $0x198] sm:$0xf]
      %v3328 = vld [vmem:[%s5 + $0x19c] sm:$0xf]
      %v3329 = vld [vmem:[%s5 + $0x1a0] sm:$0xf]
      %v3330 = vld [vmem:[%s5 + $0x1a4] sm:$0xf]
      %v3331 = vld [vmem:[%s5 + $0x1a8] sm:$0xf]
      %v3332 = vld [vmem:[%s5 + $0x1ac] sm:$0xf]
      %v3333 = vld [vmem:[%s5 + $0x1b0] sm:$0xf]
      %v3334 = vld [vmem:[%s5 + $0x1b4] sm:$0xf]
      %v3335 = vld [vmem:[%s5 + $0x1b8] sm:$0xf]
      %v3336 = vld [vmem:[%s5 + $0x1bc] sm:$0xf]
      %v3337 = vld [vmem:[%s5 + $0x1c0] sm:$0xf]
      %v3338 = vld [vmem:[%s5 + $0x1c4] sm:$0xf]
      %v3339 = vld [vmem:[%s5 + $0x1c8] sm:$0xf]
      %v3340 = vld [vmem:[%s5 + $0x1cc] sm:$0xf]
      %v3341 = vld [vmem:[%s5 + $0x1d0] sm:$0xf]
      %v3342 = vld [vmem:[%s5 + $0x1d4] sm:$0xf]
      %v3343 = vld [vmem:[%s5 + $0x1d8] sm:$0xf]
      %v3344 = vld [vmem:[%s5 + $0x1dc] sm:$0xf]
      %v3345 = vld [vmem:[%s5 + $0x1e0] sm:$0xf]
      %v3346 = vld [vmem:[%s5 + $0x1e4] sm:$0xf]
      %v3347 = vld [vmem:[%s5 + $0x1e8] sm:$0xf]
      %v3348 = vld [vmem:[%s5 + $0x1ec] sm:$0xf]
      %v3349 = vld [vmem:[%s5 + $0x1f0] sm:$0xf]
      %v3350 = vld [vmem:[%s5 + $0x1f4] sm:$0xf]
      %v3351 = vld [vmem:[%s5 + $0x1f8] sm:$0xf]
      %v3352 = vld [vmem:[%s5 + $0x1fc] sm:$0xf]
      %v3353 = vld [vmem:[%s5 + $0x200] sm:$0xf]
      %v3354 = vld [vmem:[%s5 + $0x204] sm:$0xf]
      %v3355 = vld [vmem:[%s5 + $0x208] sm:$0xf]
      %v3356 = vld [vmem:[%s5 + $0x20c] sm:$0xf]
      %v3357 = vld [vmem:[%s5 + $0x210] sm:$0xf]
      %v3358 = vld [vmem:[%s5 + $0x214] sm:$0xf]
      %v3359 = vld [vmem:[%s5 + $0x218] sm:$0xf]
      %v3360 = vld [vmem:[%s5 + $0x21c] sm:$0xf]
      %v3361 = vld [vmem:[%s5 + $0x220] sm:$0xf]
      %v3362 = vld [vmem:[%s5 + $0x224] sm:$0xf]
      %v3363 = vld [vmem:[%s5 + $0x228] sm:$0xf]
      %v3364 = vld [vmem:[%s5 + $0x22c] sm:$0xf]
      %v3365 = vld [vmem:[%s5 + $0x230] sm:$0xf]
      %v3366 = vld [vmem:[%s5 + $0x234] sm:$0xf]
      %v3367 = vld [vmem:[%s5 + $0x238] sm:$0xf]
      %v3368 = vld [vmem:[%s5 + $0x23c] sm:$0xf]
      %v3369 = vld [vmem:[%s6] sm:$0x1]
      %v3371 = vperm.slane %v3369, 0
      %v3413 = vunpack.c.l.b16 %v3185
      %v3414 = vunpack.c.h.b16 %v3185
      %v3415 = vunpack.c.l.b16 %v3186
      %v3416 = vunpack.c.h.b16 %v3186
      %v3417 = vunpack.c.l.b16 %v3187
      %v3418 = vunpack.c.h.b16 %v3187
      %v3419 = vunpack.c.l.b16 %v3188
      %v3420 = vunpack.c.h.b16 %v3188
      %v3421 = vunpack.c.l.b16 %v3189
      %v3422 = vunpack.c.l.b16 %v3190
      %v3423 = vunpack.c.h.b16 %v3190
      %v3424 = vunpack.c.l.b16 %v3191
      %v3425 = vunpack.c.h.b16 %v3191
      %v3426 = vunpack.c.l.b16 %v3192
      %v3427 = vunpack.c.h.b16 %v3192
      %v3428 = vunpack.c.l.b16 %v3193
      %v3429 = vunpack.c.h.b16 %v3193
      %v3430 = vunpack.c.l.b16 %v3194
      %v3431 = vunpack.c.l.b16 %v3195
      %v3432 = vunpack.c.h.b16 %v3195
      %v3433 = vunpack.c.l.b16 %v3196
      %v3434 = vunpack.c.h.b16 %v3196
      %v3435 = vunpack.c.l.b16 %v3197
      %v3436 = vunpack.c.h.b16 %v3197
      %v3437 = vunpack.c.l.b16 %v3198
      %v3438 = vunpack.c.h.b16 %v3198
      %v3439 = vunpack.c.l.b16 %v3199
      %v3440 = vunpack.c.l.b16 %v3200
      %v3441 = vunpack.c.h.b16 %v3200
      %v3442 = vunpack.c.l.b16 %v3201
      %v3443 = vunpack.c.h.b16 %v3201
      %v3444 = vunpack.c.l.b16 %v3202
      %v3445 = vunpack.c.h.b16 %v3202
      %v3446 = vunpack.c.l.b16 %v3203
      %v3447 = vunpack.c.h.b16 %v3203
      %v3448 = vunpack.c.l.b16 %v3204
      %v3449 = vunpack.c.l.b16 %v3205
      %v3450 = vunpack.c.h.b16 %v3205
      %v3451 = vunpack.c.l.b16 %v3206
      %v3452 = vunpack.c.h.b16 %v3206
      %v3453 = vunpack.c.l.b16 %v3207
      %v3454 = vunpack.c.h.b16 %v3207
      %v3455 = vunpack.c.l.b16 %v3208
      %v3456 = vunpack.c.h.b16 %v3208
      %v3457 = vunpack.c.l.b16 %v3209
      %v3458 = vunpack.c.l.b16 %v3210
      %v3459 = vunpack.c.h.b16 %v3210
      %v3460 = vunpack.c.l.b16 %v3211
      %v3461 = vunpack.c.h.b16 %v3211
      %v3462 = vunpack.c.l.b16 %v3212
      %v3463 = vunpack.c.h.b16 %v3212
      %v3464 = vunpack.c.l.b16 %v3213
      %v3465 = vunpack.c.h.b16 %v3213
      %v3466 = vunpack.c.l.b16 %v3214
      %v3467 = vunpack.c.l.b16 %v3215
      %v3468 = vunpack.c.h.b16 %v3215
      %v3469 = vunpack.c.l.b16 %v3216
      %v3470 = vunpack.c.h.b16 %v3216
      %v3471 = vunpack.c.l.b16 %v3217
      %v3472 = vunpack.c.h.b16 %v3217
      %v3473 = vunpack.c.l.b16 %v3218
      %v3474 = vunpack.c.h.b16 %v3218
      %v3475 = vunpack.c.l.b16 %v3219
      %v3476 = vunpack.c.l.b16 %v3220
      %v3477 = vunpack.c.h.b16 %v3220
      %v3478 = vunpack.c.l.b16 %v3221
      %v3479 = vunpack.c.h.b16 %v3221
      %v3480 = vunpack.c.l.b16 %v3222
      %v3481 = vunpack.c.h.b16 %v3222
      %v3482 = vunpack.c.l.b16 %v3223
      %v3483 = vunpack.c.h.b16 %v3223
      %v3484 = vunpack.c.l.b16 %v3224
      %v3485 = vpack.c.b16 %v3422, %v3413
      %v3486 = vpack.c.b16 %v3423, %v3414
      %v3487 = vpack.c.b16 %v3424, %v3415
      %v3488 = vpack.c.b16 %v3425, %v3416
      %v3489 = vpack.c.b16 %v3426, %v3417
      %v3490 = vpack.c.b16 %v3427, %v3418
      %v3491 = vpack.c.b16 %v3428, %v3419
      %v3492 = vpack.c.b16 %v3429, %v3420
      %v3493 = vpack.c.b16 %v3430, %v3421
      %v3494 = vpack.c.b16 %v3440, %v3431
      %v3495 = vpack.c.b16 %v3441, %v3432
      %v3496 = vpack.c.b16 %v3442, %v3433
      %v3497 = vpack.c.b16 %v3443, %v3434
      %v3498 = vpack.c.b16 %v3444, %v3435
      %v3499 = vpack.c.b16 %v3445, %v3436
      %v3500 = vpack.c.b16 %v3446, %v3437
      %v3501 = vpack.c.b16 %v3447, %v3438
      %v3502 = vpack.c.b16 %v3448, %v3439
      %v3503 = vpack.c.b16 %v3458, %v3449
      %v3504 = vpack.c.b16 %v3459, %v3450
      %v3505 = vpack.c.b16 %v3460, %v3451
      %v3506 = vpack.c.b16 %v3461, %v3452
      %v3507 = vpack.c.b16 %v3462, %v3453
      %v3508 = vpack.c.b16 %v3463, %v3454
      %v3509 = vpack.c.b16 %v3464, %v3455
      %v3510 = vpack.c.b16 %v3465, %v3456
      %v3511 = vpack.c.b16 %v3466, %v3457
      %v3512 = vpack.c.b16 %v3476, %v3467
      %v3513 = vpack.c.b16 %v3477, %v3468
      %v3514 = vpack.c.b16 %v3478, %v3469
      %v3515 = vpack.c.b16 %v3479, %v3470
      %v3516 = vpack.c.b16 %v3480, %v3471
      %v3517 = vpack.c.b16 %v3481, %v3472
      %v3518 = vpack.c.b16 %v3482, %v3473
      %v3519 = vpack.c.b16 %v3483, %v3474
      %v3520 = vpack.c.b16 %v3484, %v3475
      %v3701 = vunpack.c.l.b16 %v3225
      %v3702 = vunpack.c.l.b16 %v3226
      %v3703 = vunpack.c.l.b16 %v3227
      %v3704 = vunpack.c.l.b16 %v3228
      %v3705 = vunpack.c.l.b16 %v3229
      %v3706 = vunpack.c.l.b16 %v3230
      %v3707 = vunpack.c.l.b16 %v3231
      %v3708 = vunpack.c.l.b16 %v3232
      %v3709 = vunpack.c.l.b16 %v3233
      %v3710 = vunpack.c.l.b16 %v3234
      %v3711 = vunpack.c.l.b16 %v3235
      %v3712 = vunpack.c.l.b16 %v3236
      %v3713 = vunpack.c.l.b16 %v3237
      %v3714 = vunpack.c.l.b16 %v3238
      %v3715 = vunpack.c.l.b16 %v3239
      %v3716 = vunpack.c.l.b16 %v3240
      %v3717 = vunpack.c.l.b16 %v3241
      %v3718 = vunpack.c.l.b16 %v3242
      %v3719 = vunpack.c.l.b16 %v3243
      %v3720 = vunpack.c.l.b16 %v3244
      %v3721 = vunpack.c.l.b16 %v3245
      %v3722 = vunpack.c.l.b16 %v3246
      %v3723 = vunpack.c.l.b16 %v3247
      %v3724 = vunpack.c.l.b16 %v3248
      %v3725 = vunpack.c.l.b16 %v3249
      %v3726 = vunpack.c.l.b16 %v3250
      %v3727 = vunpack.c.l.b16 %v3251
      %v3728 = vunpack.c.l.b16 %v3252
      %v3729 = vunpack.c.l.b16 %v3253
      %v3730 = vunpack.c.l.b16 %v3254
      %v3731 = vunpack.c.l.b16 %v3255
      %v3732 = vunpack.c.l.b16 %v3256
      %v3733 = vunpack.c.l.b16 %v3257
      %v3734 = vunpack.c.l.b16 %v3258
      %v3735 = vunpack.c.l.b16 %v3259
      %v3736 = vunpack.c.l.b16 %v3260
      %v3737 = vunpack.c.l.b16 %v3261
      %v3738 = vunpack.c.l.b16 %v3262
      %v3739 = vunpack.c.l.b16 %v3263
      %v3740 = vunpack.c.l.b16 %v3264
      %v3741 = vunpack.c.l.b16 %v3265
      %v3742 = vunpack.c.l.b16 %v3266
      %v3743 = vunpack.c.l.b16 %v3267
      %v3744 = vunpack.c.l.b16 %v3268
      %v3745 = vunpack.c.l.b16 %v3269
      %v3746 = vunpack.c.l.b16 %v3270
      %v3747 = vunpack.c.l.b16 %v3271
      %v3748 = vunpack.c.l.b16 %v3272
      %v3749 = vunpack.c.l.b16 %v3273
      %v3750 = vunpack.c.l.b16 %v3274
      %v3751 = vunpack.c.l.b16 %v3275
      %v3752 = vunpack.c.l.b16 %v3276
      %v3753 = vunpack.c.l.b16 %v3277
      %v3754 = vunpack.c.l.b16 %v3278
      %v3755 = vunpack.c.l.b16 %v3279
      %v3756 = vunpack.c.l.b16 %v3280
      %v3757 = vunpack.c.l.b16 %v3281
      %v3758 = vunpack.c.l.b16 %v3282
      %v3759 = vunpack.c.l.b16 %v3283
      %v3760 = vunpack.c.l.b16 %v3284
      %v3761 = vunpack.c.l.b16 %v3285
      %v3762 = vunpack.c.l.b16 %v3286
      %v3763 = vunpack.c.l.b16 %v3287
      %v3764 = vunpack.c.l.b16 %v3288
      %v3765 = vunpack.c.l.b16 %v3289
      %v3766 = vunpack.c.l.b16 %v3290
      %v3767 = vunpack.c.l.b16 %v3291
      %v3768 = vunpack.c.l.b16 %v3292
      %v3769 = vunpack.c.l.b16 %v3293
      %v3770 = vunpack.c.l.b16 %v3294
      %v3771 = vunpack.c.l.b16 %v3295
      %v3772 = vunpack.c.l.b16 %v3296
      %v3773 = vunpack.c.l.b16 %v3297
      %v3774 = vunpack.c.l.b16 %v3298
      %v3775 = vunpack.c.l.b16 %v3299
      %v3776 = vunpack.c.l.b16 %v3300
      %v3777 = vunpack.c.l.b16 %v3301
      %v3778 = vunpack.c.l.b16 %v3302
      %v3779 = vunpack.c.l.b16 %v3303
      %v3780 = vunpack.c.l.b16 %v3304
      %v3781 = vunpack.c.l.b16 %v3305
      %v3782 = vunpack.c.l.b16 %v3306
      %v3783 = vunpack.c.l.b16 %v3307
      %v3784 = vunpack.c.l.b16 %v3308
      %v3785 = vunpack.c.l.b16 %v3309
      %v3786 = vunpack.c.l.b16 %v3310
      %v3787 = vunpack.c.l.b16 %v3311
      %v3788 = vunpack.c.l.b16 %v3312
      %v3789 = vunpack.c.l.b16 %v3313
      %v3790 = vunpack.c.l.b16 %v3314
      %v3791 = vunpack.c.l.b16 %v3315
      %v3792 = vunpack.c.l.b16 %v3316
      %v3793 = vunpack.c.l.b16 %v3317
      %v3794 = vunpack.c.l.b16 %v3318
      %v3795 = vunpack.c.l.b16 %v3319
      %v3796 = vunpack.c.l.b16 %v3320
      %v3797 = vunpack.c.l.b16 %v3321
      %v3798 = vunpack.c.l.b16 %v3322
      %v3799 = vunpack.c.l.b16 %v3323
      %v3800 = vunpack.c.l.b16 %v3324
      %v3801 = vunpack.c.l.b16 %v3325
      %v3802 = vunpack.c.l.b16 %v3326
      %v3803 = vunpack.c.l.b16 %v3327
      %v3804 = vunpack.c.l.b16 %v3328
      %v3805 = vunpack.c.l.b16 %v3329
      %v3806 = vunpack.c.l.b16 %v3330
      %v3807 = vunpack.c.l.b16 %v3331
      %v3808 = vunpack.c.l.b16 %v3332
      %v3809 = vunpack.c.l.b16 %v3333
      %v3810 = vunpack.c.l.b16 %v3334
      %v3811 = vunpack.c.l.b16 %v3335
      %v3812 = vunpack.c.l.b16 %v3336
      %v3813 = vunpack.c.l.b16 %v3337
      %v3814 = vunpack.c.l.b16 %v3338
      %v3815 = vunpack.c.l.b16 %v3339
      %v3816 = vunpack.c.l.b16 %v3340
      %v3817 = vunpack.c.l.b16 %v3341
      %v3818 = vunpack.c.l.b16 %v3342
      %v3819 = vunpack.c.l.b16 %v3343
      %v3820 = vunpack.c.l.b16 %v3344
      %v3821 = vunpack.c.l.b16 %v3345
      %v3822 = vunpack.c.l.b16 %v3346
      %v3823 = vunpack.c.l.b16 %v3347
      %v3824 = vunpack.c.l.b16 %v3348
      %v3825 = vunpack.c.l.b16 %v3349
      %v3826 = vunpack.c.l.b16 %v3350
      %v3827 = vunpack.c.l.b16 %v3351
      %v3828 = vunpack.c.l.b16 %v3352
      %v3829 = vunpack.c.l.b16 %v3353
      %v3830 = vunpack.c.l.b16 %v3354
      %v3831 = vunpack.c.l.b16 %v3355
      %v3832 = vunpack.c.l.b16 %v3356
      %v3833 = vunpack.c.l.b16 %v3357
      %v3834 = vunpack.c.l.b16 %v3358
      %v3835 = vunpack.c.l.b16 %v3359
      %v3836 = vunpack.c.l.b16 %v3360
      %v3837 = vunpack.c.l.b16 %v3361
      %v3838 = vunpack.c.l.b16 %v3362
      %v3839 = vunpack.c.l.b16 %v3363
      %v3840 = vunpack.c.l.b16 %v3364
      %v3841 = vunpack.c.l.b16 %v3365
      %v3842 = vunpack.c.l.b16 %v3366
      %v3843 = vunpack.c.l.b16 %v3367
      %v3844 = vunpack.c.l.b16 %v3368
      %v3845 = vpack.c.b16 %v3702, %v3701
      %v3846 = vpack.c.b16 %v3704, %v3703
      %v3847 = vpack.c.b16 %v3706, %v3705
      %v3848 = vpack.c.b16 %v3708, %v3707
      %v3849 = vpack.c.b16 %v3710, %v3709
      %v3850 = vpack.c.b16 %v3712, %v3711
      %v3851 = vpack.c.b16 %v3714, %v3713
      %v3852 = vpack.c.b16 %v3716, %v3715
      %v3853 = vpack.c.b16 %v3718, %v3717
      %v3854 = vpack.c.b16 %v3720, %v3719
      %v3855 = vpack.c.b16 %v3722, %v3721
      %v3856 = vpack.c.b16 %v3724, %v3723
      %v3857 = vpack.c.b16 %v3726, %v3725
      %v3858 = vpack.c.b16 %v3728, %v3727
      %v3859 = vpack.c.b16 %v3730, %v3729
      %v3860 = vpack.c.b16 %v3732, %v3731
      %v3861 = vpack.c.b16 %v3734, %v3733
      %v3862 = vpack.c.b16 %v3736, %v3735
      %v3863 = vpack.c.b16 %v3738, %v3737
      %v3864 = vpack.c.b16 %v3740, %v3739
      %v3865 = vpack.c.b16 %v3742, %v3741
      %v3866 = vpack.c.b16 %v3744, %v3743
      %v3867 = vpack.c.b16 %v3746, %v3745
      %v3868 = vpack.c.b16 %v3748, %v3747
      %v3869 = vpack.c.b16 %v3750, %v3749
      %v3870 = vpack.c.b16 %v3752, %v3751
      %v3871 = vpack.c.b16 %v3754, %v3753
      %v3872 = vpack.c.b16 %v3756, %v3755
      %v3873 = vpack.c.b16 %v3758, %v3757
      %v3874 = vpack.c.b16 %v3760, %v3759
      %v3875 = vpack.c.b16 %v3762, %v3761
      %v3876 = vpack.c.b16 %v3764, %v3763
      %v3877 = vpack.c.b16 %v3766, %v3765
      %v3878 = vpack.c.b16 %v3768, %v3767
      %v3879 = vpack.c.b16 %v3770, %v3769
      %v3880 = vpack.c.b16 %v3772, %v3771
      %v3881 = vpack.c.b16 %v3774, %v3773
      %v3882 = vpack.c.b16 %v3776, %v3775
      %v3883 = vpack.c.b16 %v3778, %v3777
      %v3884 = vpack.c.b16 %v3780, %v3779
      %v3885 = vpack.c.b16 %v3782, %v3781
      %v3886 = vpack.c.b16 %v3784, %v3783
      %v3887 = vpack.c.b16 %v3786, %v3785
      %v3888 = vpack.c.b16 %v3788, %v3787
      %v3889 = vpack.c.b16 %v3790, %v3789
      %v3890 = vpack.c.b16 %v3792, %v3791
      %v3891 = vpack.c.b16 %v3794, %v3793
      %v3892 = vpack.c.b16 %v3796, %v3795
      %v3893 = vpack.c.b16 %v3798, %v3797
      %v3894 = vpack.c.b16 %v3800, %v3799
      %v3895 = vpack.c.b16 %v3802, %v3801
      %v3896 = vpack.c.b16 %v3804, %v3803
      %v3897 = vpack.c.b16 %v3806, %v3805
      %v3898 = vpack.c.b16 %v3808, %v3807
      %v3899 = vpack.c.b16 %v3810, %v3809
      %v3900 = vpack.c.b16 %v3812, %v3811
      %v3901 = vpack.c.b16 %v3814, %v3813
      %v3902 = vpack.c.b16 %v3816, %v3815
      %v3903 = vpack.c.b16 %v3818, %v3817
      %v3904 = vpack.c.b16 %v3820, %v3819
      %v3905 = vpack.c.b16 %v3822, %v3821
      %v3906 = vpack.c.b16 %v3824, %v3823
      %v3907 = vpack.c.b16 %v3826, %v3825
      %v3908 = vpack.c.b16 %v3828, %v3827
      %v3909 = vpack.c.b16 %v3830, %v3829
      %v3910 = vpack.c.b16 %v3832, %v3831
      %v3911 = vpack.c.b16 %v3834, %v3833
      %v3912 = vpack.c.b16 %v3836, %v3835
      %v3913 = vpack.c.b16 %v3838, %v3837
      %v3914 = vpack.c.b16 %v3840, %v3839
      %v3915 = vpack.c.b16 %v3842, %v3841
      %v3916 = vpack.c.b16 %v3844, %v3843
      %3989 = vmatpush.bf16.msra.mxu0 %v3852
      %3990 = vmatpush.bf16.msra.mxu0 %v3851
      %3991 = vmatpush.bf16.msra.mxu0 %v3850
      %3992 = vmatpush.bf16.msra.mxu0 %v3849
      %3993 = vmatpush.bf16.msra.mxu0 %v3848
      %3994 = vmatpush.bf16.msra.mxu0 %v3847
      %3995 = vmatpush.bf16.msra.mxu0 %v3846
      %3996 = vmatpush.bf16.msra.mxu0 %v3845
      %3997 = vmatmul.bf16.gmra.mxu0 %v3485
      %v3998 = vpop.f32.mrf.mxu0
      %v3999 = vadd.f32 %v3371, %v3998
      %v4000 = vpop.f32.mrf.mxu0
      %v4001 = vadd.f32 %v3371, %v4000
      %4002 = vmatmul.bf16.gmra.mxu0 %v3494
      %v4003 = vpop.f32.mrf.mxu0
      %v4004 = vadd.f32 %v3371, %v4003
      %v4005 = vpop.f32.mrf.mxu0
      %v4006 = vadd.f32 %v3371, %v4005
      %4007 = vmatmul.bf16.gmra.mxu0 %v3503
      %v4008 = vpop.f32.mrf.mxu0
      %v4009 = vadd.f32 %v3371, %v4008
      %v4010 = vpop.f32.mrf.mxu0
      %v4011 = vadd.f32 %v3371, %v4010
      %4012 = vmatmul.bf16.gmra.mxu0 %v3512
      %v4013 = vpop.f32.mrf.mxu0
      %v4014 = vadd.f32 %v3371, %v4013
      %v4015 = vpop.f32.mrf.mxu0
      %v4016 = vadd.f32 %v3371, %v4015
      %4017 = vdwg.mxu0
      %4018 = vmatpush.bf16.msra.mxu0 %v3860
      %4019 = vmatpush.bf16.msra.mxu0 %v3859
      %4020 = vmatpush.bf16.msra.mxu0 %v3858
      %4021 = vmatpush.bf16.msra.mxu0 %v3857
      %4022 = vmatpush.bf16.msra.mxu0 %v3856
      %4023 = vmatpush.bf16.msra.mxu0 %v3855
      %4024 = vmatpush.bf16.msra.mxu0 %v3854
      %4025 = vmatpush.bf16.msra.mxu0 %v3853
      %4026 = vmatmul.bf16.gmra.mxu0 %v3486
      %v4027 = vpop.f32.mrf.mxu0
      %v4028 = vadd.f32 %v3999, %v4027
      %v4029 = vpop.f32.mrf.mxu0
      %v4030 = vadd.f32 %v4001, %v4029
      %4031 = vmatmul.bf16.gmra.mxu0 %v3495
      %v4032 = vpop.f32.mrf.mxu0
      %v4033 = vadd.f32 %v4004, %v4032
      %v4034 = vpop.f32.mrf.mxu0
      %v4035 = vadd.f32 %v4006, %v4034
      %4036 = vmatmul.bf16.gmra.mxu0 %v3504
      %v4037 = vpop.f32.mrf.mxu0
      %v4038 = vadd.f32 %v4009, %v4037
      %v4039 = vpop.f32.mrf.mxu0
      %v4040 = vadd.f32 %v4011, %v4039
      %4041 = vmatmul.bf16.gmra.mxu0 %v3513
      %v4042 = vpop.f32.mrf.mxu0
      %v4043 = vadd.f32 %v4014, %v4042
      %v4044 = vpop.f32.mrf.mxu0
      %v4045 = vadd.f32 %v4016, %v4044
      %4046 = vdwg.mxu0
      %4047 = vmatpush.bf16.msra.mxu0 %v3868
      %4048 = vmatpush.bf16.msra.mxu0 %v3867
      %4049 = vmatpush.bf16.msra.mxu0 %v3866
      %4050 = vmatpush.bf16.msra.mxu0 %v3865
      %4051 = vmatpush.bf16.msra.mxu0 %v3864
      %4052 = vmatpush.bf16.msra.mxu0 %v3863
      %4053 = vmatpush.bf16.msra.mxu0 %v3862
      %4054 = vmatpush.bf16.msra.mxu0 %v3861
      %4055 = vmatmul.bf16.gmra.mxu0 %v3487
      %v4056 = vpop.f32.mrf.mxu0
      %v4057 = vadd.f32 %v4028, %v4056
      %v4058 = vpop.f32.mrf.mxu0
      %v4059 = vadd.f32 %v4030, %v4058
      %4060 = vmatmul.bf16.gmra.mxu0 %v3496
      %v4061 = vpop.f32.mrf.mxu0
      %v4062 = vadd.f32 %v4033, %v4061
      %v4063 = vpop.f32.mrf.mxu0
      %v4064 = vadd.f32 %v4035, %v4063
      %4065 = vmatmul.bf16.gmra.mxu0 %v3505
      %v4066 = vpop.f32.mrf.mxu0
      %v4067 = vadd.f32 %v4038, %v4066
      %v4068 = vpop.f32.mrf.mxu0
      %v4069 = vadd.f32 %v4040, %v4068
      %4070 = vmatmul.bf16.gmra.mxu0 %v3514
      %v4071 = vpop.f32.mrf.mxu0
      %v4072 = vadd.f32 %v4043, %v4071
      %v4073 = vpop.f32.mrf.mxu0
      %v4074 = vadd.f32 %v4045, %v4073
      %4075 = vdwg.mxu0
      %4076 = vmatpush.bf16.msra.mxu0 %v3876
      %4077 = vmatpush.bf16.msra.mxu0 %v3875
      %4078 = vmatpush.bf16.msra.mxu0 %v3874
      %4079 = vmatpush.bf16.msra.mxu0 %v3873
      %4080 = vmatpush.bf16.msra.mxu0 %v3872
      %4081 = vmatpush.bf16.msra.mxu0 %v3871
      %4082 = vmatpush.bf16.msra.mxu0 %v3870
      %4083 = vmatpush.bf16.msra.mxu0 %v3869
      %4084 = vmatmul.bf16.gmra.mxu0 %v3488
      %v4085 = vpop.f32.mrf.mxu0
      %v4086 = vadd.f32 %v4057, %v4085
      %v4087 = vpop.f32.mrf.mxu0
      %v4088 = vadd.f32 %v4059, %v4087
      %4089 = vmatmul.bf16.gmra.mxu0 %v3497
      %v4090 = vpop.f32.mrf.mxu0
      %v4091 = vadd.f32 %v4062, %v4090
      %v4092 = vpop.f32.mrf.mxu0
      %v4093 = vadd.f32 %v4064, %v4092
      %4094 = vmatmul.bf16.gmra.mxu0 %v3506
      %v4095 = vpop.f32.mrf.mxu0
      %v4096 = vadd.f32 %v4067, %v4095
      %v4097 = vpop.f32.mrf.mxu0
      %v4098 = vadd.f32 %v4069, %v4097
      %4099 = vmatmul.bf16.gmra.mxu0 %v3515
      %v4100 = vpop.f32.mrf.mxu0
      %v4101 = vadd.f32 %v4072, %v4100
      %v4102 = vpop.f32.mrf.mxu0
      %v4103 = vadd.f32 %v4074, %v4102
      %4104 = vdwg.mxu0
      %4105 = vmatpush.bf16.msra.mxu0 %v3884
      %4106 = vmatpush.bf16.msra.mxu0 %v3883
      %4107 = vmatpush.bf16.msra.mxu0 %v3882
      %4108 = vmatpush.bf16.msra.mxu0 %v3881
      %4109 = vmatpush.bf16.msra.mxu0 %v3880
      %4110 = vmatpush.bf16.msra.mxu0 %v3879
      %4111 = vmatpush.bf16.msra.mxu0 %v3878
      %4112 = vmatpush.bf16.msra.mxu0 %v3877
      %4113 = vmatmul.bf16.gmra.mxu0 %v3489
      %v4114 = vpop.f32.mrf.mxu0
      %v4115 = vadd.f32 %v4086, %v4114
      %v4116 = vpop.f32.mrf.mxu0
      %v4117 = vadd.f32 %v4088, %v4116
      %4118 = vmatmul.bf16.gmra.mxu0 %v3498
      %v4119 = vpop.f32.mrf.mxu0
      %v4120 = vadd.f32 %v4091, %v4119
      %v4121 = vpop.f32.mrf.mxu0
      %v4122 = vadd.f32 %v4093, %v4121
      %4123 = vmatmul.bf16.gmra.mxu0 %v3507
      %v4124 = vpop.f32.mrf.mxu0
      %v4125 = vadd.f32 %v4096, %v4124
      %v4126 = vpop.f32.mrf.mxu0
      %v4127 = vadd.f32 %v4098, %v4126
      %4128 = vmatmul.bf16.gmra.mxu0 %v3516
      %v4129 = vpop.f32.mrf.mxu0
      %v4130 = vadd.f32 %v4101, %v4129
      %v4131 = vpop.f32.mrf.mxu0
      %v4132 = vadd.f32 %v4103, %v4131
      %4133 = vdwg.mxu0
      %4134 = vmatpush.bf16.msra.mxu0 %v3892
      %4135 = vmatpush.bf16.msra.mxu0 %v3891
      %4136 = vmatpush.bf16.msra.mxu0 %v3890
      %4137 = vmatpush.bf16.msra.mxu0 %v3889
      %4138 = vmatpush.bf16.msra.mxu0 %v3888
      %4139 = vmatpush.bf16.msra.mxu0 %v3887
      %4140 = vmatpush.bf16.msra.mxu0 %v3886
      %4141 = vmatpush.bf16.msra.mxu0 %v3885
      %4142 = vmatmul.bf16.gmra.mxu0 %v3490
      %v4143 = vpop.f32.mrf.mxu0
      %v4144 = vadd.f32 %v4115, %v4143
      %v4145 = vpop.f32.mrf.mxu0
      %v4146 = vadd.f32 %v4117, %v4145
      %4147 = vmatmul.bf16.gmra.mxu0 %v3499
      %v4148 = vpop.f32.mrf.mxu0
      %v4149 = vadd.f32 %v4120, %v4148
      %v4150 = vpop.f32.mrf.mxu0
      %v4151 = vadd.f32 %v4122, %v4150
      %4152 = vmatmul.bf16.gmra.mxu0 %v3508
      %v4153 = vpop.f32.mrf.mxu0
      %v4154 = vadd.f32 %v4125, %v4153
      %v4155 = vpop.f32.mrf.mxu0
      %v4156 = vadd.f32 %v4127, %v4155
      %4157 = vmatmul.bf16.gmra.mxu0 %v3517
      %v4158 = vpop.f32.mrf.mxu0
      %v4159 = vadd.f32 %v4130, %v4158
      %v4160 = vpop.f32.mrf.mxu0
      %v4161 = vadd.f32 %v4132, %v4160
      %4162 = vdwg.mxu0
      %4163 = vmatpush.bf16.msra.mxu0 %v3900
      %4164 = vmatpush.bf16.msra.mxu0 %v3899
      %4165 = vmatpush.bf16.msra.mxu0 %v3898
      %4166 = vmatpush.bf16.msra.mxu0 %v3897
      %4167 = vmatpush.bf16.msra.mxu0 %v3896
      %4168 = vmatpush.bf16.msra.mxu0 %v3895
      %4169 = vmatpush.bf16.msra.mxu0 %v3894
      %4170 = vmatpush.bf16.msra.mxu0 %v3893
      %4171 = vmatmul.bf16.gmra.mxu0 %v3491
      %v4172 = vpop.f32.mrf.mxu0
      %v4173 = vadd.f32 %v4144, %v4172
      %v4174 = vpop.f32.mrf.mxu0
      %v4175 = vadd.f32 %v4146, %v4174
      %4176 = vmatmul.bf16.gmra.mxu0 %v3500
      %v4177 = vpop.f32.mrf.mxu0
      %v4178 = vadd.f32 %v4149, %v4177
      %v4179 = vpop.f32.mrf.mxu0
      %v4180 = vadd.f32 %v4151, %v4179
      %4181 = vmatmul.bf16.gmra.mxu0 %v3509
      %v4182 = vpop.f32.mrf.mxu0
      %v4183 = vadd.f32 %v4154, %v4182
      %v4184 = vpop.f32.mrf.mxu0
      %v4185 = vadd.f32 %v4156, %v4184
      %4186 = vmatmul.bf16.gmra.mxu0 %v3518
      %v4187 = vpop.f32.mrf.mxu0
      %v4188 = vadd.f32 %v4159, %v4187
      %v4189 = vpop.f32.mrf.mxu0
      %v4190 = vadd.f32 %v4161, %v4189
      %4191 = vdwg.mxu0
      %4192 = vmatpush.bf16.msra.mxu0 %v3908
      %4193 = vmatpush.bf16.msra.mxu0 %v3907
      %4194 = vmatpush.bf16.msra.mxu0 %v3906
      %4195 = vmatpush.bf16.msra.mxu0 %v3905
      %4196 = vmatpush.bf16.msra.mxu0 %v3904
      %4197 = vmatpush.bf16.msra.mxu0 %v3903
      %4198 = vmatpush.bf16.msra.mxu0 %v3902
      %4199 = vmatpush.bf16.msra.mxu0 %v3901
      %4200 = vmatmul.bf16.gmra.mxu0 %v3492
      %v4201 = vpop.f32.mrf.mxu0
      %v4202 = vadd.f32 %v4173, %v4201
      %v4203 = vpop.f32.mrf.mxu0
      %v4204 = vadd.f32 %v4175, %v4203
      %4205 = vmatmul.bf16.gmra.mxu0 %v3501
      %v4206 = vpop.f32.mrf.mxu0
      %v4207 = vadd.f32 %v4178, %v4206
      %v4208 = vpop.f32.mrf.mxu0
      %v4209 = vadd.f32 %v4180, %v4208
      %4210 = vmatmul.bf16.gmra.mxu0 %v3510
      %v4211 = vpop.f32.mrf.mxu0
      %v4212 = vadd.f32 %v4183, %v4211
      %v4213 = vpop.f32.mrf.mxu0
      %v4214 = vadd.f32 %v4185, %v4213
      %4215 = vmatmul.bf16.gmra.mxu0 %v3519
      %v4216 = vpop.f32.mrf.mxu0
      %v4217 = vadd.f32 %v4188, %v4216
      %v4218 = vpop.f32.mrf.mxu0
      %v4219 = vadd.f32 %v4190, %v4218
      %4220 = vdwg.mxu0
      %4221 = vmatpush.bf16.msra.mxu0 %v3916
      %4222 = vmatpush.bf16.msra.mxu0 %v3915
      %4223 = vmatpush.bf16.msra.mxu0 %v3914
      %4224 = vmatpush.bf16.msra.mxu0 %v3913
      %4225 = vmatpush.bf16.msra.mxu0 %v3912
      %4226 = vmatpush.bf16.msra.mxu0 %v3911
      %4227 = vmatpush.bf16.msra.mxu0 %v3910
      %4228 = vmatpush.bf16.msra.mxu0 %v3909
      %4229 = vmatmul.bf16.gmra.mxu0 %v3493
      %v4230 = vpop.f32.mrf.mxu0
      %v4231 = vadd.f32 %v4202, %v4230
      %v4232 = vpop.f32.mrf.mxu0
      %v4233 = vadd.f32 %v4204, %v4232
      %4234 = vmatmul.bf16.gmra.mxu0 %v3502
      %v4235 = vpop.f32.mrf.mxu0
      %v4236 = vadd.f32 %v4207, %v4235
      %v4237 = vpop.f32.mrf.mxu0
      %v4238 = vadd.f32 %v4209, %v4237
      %4239 = vmatmul.bf16.gmra.mxu0 %v3511
      %v4240 = vpop.f32.mrf.mxu0
      %v4241 = vadd.f32 %v4212, %v4240
      %v4242 = vpop.f32.mrf.mxu0
      %v4243 = vadd.f32 %v4214, %v4242
      %4244 = vmatmul.bf16.gmra.mxu0 %v3520
      %v4245 = vpop.f32.mrf.mxu0
      %v4246 = vadd.f32 %v4217, %v4245
      %v4247 = vpop.f32.mrf.mxu0
      %v4248 = vadd.f32 %v4219, %v4247
      %4249 = vdwg.mxu0
      %v4250 = vmax.f32 %v4231, 0.0
      %v4251 = vmax.f32 %v4233, 0.0
      %v4252 = vmax.f32 %v4236, 0.0
      %v4253 = vmax.f32 %v4238, 0.0
      %v4254 = vmax.f32 %v4241, 0.0
      %v4255 = vmax.f32 %v4243, 0.0
      %v4256 = vmax.f32 %v4246, 0.0
      %v4257 = vmax.f32 %v4248, 0.0
      %vm4258 = vcmask 64512
      %4259 = vst.msk [vmem:[%s278] sm:$0xff] %vm4258, %v4250
      %4260 = vst.msk [vmem:[%s278 + $0x8] sm:$0xff] %vm4258, %v4251
      %4261 = vst.msk [vmem:[%s278 + $0x10] sm:$0xff] %vm4258, %v4252
      %4262 = vst.msk [vmem:[%s278 + $0x18] sm:$0xff] %vm4258, %v4253
      %4263 = vst.msk [vmem:[%s278 + $0x20] sm:$0xff] %vm4258, %v4254
      %4264 = vst.msk [vmem:[%s278 + $0x28] sm:$0xff] %vm4258, %v4255
      %4265 = vst.msk [vmem:[%s278 + $0x30] sm:$0xff] %vm4258, %v4256
      %4266 = vst.msk [vmem:[%s278 + $0x38] sm:$0xff] %vm4258, %v4257
      %p4267 = scmp.lt.s32.totalorder %s18, 1
      %s4268 = scalar_select %p4267, %s18, 1
      %s4269 = smul.addr %s4268, 8
      %s4270 = smul.addr %s4269, 8
      %s4271 = scalar_lea.vmem %s7, %s4270
      // Predicated region
      $region49: #{down_attention_ppa.1} parent=47 // pred_check
        %p4272 = pneg %p188
      $region50: #{down_attention_ppa.1} parent=47 // pred_check_branch
        %4274 = sbr.rel (%p4272) target = $region52
      $region51: #{down_attention_ppa.1} parent=47 // pred_region
        _
      $region52: #{down_attention_ppa.1} parent=47 // pred_fallthru
        _
    $region48: #{down_attention_ppa.1} parent=5 // pred_fallthru
      _
    %p4275 = scmp.le.s32.totalorder 2, %s13
    // Predicated region
    $region53: #{down_attention_ppa.1} parent=5 // pred_check
      %p4276 = pneg %p4275
    $region54: #{down_attention_ppa.1} parent=5 // pred_check_branch
      %4278 = sbr.rel (%p4276) target = $region56
    $region55: #{down_attention_ppa.1} parent=5 // pred_region
      %s4279 = ssub.s32 %s13, 2
      // Predicated region
      $region57: #{down_attention_ppa.1} parent=55 // pred_check
        %p4280 = pneg %p194
      $region58: #{down_attention_ppa.1} parent=55 // pred_check_branch
        %4282 = sbr.rel (%p4280) target = $region60
      $region59: #{down_attention_ppa.1} parent=55 // pred_region
        %p4283 = scmp.lt.s32.totalorder %s19, 1
        %s4284 = scalar_select %p4283, %s19, 1
        %s4285 = smul.addr %s4284, 8
        %s4286 = smul.addr %s4285, 8
        %s4287 = scalar_lea.vmem %s7, %s4286
      $region60: #{down_attention_ppa.1} parent=55 // pred_fallthru
        _
    $region56: #{down_attention_ppa.1} parent=5 // pred_fallthru
      _
  $region6: #{down_attention_ppa.1} parent=0 // loop_footer
    %s17 = sadd.s32 1, %s13
  $region7: #{down_attention_ppa.1} parent=0 // loop_footer_branch
    %12 = sbr.rel target = $region3
  $region8: #{down_attention_ppa.1} parent=0 // loop_exit
    _

</llo_original>
